<compile_context>
chip_gen: v7x
topology: tpu7x:2x2x1
jax: 0.10.0
libtpu: 0.0.40
codegen_flags: <defaults>
</compile_context>

<pallas_src>
import functools

import jax
import jax.numpy as jnp
from jax.experimental import pallas as pl
from jax.experimental.pallas import tpu as pltpu


def _round_up(v, m):
    return -(-v // m) * m


# --------------------------------------------------------------------------
# Bilinear x2 interpolation operator (align_corners=False), PyTorch-compatible.
# --------------------------------------------------------------------------
def _interp_matrix(L):
    """(2L, L) 1-D bilinear upsample operator; every row sums to 1."""
    dst = jnp.arange(2 * L, dtype=jnp.float32)
    src = jnp.maximum(0.5 * (dst + 0.5) - 0.5, 0.0)          # PyTorch clamps src >= 0
    i0 = jnp.minimum(jnp.floor(src).astype(jnp.int32), L - 1)
    i1 = jnp.minimum(i0 + 1, L - 1)
    lam = src - i0.astype(jnp.float32)
    rows = jnp.arange(2 * L)
    u = jnp.zeros((2 * L, L), jnp.float32)
    u = u.at[rows, i0].add(1.0 - lam)
    u = u.at[rows, i1].add(lam)
    return u


# --------------------------------------------------------------------------
# Kernel A: fused [bilinear x2 upsample + 1x1 conv + bias + LeakyReLU + BN(eval)].
# The 1x1 conv is applied at low resolution (it commutes with the upsample) and
# the upsample is a single MXU matmul with U = kron(U_H, U_W).
# --------------------------------------------------------------------------
def up_conv1x1_lrelu_bn(x_nhwc, w_pt, b, scale, shift, out_dtype=jnp.bfloat16):
    """x: (N, H, W, Cin);  w_pt: PyTorch (Cout, Cin, 1, 1)."""
    N, H, W, Cin = x_nhwc.shape
    Cout = w_pt.shape[0]
    HW = H * W
    M2 = 4 * HW                                               # up-res pixels per image

    u = jnp.kron(_interp_matrix(H), _interp_matrix(W)).astype(jnp.bfloat16)  # (M2, HW)
    w = jnp.transpose(w_pt[:, :, 0, 0], (1, 0)).astype(jnp.bfloat16)         # (Cin, Cout)
    x2 = x_nhwc.reshape(N, HW, Cin).astype(jnp.bfloat16)
    b2 = b.reshape(1, Cout).astype(jnp.float32)
    s2 = scale.reshape(1, Cout).astype(jnp.float32)
    t2 = shift.reshape(1, Cout).astype(jnp.float32)

    def kernel(x_ref, u_ref, w_ref, b_ref, s_ref, t_ref, o_ref):
        # 1x1 conv at low resolution (bf16 MXU operands, f32 accumulation).
        z = jnp.dot(x_ref[...], w_ref[...], preferred_element_type=jnp.float32)
        z = z + b_ref[...]
        # Bilinear x2 upsample as one MXU matmul (rows of U sum to 1 -> bias ok).
        up = jnp.dot(u_ref[...], z.astype(jnp.bfloat16),
                     preferred_element_type=jnp.float32)       # (M2, Cout)
        up = jnp.where(up >= 0.0, up, 0.2 * up)                # LeakyReLU(0.2)
        o_ref[...] = (up * s_ref[...] + t_ref[...]).astype(o_ref.dtype)

    out = pl.pallas_call(
        kernel,
        out_shape=jax.ShapeDtypeStruct((N, M2, Cout), out_dtype),
        grid=(N,),
        in_specs=[
            pl.BlockSpec((None, HW, Cin), lambda n: (n, 0, 0)),
            pl.BlockSpec((M2, HW), lambda n: (0, 0)),          # resident (fetched once)
            pl.BlockSpec((Cin, Cout), lambda n: (0, 0)),
            pl.BlockSpec((1, Cout), lambda n: (0, 0)),
            pl.BlockSpec((1, Cout), lambda n: (0, 0)),
            pl.BlockSpec((1, Cout), lambda n: (0, 0)),
        ],
        out_specs=pl.BlockSpec((None, M2, Cout), lambda n: (n, 0, 0)),
        compiler_params=pltpu.CompilerParams(dimension_semantics=("parallel",)),
    )(x2, u, w, b2, s2, t2)
    return out.reshape(N, 2 * H, 2 * W, Cout)


# --------------------------------------------------------------------------
# Kernel B: 3x3 conv (padding=1, no bias) + LeakyReLU(0.2) + BN(eval).
# Glue builds only the three dw-shifted copies (zero-filled at W borders) plus
# zero row-margins; inside the kernel the dh taps are aligned static row slices
# and the dw taps are folded into the matmul contraction (K = 3*C).
# --------------------------------------------------------------------------
def _build_dw_taps(x4, padr):
    """(N, Hh, Ww, C) -> (N, Hh*Ww + 2*padr, 3*C).

    Column block k in [0, 3) holds the input shifted by dw = k-1 along W
    (zero-filled at the W borders); `padr` zero rows above/below the flattened
    image make the in-kernel dh = -1/0/+1 taps plain aligned slices (rows that
    fall outside the image read zeros = the conv's zero padding).
    """
    n, hh, ww, c = x4.shape
    xp = jnp.pad(x4, ((0, 0), (0, 0), (1, 1), (0, 0)))
    taps = jnp.stack([xp[:, :, k:k + ww, :] for k in range(3)], axis=3)  # (N,Hh,Ww,3,C)
    flat = taps.reshape(n, hh * ww, 3 * c)
    return jnp.pad(flat, ((0, 0), (padr, padr), (0, 0)))


def conv3x3_lrelu_bn(inputs, w_pt, scale, shift, out_dtype=jnp.float32):
    """`inputs`: list of NHWC tensors whose channels are (virtually) concatenated;
    the concat is never materialized - W is split along Cin per source.
    w_pt: PyTorch (Cout, sum(Cin_i), 3, 3), bias-free."""
    N, Hh, Ww, _ = inputs[0].shape
    for t_in in inputs:
        assert t_in.shape[:3] == (N, Hh, Ww)
    Cout, Cin_total = int(w_pt.shape[0]), int(w_pt.shape[1])
    csizes = [int(t.shape[-1]) for t in inputs]
    assert sum(csizes) == Cin_total
    nsrc = len(inputs)
    M2 = Hh * Ww
    padr = _round_up(Ww, 16)       # >= Ww and a multiple of 16 -> bf16-tile-aligned slices

    xs, wsplit, off = [], [], 0
    for t_in, c in zip(inputs, csizes):
        wpart = w_pt[:, off:off + c, :, :]                       # (Cout, c, 3, 3)
        # folded per-dh weight: [dh, dw*c + ch, o] == w_pt[o, ch, dh, dw]
        wsplit.append(jnp.transpose(wpart, (2, 3, 1, 0))
                      .reshape(3, 3 * c, Cout).astype(jnp.bfloat16))
        xs.append(_build_dw_taps(t_in.astype(jnp.bfloat16), padr))
        off += c
    s2 = scale.reshape(1, Cout).astype(jnp.float32)
    t2 = shift.reshape(1, Cout).astype(jnp.float32)

    def kernel(*refs):
        x_refs = refs[:nsrc]
        w_refs = refs[nsrc:2 * nsrc]
        s_ref, sh_ref, o_ref = refs[2 * nsrc], refs[2 * nsrc + 1], refs[2 * nsrc + 2]
        acc = jnp.zeros((M2, Cout), jnp.float32)
        for x_ref, w_ref in zip(x_refs, w_refs):
            for dh in range(3):                                   # unrolled, in-register acc
                start = padr + (dh - 1) * Ww                      # aligned static offset
                acc = acc + jnp.dot(x_ref[pl.ds(start, M2), :], w_ref[dh],
                                    preferred_element_type=jnp.float32)
        y = jnp.where(acc >= 0.0, acc, 0.2 * acc)                 # LeakyReLU(0.2)
        o_ref[...] = (y * s_ref[...] + sh_ref[...]).astype(o_ref.dtype)

    in_specs = (
        [pl.BlockSpec((None, M2 + 2 * padr, 3 * c), lambda n: (n, 0, 0)) for c in csizes]
        + [pl.BlockSpec((3, 3 * c, Cout), lambda n: (0, 0, 0)) for c in csizes]
        + [pl.BlockSpec((1, Cout), lambda n: (0, 0)),
           pl.BlockSpec((1, Cout), lambda n: (0, 0))]
    )
    out = pl.pallas_call(
        kernel,
        out_shape=jax.ShapeDtypeStruct((N, M2, Cout), out_dtype),
        grid=(N,),
        in_specs=in_specs,
        out_specs=pl.BlockSpec((None, M2, Cout), lambda n: (n, 0, 0)),
        compiler_params=pltpu.CompilerParams(dimension_semantics=("parallel",)),
    )(*xs, *wsplit, s2, t2)
    return out.reshape(N, Hh, Ww, Cout)


# --------------------------------------------------------------------------
# Parameters (deterministic synthetic init, eval-mode BN folded) and forward.
# --------------------------------------------------------------------------
def _bn_scale_shift(key, c, eps=1e-5):
    k1, k2, k3, k4 = jax.random.split(key, 4)
    gamma = 1.0 + 0.1 * jax.random.normal(k1, (c,), jnp.float32)
    beta = 0.1 * jax.random.normal(k2, (c,), jnp.float32)
    mean = 0.1 * jax.random.normal(k3, (c,), jnp.float32)
    var = jax.random.uniform(k4, (c,), jnp.float32, minval=0.5, maxval=1.5)
    scale = gamma / jnp.sqrt(var + eps)
    shift = beta - mean * scale
    return scale, shift


def init_params(key, in_size, out_size):
    ks = jax.random.split(key, 7)
    p = {}
    p["w_up"] = 0.3 * jax.random.normal(ks[0], (out_size, in_size, 1, 1), jnp.float32)
    p["b_up"] = 0.1 * jax.random.normal(ks[1], (out_size,), jnp.float32)
    p["bn_up"] = _bn_scale_shift(ks[2], out_size)
    p["w_c1"] = 0.2 * jax.random.normal(ks[3], (out_size, in_size, 3, 3), jnp.float32)
    p["bn_c1"] = _bn_scale_shift(ks[4], out_size)
    p["w_c2"] = 0.2 * jax.random.normal(ks[5], (out_size, out_size, 3, 3), jnp.float32)
    p["bn_c2"] = _bn_scale_shift(ks[6], out_size)
    return p


def upsample_forward(x_nchw, bridge_nchw, p, skip=True, concat=True):
    """x, bridge: NCHW (PyTorch layout); returns NCHW."""
    x = jnp.transpose(x_nchw, (0, 2, 3, 1))
    bridge = jnp.transpose(bridge_nchw, (0, 2, 3, 1))
    up = up_conv1x1_lrelu_bn(x, p["w_up"], p["b_up"], *p["bn_up"])      # (N,2H,2W,Cout) bf16
    if skip:
        sources = [up, bridge] if concat else [up + bridge]
    else:
        sources = [up]
    h = conv3x3_lrelu_bn(sources, p["w_c1"], *p["bn_c1"], out_dtype=jnp.bfloat16)
    out = conv3x3_lrelu_bn([h], p["w_c2"], *p["bn_c2"], out_dtype=jnp.float32)
    return jnp.transpose(out, (0, 3, 1, 2))


# --------------------------------------------------------------------------
# Pure-JAX reference (f32) for a numerical sanity check.
# --------------------------------------------------------------------------
def _bilinear_up2_ref(x):
    def interp(arr, L, axis):
        dst = jnp.arange(2 * L, dtype=jnp.float32)
        src = jnp.maximum(0.5 * (dst + 0.5) - 0.5, 0.0)
        i0 = jnp.minimum(jnp.floor(src).astype(jnp.int32), L - 1)
        i1 = jnp.minimum(i0 + 1, L - 1)
        lam = src - i0.astype(jnp.float32)
        a = jnp.take(arr, i0, axis=axis)
        b = jnp.take(arr, i1, axis=axis)
        shp = [1] * arr.ndim
        shp[axis] = 2 * L
        return a * (1.0 - lam.reshape(shp)) + b * lam.reshape(shp)

    _, H, W, _ = x.shape
    return interp(interp(x, H, 1), W, 2)


def reference_forward(x_nchw, bridge_nchw, p):
    def lrelu(v):
        return jnp.where(v >= 0.0, v, 0.2 * v)

    x = jnp.transpose(x_nchw, (0, 2, 3, 1))
    bridge = jnp.transpose(bridge_nchw, (0, 2, 3, 1))
    s_up, t_up = p["bn_up"]
    s1, t1 = p["bn_c1"]
    s2, t2 = p["bn_c2"]

    up = _bilinear_up2_ref(x)
    up = jnp.einsum("nhwc,co->nhwo", up, jnp.transpose(p["w_up"][:, :, 0, 0], (1, 0)))
    up = lrelu(up + p["b_up"]) * s_up + t_up
    cat = jnp.concatenate([up, bridge], axis=-1)

    def conv3(v, w_pt):
        return jax.lax.conv_general_dilated(
            v, jnp.transpose(w_pt, (2, 3, 1, 0)), (1, 1), "SAME",
            dimension_numbers=("NHWC", "HWIO", "NHWC"))

    h = lrelu(conv3(cat, p["w_c1"])) * s1 + t1
    out = lrelu(conv3(h, p["w_c2"])) * s2 + t2
    return jnp.transpose(out, (0, 3, 1, 2))


if __name__ == "__main__":
    in_size, out_size = 8, 4          # bridge has in_size - out_size channels
    N, H, W = 2, 8, 8

    key = jax.random.PRNGKey(0)
    kx, kb, kp = jax.random.split(key, 3)
    x = jax.random.normal(kx, (N, in_size, H, W), jnp.float32)                     # NCHW
    bridge = jax.random.normal(kb, (N, in_size - out_size, 2 * H, 2 * W), jnp.float32)
    params = init_params(kp, in_size, out_size)

    fwd = jax.jit(functools.partial(upsample_forward, skip=True, concat=True))
    out = jax.block_until_ready(fwd(x, bridge, params))

    assert out.shape == (N, out_size, 2 * H, 2 * W), out.shape
    assert out.dtype == jnp.float32
    assert bool(jnp.all(jnp.isfinite(out)))

    # Numerical check against the pure-JAX f32 reference (bf16 MXU operands ->
    # expect ~1% relative error; a loose but meaningful tolerance).
    ref = jax.jit(reference_forward)(x, bridge, params)
    err = float(jnp.max(jnp.abs(out - ref)))
    mag = float(jnp.max(jnp.abs(ref)))
    assert err <= 0.05 * mag + 0.05, (err, mag)

    print("KERNEL_OK")
</pallas_src>

<mosaic_0001>
module attributes {stable_mosaic.version = 11 : i64} {
  func.func private @main(%arg0: i32) attributes {dimension_semantics = [#tpu.dimension_semantics<core_parallel>], iteration_bounds = array<i64: 2>, tpu.core_type = #tpu.core_type<sc_scalar_subcore>, window_params = []} {
    return
  }
}

module attributes {stable_mosaic.version = 11 : i64} {
  func.func private @main(%arg0: i32) attributes {dimension_semantics = [#tpu.dimension_semantics<core_parallel>], iteration_bounds = array<i64: 2>, tpu.core_type = #tpu.core_type<sc_scalar_subcore>, window_params = []} {
    return
  }
}

module attributes {stable_mosaic.version = 11 : i64} {
  func.func @kernel(%arg0: i32, %arg1: memref<1x288x12xbf16, #tpu.memory_space<vmem>>, %arg2: memref<3x12x4xbf16, #tpu.memory_space<vmem>>, %arg3: memref<1x4xf32, #tpu.memory_space<vmem>>, %arg4: memref<1x4xf32, #tpu.memory_space<vmem>>, %arg5: memref<1x256x4xf32, #tpu.memory_space<vmem>>) attributes {dimension_semantics = [#tpu.dimension_semantics<parallel>], iteration_bounds = array<i64: 2>, scalar_prefetch = 0 : i64, scratch_operands = 0 : i64, tpu.core_type = #tpu.core_type<tc>, window_params = [{transform_indices = @transform_0, window_bounds = array<i64: 1, 288, 12>}, {pipeline_mode = #tpu.pipeline_mode<synchronous>, transform_indices = @transform_1, window_bounds = array<i64: 3, 12, 4>}, {pipeline_mode = #tpu.pipeline_mode<synchronous>, transform_indices = @transform_2, window_bounds = array<i64: 1, 4>}, {pipeline_mode = #tpu.pipeline_mode<synchronous>, transform_indices = @transform_3, window_bounds = array<i64: 1, 4>}, {transform_indices = @transform_4, window_bounds = array<i64: 1, 256, 4>}]} {
    %cst = arith.constant 0.000000e+00 : f32
    %0 = vector.broadcast %cst : f32 to vector<256x4xf32>
    %c0 = arith.constant 0 : index
    %c0_0 = arith.constant 0 : index
    %c0_1 = arith.constant 0 : index
    %1 = vector.load %arg1[%c0, %c0_0, %c0_1] : memref<1x288x12xbf16, #tpu.memory_space<vmem>>, vector<1x256x12xbf16>
    %2 = vector.shape_cast %1 : vector<1x256x12xbf16> to vector<256x12xbf16>
    %c0_2 = arith.constant 0 : index
    %c0_3 = arith.constant 0 : index
    %c0_4 = arith.constant 0 : index
    %3 = vector.load %arg2[%c0_2, %c0_3, %c0_4] : memref<3x12x4xbf16, #tpu.memory_space<vmem>>, vector<1x12x4xbf16>
    %4 = vector.shape_cast %3 : vector<1x12x4xbf16> to vector<12x4xbf16>
    %cst_5 = arith.constant dense<0.000000e+00> : vector<256x4xf32>
    %5 = tpu.matmul %2, %4, %cst_5 {dimension_numbers = #tpu.dot_dimension_numbers<[1], [0], [0], [1], [0, 0, 1, 1], [], []>} : vector<256x12xbf16>, vector<12x4xbf16>, vector<256x4xf32> -> vector<256x4xf32>
    %6 = arith.addf %0, %5 : vector<256x4xf32>
    %c0_6 = arith.constant 0 : index
    %c16 = arith.constant 16 : index
    %c0_7 = arith.constant 0 : index
    %7 = vector.load %arg1[%c0_6, %c16, %c0_7] : memref<1x288x12xbf16, #tpu.memory_space<vmem>>, vector<1x256x12xbf16>
    %8 = vector.shape_cast %7 : vector<1x256x12xbf16> to vector<256x12xbf16>
    %c1 = arith.constant 1 : index
    %c0_8 = arith.constant 0 : index
    %c0_9 = arith.constant 0 : index
    %9 = vector.load %arg2[%c1, %c0_8, %c0_9] : memref<3x12x4xbf16, #tpu.memory_space<vmem>>, vector<1x12x4xbf16>
    %10 = vector.shape_cast %9 : vector<1x12x4xbf16> to vector<12x4xbf16>
    %cst_10 = arith.constant dense<0.000000e+00> : vector<256x4xf32>
    %11 = tpu.matmul %8, %10, %cst_10 {dimension_numbers = #tpu.dot_dimension_numbers<[1], [0], [0], [1], [0, 0, 1, 1], [], []>} : vector<256x12xbf16>, vector<12x4xbf16>, vector<256x4xf32> -> vector<256x4xf32>
    %12 = arith.addf %6, %11 : vector<256x4xf32>
    %c0_11 = arith.constant 0 : index
    %c32 = arith.constant 32 : index
    %c0_12 = arith.constant 0 : index
    %13 = vector.load %arg1[%c0_11, %c32, %c0_12] : memref<1x288x12xbf16, #tpu.memory_space<vmem>>, vector<1x256x12xbf16>
    %14 = vector.shape_cast %13 : vector<1x256x12xbf16> to vector<256x12xbf16>
    %c2 = arith.constant 2 : index
    %c0_13 = arith.constant 0 : index
    %c0_14 = arith.constant 0 : index
    %15 = vector.load %arg2[%c2, %c0_13, %c0_14] : memref<3x12x4xbf16, #tpu.memory_space<vmem>>, vector<1x12x4xbf16>
    %16 = vector.shape_cast %15 : vector<1x12x4xbf16> to vector<12x4xbf16>
    %cst_15 = arith.constant dense<0.000000e+00> : vector<256x4xf32>
    %17 = tpu.matmul %14, %16, %cst_15 {dimension_numbers = #tpu.dot_dimension_numbers<[1], [0], [0], [1], [0, 0, 1, 1], [], []>} : vector<256x12xbf16>, vector<12x4xbf16>, vector<256x4xf32> -> vector<256x4xf32>
    %18 = arith.addf %12, %17 : vector<256x4xf32>
    %cst_16 = arith.constant 0.000000e+00 : f32
    %19 = vector.broadcast %cst_16 : f32 to vector<256x4xf32>
    %20 = arith.cmpf oge, %18, %19 : vector<256x4xf32>
    %cst_17 = arith.constant 2.000000e-01 : f32
    %21 = vector.broadcast %cst_17 : f32 to vector<256x4xf32>
    %22 = arith.mulf %21, %18 : vector<256x4xf32>
    %23 = arith.select %20, %18, %22 : vector<256x4xi1>, vector<256x4xf32>
    %c0_18 = arith.constant 0 : index
    %c0_19 = arith.constant 0 : index
    %24 = vector.load %arg3[%c0_18, %c0_19] : memref<1x4xf32, #tpu.memory_space<vmem>>, vector<1x4xf32>
    %25 = vector.broadcast %24 : vector<1x4xf32> to vector<256x4xf32>
    %26 = arith.mulf %23, %25 : vector<256x4xf32>
    %c0_20 = arith.constant 0 : index
    %c0_21 = arith.constant 0 : index
    %27 = vector.load %arg4[%c0_20, %c0_21] : memref<1x4xf32, #tpu.memory_space<vmem>>, vector<1x4xf32>
    %28 = vector.broadcast %27 : vector<1x4xf32> to vector<256x4xf32>
    %29 = arith.addf %26, %28 : vector<256x4xf32>
    %c0_22 = arith.constant 0 : index
    %c0_23 = arith.constant 0 : index
    %c0_24 = arith.constant 0 : index
    %30 = vector.load %arg5[%c0_22, %c0_23, %c0_24] : memref<1x256x4xf32, #tpu.memory_space<vmem>>, vector<1x256x4xf32>
    %31 = vector.shape_cast %30 : vector<1x256x4xf32> to vector<256x4xf32>
    %32 = vector.shape_cast %29 : vector<256x4xf32> to vector<1x256x4xf32>
    tpu.vector_store %arg5[%c0_22, %c0_23, %c0_24], %32 {strides = array<i32>} : memref<1x256x4xf32, #tpu.memory_space<vmem>>, vector<1x256x4xf32>,
    return
  }
  func.func @transform_0(%arg0: i32) -> (i32, i32, i32) {
    %c0_i32 = arith.constant 0 : i32
    %c0_i32_0 = arith.constant 0 : i32
    %c0_i32_1 = arith.constant 0 : i32
    return %arg0, %c0_i32, %c0_i32_0 : i32, i32, i32
  }
  func.func @transform_1(%arg0: i32) -> (i32, i32, i32) {
    %c0_i32 = arith.constant 0 : i32
    %c0_i32_0 = arith.constant 0 : i32
    %c0_i32_1 = arith.constant 0 : i32
    %c0_i32_2 = arith.constant 0 : i32
    return %c0_i32, %c0_i32_0, %c0_i32_1 : i32, i32, i32
  }
  func.func @transform_2(%arg0: i32) -> (i32, i32) {
    %c0_i32 = arith.constant 0 : i32
    %c0_i32_0 = arith.constant 0 : i32
    %c0_i32_1 = arith.constant 0 : i32
    return %c0_i32, %c0_i32_0 : i32, i32
  }
  func.func @transform_3(%arg0: i32) -> (i32, i32) {
    %c0_i32 = arith.constant 0 : i32
    %c0_i32_0 = arith.constant 0 : i32
    %c0_i32_1 = arith.constant 0 : i32
    return %c0_i32, %c0_i32_0 : i32, i32
  }
  func.func @transform_4(%arg0: i32) -> (i32, i32, i32) {
    %c0_i32 = arith.constant 0 : i32
    %c0_i32_0 = arith.constant 0 : i32
    %c0_i32_1 = arith.constant 0 : i32
    return %arg0, %c0_i32, %c0_i32_0 : i32, i32, i32
  }
}

module attributes {stable_mosaic.version = 11 : i64} {
  func.func @kernel(%arg0: i32, %arg1: memref<1x64x8xbf16, #tpu.memory_space<vmem>>, %arg2: memref<256x64xbf16, #tpu.memory_space<vmem>>, %arg3: memref<8x4xbf16, #tpu.memory_space<vmem>>, %arg4: memref<1x4xf32, #tpu.memory_space<vmem>>, %arg5: memref<1x4xf32, #tpu.memory_space<vmem>>, %arg6: memref<1x4xf32, #tpu.memory_space<vmem>>, %arg7: memref<1x256x4xbf16, #tpu.memory_space<vmem>>) attributes {dimension_semantics = [#tpu.dimension_semantics<parallel>], iteration_bounds = array<i64: 2>, scalar_prefetch = 0 : i64, scratch_operands = 0 : i64, tpu.core_type = #tpu.core_type<tc>, window_params = [{transform_indices = @transform_0, window_bounds = array<i64: 1, 64, 8>}, {pipeline_mode = #tpu.pipeline_mode<synchronous>, transform_indices = @transform_1, window_bounds = array<i64: 256, 64>}, {pipeline_mode = #tpu.pipeline_mode<synchronous>, transform_indices = @transform_2, window_bounds = array<i64: 8, 4>}, {pipeline_mode = #tpu.pipeline_mode<synchronous>, transform_indices = @transform_3, window_bounds = array<i64: 1, 4>}, {pipeline_mode = #tpu.pipeline_mode<synchronous>, transform_indices = @transform_4, window_bounds = array<i64: 1, 4>}, {pipeline_mode = #tpu.pipeline_mode<synchronous>, transform_indices = @transform_5, window_bounds = array<i64: 1, 4>}, {transform_indices = @transform_6, window_bounds = array<i64: 1, 256, 4>}]} {
    %c0 = arith.constant 0 : index
    %c0_0 = arith.constant 0 : index
    %c0_1 = arith.constant 0 : index
    %0 = vector.load %arg1[%c0, %c0_0, %c0_1] : memref<1x64x8xbf16, #tpu.memory_space<vmem>>, vector<1x64x8xbf16>
    %1 = vector.shape_cast %0 : vector<1x64x8xbf16> to vector<64x8xbf16>
    %c0_2 = arith.constant 0 : index
    %c0_3 = arith.constant 0 : index
    %2 = vector.load %arg3[%c0_2, %c0_3] : memref<8x4xbf16, #tpu.memory_space<vmem>>, vector<8x4xbf16>
    %cst = arith.constant dense<0.000000e+00> : vector<64x4xf32>
    %3 = tpu.matmul %1, %2, %cst {dimension_numbers = #tpu.dot_dimension_numbers<[1], [0], [0], [1], [0, 0, 1, 1], [], []>} : vector<64x8xbf16>, vector<8x4xbf16>, vector<64x4xf32> -> vector<64x4xf32>
    %c0_4 = arith.constant 0 : index
    %c0_5 = arith.constant 0 : index
    %4 = vector.load %arg4[%c0_4, %c0_5] : memref<1x4xf32, #tpu.memory_space<vmem>>, vector<1x4xf32>
    %5 = vector.broadcast %4 : vector<1x4xf32> to vector<64x4xf32>
    %6 = arith.addf %3, %5 : vector<64x4xf32>
    %c0_6 = arith.constant 0 : index
    %c0_7 = arith.constant 0 : index
    %7 = vector.load %arg2[%c0_6, %c0_7] : memref<256x64xbf16, #tpu.memory_space<vmem>>, vector<256x64xbf16>
    %8 = arith.truncf %6 : vector<64x4xf32> to vector<64x4xbf16>
    %cst_8 = arith.constant dense<0.000000e+00> : vector<256x4xf32>
    %9 = tpu.matmul %7, %8, %cst_8 {dimension_numbers = #tpu.dot_dimension_numbers<[1], [0], [0], [1], [0, 0, 1, 1], [], []>} : vector<256x64xbf16>, vector<64x4xbf16>, vector<256x4xf32> -> vector<256x4xf32>
    %cst_9 = arith.constant 0.000000e+00 : f32
    %10 = vector.broadcast %cst_9 : f32 to vector<256x4xf32>
    %11 = arith.cmpf oge, %9, %10 : vector<256x4xf32>
    %cst_10 = arith.constant 2.000000e-01 : f32
    %12 = vector.broadcast %cst_10 : f32 to vector<256x4xf32>
    %13 = arith.mulf %12, %9 : vector<256x4xf32>
    %14 = arith.select %11, %9, %13 : vector<256x4xi1>, vector<256x4xf32>
    %c0_11 = arith.constant 0 : index
    %c0_12 = arith.constant 0 : index
    %15 = vector.load %arg5[%c0_11, %c0_12] : memref<1x4xf32, #tpu.memory_space<vmem>>, vector<1x4xf32>
    %16 = vector.broadcast %15 : vector<1x4xf32> to vector<256x4xf32>
    %17 = arith.mulf %14, %16 : vector<256x4xf32>
    %c0_13 = arith.constant 0 : index
    %c0_14 = arith.constant 0 : index
    %18 = vector.load %arg6[%c0_13, %c0_14] : memref<1x4xf32, #tpu.memory_space<vmem>>, vector<1x4xf32>
    %19 = vector.broadcast %18 : vector<1x4xf32> to vector<256x4xf32>
    %20 = arith.addf %17, %19 : vector<256x4xf32>
    %21 = arith.truncf %20 : vector<256x4xf32> to vector<256x4xbf16>
    %c0_15 = arith.constant 0 : index
    %c0_16 = arith.constant 0 : index
    %c0_17 = arith.constant 0 : index
    %22 = vector.load %arg7[%c0_15, %c0_16, %c0_17] : memref<1x256x4xbf16, #tpu.memory_space<vmem>>, vector<1x256x4xbf16>
    %23 = vector.shape_cast %22 : vector<1x256x4xbf16> to vector<256x4xbf16>
    %24 = vector.shape_cast %21 : vector<256x4xbf16> to vector<1x256x4xbf16>
    tpu.vector_store %arg7[%c0_15, %c0_16, %c0_17], %24 {strides = array<i32>} : memref<1x256x4xbf16, #tpu.memory_space<vmem>>, vector<1x256x4xbf16>,
    return
  }
  func.func @transform_0(%arg0: i32) -> (i32, i32, i32) {
    %c0_i32 = arith.constant 0 : i32
    %c0_i32_0 = arith.constant 0 : i32
    %c0_i32_1 = arith.constant 0 : i32
    return %arg0, %c0_i32, %c0_i32_0 : i32, i32, i32
  }
  func.func @transform_1(%arg0: i32) -> (i32, i32) {
    %c0_i32 = arith.constant 0 : i32
    %c0_i32_0 = arith.constant 0 : i32
    %c0_i32_1 = arith.constant 0 : i32
    return %c0_i32, %c0_i32_0 : i32, i32
  }
  func.func @transform_2(%arg0: i32) -> (i32, i32) {
    %c0_i32 = arith.constant 0 : i32
    %c0_i32_0 = arith.constant 0 : i32
    %c0_i32_1 = arith.constant 0 : i32
    return %c0_i32, %c0_i32_0 : i32, i32
  }
  func.func @transform_3(%arg0: i32) -> (i32, i32) {
    %c0_i32 = arith.constant 0 : i32
    %c0_i32_0 = arith.constant 0 : i32
    %c0_i32_1 = arith.constant 0 : i32
    return %c0_i32, %c0_i32_0 : i32, i32
  }
  func.func @transform_4(%arg0: i32) -> (i32, i32) {
    %c0_i32 = arith.constant 0 : i32
    %c0_i32_0 = arith.constant 0 : i32
    %c0_i32_1 = arith.constant 0 : i32
    return %c0_i32, %c0_i32_0 : i32, i32
  }
  func.func @transform_5(%arg0: i32) -> (i32, i32) {
    %c0_i32 = arith.constant 0 : i32
    %c0_i32_0 = arith.constant 0 : i32
    %c0_i32_1 = arith.constant 0 : i32
    return %c0_i32, %c0_i32_0 : i32, i32
  }
  func.func @transform_6(%arg0: i32) -> (i32, i32, i32) {
    %c0_i32 = arith.constant 0 : i32
    %c0_i32_0 = arith.constant 0 : i32
    %c0_i32_1 = arith.constant 0 : i32
    return %arg0, %c0_i32, %c0_i32_0 : i32, i32, i32
  }
}

module attributes {stable_mosaic.version = 11 : i64} {
  func.func @kernel(%arg0: i32, %arg1: memref<1x288x12xbf16, #tpu.memory_space<vmem>>, %arg2: memref<1x288x12xbf16, #tpu.memory_space<vmem>>, %arg3: memref<3x12x4xbf16, #tpu.memory_space<vmem>>, %arg4: memref<3x12x4xbf16, #tpu.memory_space<vmem>>, %arg5: memref<1x4xf32, #tpu.memory_space<vmem>>, %arg6: memref<1x4xf32, #tpu.memory_space<vmem>>, %arg7: memref<1x256x4xbf16, #tpu.memory_space<vmem>>) attributes {dimension_semantics = [#tpu.dimension_semantics<parallel>], iteration_bounds = array<i64: 2>, scalar_prefetch = 0 : i64, scratch_operands = 0 : i64, tpu.core_type = #tpu.core_type<tc>, window_params = [{transform_indices = @transform_0, window_bounds = array<i64: 1, 288, 12>}, {transform_indices = @transform_1, window_bounds = array<i64: 1, 288, 12>}, {pipeline_mode = #tpu.pipeline_mode<synchronous>, transform_indices = @transform_2, window_bounds = array<i64: 3, 12, 4>}, {pipeline_mode = #tpu.pipeline_mode<synchronous>, transform_indices = @transform_3, window_bounds = array<i64: 3, 12, 4>}, {pipeline_mode = #tpu.pipeline_mode<synchronous>, transform_indices = @transform_4, window_bounds = array<i64: 1, 4>}, {pipeline_mode = #tpu.pipeline_mode<synchronous>, transform_indices = @transform_5, window_bounds = array<i64: 1, 4>}, {transform_indices = @transform_6, window_bounds = array<i64: 1, 256, 4>}]} {
    %cst = arith.constant 0.000000e+00 : f32
    %0 = vector.broadcast %cst : f32 to vector<256x4xf32>
    %c0 = arith.constant 0 : index
    %c0_0 = arith.constant 0 : index
    %c0_1 = arith.constant 0 : index
    %1 = vector.load %arg1[%c0, %c0_0, %c0_1] : memref<1x288x12xbf16, #tpu.memory_space<vmem>>, vector<1x256x12xbf16>
    %2 = vector.shape_cast %1 : vector<1x256x12xbf16> to vector<256x12xbf16>
    %c0_2 = arith.constant 0 : index
    %c0_3 = arith.constant 0 : index
    %c0_4 = arith.constant 0 : index
    %3 = vector.load %arg3[%c0_2, %c0_3, %c0_4] : memref<3x12x4xbf16, #tpu.memory_space<vmem>>, vector<1x12x4xbf16>
    %4 = vector.shape_cast %3 : vector<1x12x4xbf16> to vector<12x4xbf16>
    %cst_5 = arith.constant dense<0.000000e+00> : vector<256x4xf32>
    %5 = tpu.matmul %2, %4, %cst_5 {dimension_numbers = #tpu.dot_dimension_numbers<[1], [0], [0], [1], [0, 0, 1, 1], [], []>} : vector<256x12xbf16>, vector<12x4xbf16>, vector<256x4xf32> -> vector<256x4xf32>
    %6 = arith.addf %0, %5 : vector<256x4xf32>
    %c0_6 = arith.constant 0 : index
    %c16 = arith.constant 16 : index
    %c0_7 = arith.constant 0 : index
    %7 = vector.load %arg1[%c0_6, %c16, %c0_7] : memref<1x288x12xbf16, #tpu.memory_space<vmem>>, vector<1x256x12xbf16>
    %8 = vector.shape_cast %7 : vector<1x256x12xbf16> to vector<256x12xbf16>
    %c1 = arith.constant 1 : index
    %c0_8 = arith.constant 0 : index
    %c0_9 = arith.constant 0 : index
    %9 = vector.load %arg3[%c1, %c0_8, %c0_9] : memref<3x12x4xbf16, #tpu.memory_space<vmem>>, vector<1x12x4xbf16>
    %10 = vector.shape_cast %9 : vector<1x12x4xbf16> to vector<12x4xbf16>
    %cst_10 = arith.constant dense<0.000000e+00> : vector<256x4xf32>
    %11 = tpu.matmul %8, %10, %cst_10 {dimension_numbers = #tpu.dot_dimension_numbers<[1], [0], [0], [1], [0, 0, 1, 1], [], []>} : vector<256x12xbf16>, vector<12x4xbf16>, vector<256x4xf32> -> vector<256x4xf32>
    %12 = arith.addf %6, %11 : vector<256x4xf32>
    %c0_11 = arith.constant 0 : index
    %c32 = arith.constant 32 : index
    %c0_12 = arith.constant 0 : index
    %13 = vector.load %arg1[%c0_11, %c32, %c0_12] : memref<1x288x12xbf16, #tpu.memory_space<vmem>>, vector<1x256x12xbf16>
    %14 = vector.shape_cast %13 : vector<1x256x12xbf16> to vector<256x12xbf16>
    %c2 = arith.constant 2 : index
    %c0_13 = arith.constant 0 : index
    %c0_14 = arith.constant 0 : index
    %15 = vector.load %arg3[%c2, %c0_13, %c0_14] : memref<3x12x4xbf16, #tpu.memory_space<vmem>>, vector<1x12x4xbf16>
    %16 = vector.shape_cast %15 : vector<1x12x4xbf16> to vector<12x4xbf16>
    %cst_15 = arith.constant dense<0.000000e+00> : vector<256x4xf32>
    %17 = tpu.matmul %14, %16, %cst_15 {dimension_numbers = #tpu.dot_dimension_numbers<[1], [0], [0], [1], [0, 0, 1, 1], [], []>} : vector<256x12xbf16>, vector<12x4xbf16>, vector<256x4xf32> -> vector<256x4xf32>
    %18 = arith.addf %12, %17 : vector<256x4xf32>
    %c0_16 = arith.constant 0 : index
    %c0_17 = arith.constant 0 : index
    %c0_18 = arith.constant 0 : index
    %19 = vector.load %arg2[%c0_16, %c0_17, %c0_18] : memref<1x288x12xbf16, #tpu.memory_space<vmem>>, vector<1x256x12xbf16>
    %20 = vector.shape_cast %19 : vector<1x256x12xbf16> to vector<256x12xbf16>
    %c0_19 = arith.constant 0 : index
    %c0_20 = arith.constant 0 : index
    %c0_21 = arith.constant 0 : index
    %21 = vector.load %arg4[%c0_19, %c0_20, %c0_21] : memref<3x12x4xbf16, #tpu.memory_space<vmem>>, vector<1x12x4xbf16>
    %22 = vector.shape_cast %21 : vector<1x12x4xbf16> to vector<12x4xbf16>
    %cst_22 = arith.constant dense<0.000000e+00> : vector<256x4xf32>
    %23 = tpu.matmul %20, %22, %cst_22 {dimension_numbers = #tpu.dot_dimension_numbers<[1], [0], [0], [1], [0, 0, 1, 1], [], []>} : vector<256x12xbf16>, vector<12x4xbf16>, vector<256x4xf32> -> vector<256x4xf32>
    %24 = arith.addf %18, %23 : vector<256x4xf32>
    %c0_23 = arith.constant 0 : index
    %c16_24 = arith.constant 16 : index
    %c0_25 = arith.constant 0 : index
    %25 = vector.load %arg2[%c0_23, %c16_24, %c0_25] : memref<1x288x12xbf16, #tpu.memory_space<vmem>>, vector<1x256x12xbf16>
    %26 = vector.shape_cast %25 : vector<1x256x12xbf16> to vector<256x12xbf16>
    %c1_26 = arith.constant 1 : index
    %c0_27 = arith.constant 0 : index
    %c0_28 = arith.constant 0 : index
    %27 = vector.load %arg4[%c1_26, %c0_27, %c0_28] : memref<3x12x4xbf16, #tpu.memory_space<vmem>>, vector<1x12x4xbf16>
    %28 = vector.shape_cast %27 : vector<1x12x4xbf16> to vector<12x4xbf16>
    %cst_29 = arith.constant dense<0.000000e+00> : vector<256x4xf32>
    %29 = tpu.matmul %26, %28, %cst_29 {dimension_numbers = #tpu.dot_dimension_numbers<[1], [0], [0], [1], [0, 0, 1, 1], [], []>} : vector<256x12xbf16>, vector<12x4xbf16>, vector<256x4xf32> -> vector<256x4xf32>
    %30 = arith.addf %24, %29 : vector<256x4xf32>
    %c0_30 = arith.constant 0 : index
    %c32_31 = arith.constant 32 : index
    %c0_32 = arith.constant 0 : index
    %31 = vector.load %arg2[%c0_30, %c32_31, %c0_32] : memref<1x288x12xbf16, #tpu.memory_space<vmem>>, vector<1x256x12xbf16>
    %32 = vector.shape_cast %31 : vector<1x256x12xbf16> to vector<256x12xbf16>
    %c2_33 = arith.constant 2 : index
    %c0_34 = arith.constant 0 : index
    %c0_35 = arith.constant 0 : index
    %33 = vector.load %arg4[%c2_33, %c0_34, %c0_35] : memref<3x12x4xbf16, #tpu.memory_space<vmem>>, vector<1x12x4xbf16>
    %34 = vector.shape_cast %33 : vector<1x12x4xbf16> to vector<12x4xbf16>
    %cst_36 = arith.constant dense<0.000000e+00> : vector<256x4xf32>
    %35 = tpu.matmul %32, %34, %cst_36 {dimension_numbers = #tpu.dot_dimension_numbers<[1], [0], [0], [1], [0, 0, 1, 1], [], []>} : vector<256x12xbf16>, vector<12x4xbf16>, vector<256x4xf32> -> vector<256x4xf32>
    %36 = arith.addf %30, %35 : vector<256x4xf32>
    %cst_37 = arith.constant 0.000000e+00 : f32
    %37 = vector.broadcast %cst_37 : f32 to vector<256x4xf32>
    %38 = arith.cmpf oge, %36, %37 : vector<256x4xf32>
    %cst_38 = arith.constant 2.000000e-01 : f32
    %39 = vector.broadcast %cst_38 : f32 to vector<256x4xf32>
    %40 = arith.mulf %39, %36 : vector<256x4xf32>
    %41 = arith.select %38, %36, %40 : vector<256x4xi1>, vector<256x4xf32>
    %c0_39 = arith.constant 0 : index
    %c0_40 = arith.constant 0 : index
    %42 = vector.load %arg5[%c0_39, %c0_40] : memref<1x4xf32, #tpu.memory_space<vmem>>, vector<1x4xf32>
    %43 = vector.broadcast %42 : vector<1x4xf32> to vector<256x4xf32>
    %44 = arith.mulf %41, %43 : vector<256x4xf32>
    %c0_41 = arith.constant 0 : index
    %c0_42 = arith.constant 0 : index
    %45 = vector.load %arg6[%c0_41, %c0_42] : memref<1x4xf32, #tpu.memory_space<vmem>>, vector<1x4xf32>
    %46 = vector.broadcast %45 : vector<1x4xf32> to vector<256x4xf32>
    %47 = arith.addf %44, %46 : vector<256x4xf32>
    %48 = arith.truncf %47 : vector<256x4xf32> to vector<256x4xbf16>
    %c0_43 = arith.constant 0 : index
    %c0_44 = arith.constant 0 : index
    %c0_45 = arith.constant 0 : index
    %49 = vector.load %arg7[%c0_43, %c0_44, %c0_45] : memref<1x256x4xbf16, #tpu.memory_space<vmem>>, vector<1x256x4xbf16>
    %50 = vector.shape_cast %49 : vector<1x256x4xbf16> to vector<256x4xbf16>
    %51 = vector.shape_cast %48 : vector<256x4xbf16> to vector<1x256x4xbf16>
    tpu.vector_store %arg7[%c0_43, %c0_44, %c0_45], %51 {strides = array<i32>} : memref<1x256x4xbf16, #tpu.memory_space<vmem>>, vector<1x256x4xbf16>,
    return
  }
  func.func @transform_0(%arg0: i32) -> (i32, i32, i32) {
    %c0_i32 = arith.constant 0 : i32
    %c0_i32_0 = arith.constant 0 : i32
    %c0_i32_1 = arith.constant 0 : i32
    return %arg0, %c0_i32, %c0_i32_0 : i32, i32, i32
  }
  func.func @transform_1(%arg0: i32) -> (i32, i32, i32) {
    %c0_i32 = arith.constant 0 : i32
    %c0_i32_0 = arith.constant 0 : i32
    %c0_i32_1 = arith.constant 0 : i32
    return %arg0, %c0_i32, %c0_i32_0 : i32, i32, i32
  }
  func.func @transform_2(%arg0: i32) -> (i32, i32, i32) {
    %c0_i32 = arith.constant 0 : i32
    %c0_i32_0 = arith.constant 0 : i32
    %c0_i32_1 = arith.constant 0 : i32
    %c0_i32_2 = arith.constant 0 : i32
    return %c0_i32, %c0_i32_0, %c0_i32_1 : i32, i32, i32
  }
  func.func @transform_3(%arg0: i32) -> (i32, i32, i32) {
    %c0_i32 = arith.constant 0 : i32
    %c0_i32_0 = arith.constant 0 : i32
    %c0_i32_1 = arith.constant 0 : i32
    %c0_i32_2 = arith.constant 0 : i32
    return %c0_i32, %c0_i32_0, %c0_i32_1 : i32, i32, i32
  }
  func.func @transform_4(%arg0: i32) -> (i32, i32) {
    %c0_i32 = arith.constant 0 : i32
    %c0_i32_0 = arith.constant 0 : i32
    %c0_i32_1 = arith.constant 0 : i32
    return %c0_i32, %c0_i32_0 : i32, i32
  }
  func.func @transform_5(%arg0: i32) -> (i32, i32) {
    %c0_i32 = arith.constant 0 : i32
    %c0_i32_0 = arith.constant 0 : i32
    %c0_i32_1 = arith.constant 0 : i32
    return %c0_i32, %c0_i32_0 : i32, i32
  }
  func.func @transform_6(%arg0: i32) -> (i32, i32, i32) {
    %c0_i32 = arith.constant 0 : i32
    %c0_i32_0 = arith.constant 0 : i32
    %c0_i32_1 = arith.constant 0 : i32
    return %arg0, %c0_i32, %c0_i32_0 : i32, i32, i32
  }
}

</mosaic_0001>

<llo_original>
// kernel: upsample_forward.3
$region0: #{upsample_forward.3}
  #allocation0 [shape = 'u32[]', space=smem, size = 0x4, offset = 0x4, fixed_abs, tag = 'smem constant byte address 0x4 - core index']
  #allocation1 [shape = 'u32[144,128]{1,0:T(1,128)}', space=vmem, size = 0x12000, scoped, tag = 'internal scratch']
  %s0 = inlined_call_operand.vmem [shape: bf16[2,64,8], index: 0, kind: input, shape index: {}]
  %s1 = inlined_call_operand.vmem [shape: bf16[256,64], index: 1, kind: input, shape index: {}]
  %s2 = inlined_call_operand.vmem [shape: bf16[8,4], index: 2, kind: input, shape index: {}]
  %s3 = inlined_call_operand.vmem [shape: f32[1,4], index: 3, kind: input, shape index: {}]
  %s4 = inlined_call_operand.vmem [shape: f32[1,4], index: 4, kind: input, shape index: {}]
  %s5 = inlined_call_operand.vmem [shape: f32[1,4], index: 5, kind: input, shape index: {}]
  %s6 = inlined_call_operand.vmem [shape: bf16[2,256,4], index: 6, kind: output, shape index: {}]
  %s7 = sld [smem:[#allocation0]]
  $region57: #{upsample_forward.3} parent=0
    _
  %s9 = ssub.s32 1, %s7
  %s10 = scalar_select 0, %s9, %s7
  loop: start=0, step=1, limit=4
  $region2: #{upsample_forward.3} parent=0 // loop_pre_header
    _
  $region3: #{upsample_forward.3} parent=0 // loop_header
    %s12 = sphi 0, %s16
    %p13 = scmp.ge.s32.totalorder %s12, 4
    %s22 = sphi 0, %s24
    %s25 = sphi 0, %s22
    %s26 = sphi 0, %s25
    %s42 = sphi 0, %s26
    %s46 = sphi 0, %s46
    %s48 = sphi 0, %s46
    %s49 = sphi 0, %s48
    %s63 = sphi 0, %s49
    %s67 = sphi 0, %s67
    %s69 = sphi 0, %s67
    %s70 = sphi 0, %s69
    %s84 = sphi 0, %s70
    %s88 = sphi 0, %s88
    %s90 = sphi 0, %s88
    %s91 = sphi 0, %s90
    %s105 = sphi 0, %s91
    %s109 = sphi 0, %s109
    %s111 = sphi 0, %s109
    %s112 = sphi 0, %s111
    %s126 = sphi 0, %s112
    %s130 = sphi 0, %s130
    %s132 = sphi 0, %s130
    %s133 = sphi 0, %s132
    %s147 = sphi 0, %s133
    %s153 = sphi 0, %s155
    %s156 = sphi 0, %s153
    %s157 = sphi 0, %s156
    %s173 = sphi 0, %s157
  $region4: #{upsample_forward.3} parent=0 // loop_header_branch
    %15 = sbr.rel (%p13) target = $region8
  $region5: #{upsample_forward.3} parent=0 // loop_body
    %s17 = ssub.s32 %s12, 1
    %s18 = ssub.s32 %s12, 2
    %s19 = sadd.s32 %s12, 1
    %s20 = ssub.s32 %s12, %s19
    %p21 = scmp.eq.s32.totalorder %s20, 0
    %s23 = sadd.s32 %s22, 1
    %s24 = scalar_select %p21, %s22, %s23
    %p27 = pneg %p21
    %p28 = scmp.eq.s32.totalorder %s12, 1
    %p29 = por %p27, %p28
    %p30 = scmp.ne.s32.totalorder %s22, %s25
    %p31 = scmp.eq.s32.totalorder %s12, 0
    %p32 = por %p30, %p31
    %p33 = scmp.ne.s32.totalorder %s22, %s25
    %p34 = scmp.eq.s32.totalorder %s17, 1
    %p35 = por %p33, %p34
    %p36 = scmp.ne.s32.totalorder %s25, %s26
    %p37 = scmp.eq.s32.totalorder %s17, 0
    %p38 = por %p36, %p37
    %p39 = scmp.ne.s32.totalorder %s25, %s26
    %p40 = scmp.eq.s32.totalorder %s18, 1
    %p41 = por %p39, %p40
    %p43 = scmp.ne.s32.totalorder %s26, %s42
    %p44 = scmp.eq.s32.totalorder %s18, 0
    %p45 = por %p43, %p44
    %s47 = sadd.s32 %s46, 1
    %p50 = scmp.eq.s32.totalorder %s12, 1
    %p51 = scmp.ne.s32.totalorder %s46, %s48
    %p52 = scmp.eq.s32.totalorder %s12, 0
    %p53 = por %p51, %p52
    %p54 = scmp.ne.s32.totalorder %s46, %s48
    %p55 = scmp.eq.s32.totalorder %s17, 1
    %p56 = por %p54, %p55
    %p57 = scmp.ne.s32.totalorder %s48, %s49
    %p58 = scmp.eq.s32.totalorder %s17, 0
    %p59 = por %p57, %p58
    %p60 = scmp.ne.s32.totalorder %s48, %s49
    %p61 = scmp.eq.s32.totalorder %s18, 1
    %p62 = por %p60, %p61
    %p64 = scmp.ne.s32.totalorder %s49, %s63
    %p65 = scmp.eq.s32.totalorder %s18, 0
    %p66 = por %p64, %p65
    %s68 = sadd.s32 %s67, 1
    %p71 = scmp.eq.s32.totalorder %s12, 1
    %p72 = scmp.ne.s32.totalorder %s67, %s69
    %p73 = scmp.eq.s32.totalorder %s12, 0
    %p74 = por %p72, %p73
    %p75 = scmp.ne.s32.totalorder %s67, %s69
    %p76 = scmp.eq.s32.totalorder %s17, 1
    %p77 = por %p75, %p76
    %p78 = scmp.ne.s32.totalorder %s69, %s70
    %p79 = scmp.eq.s32.totalorder %s17, 0
    %p80 = por %p78, %p79
    %p81 = scmp.ne.s32.totalorder %s69, %s70
    %p82 = scmp.eq.s32.totalorder %s18, 1
    %p83 = por %p81, %p82
    %p85 = scmp.ne.s32.totalorder %s70, %s84
    %p86 = scmp.eq.s32.totalorder %s18, 0
    %p87 = por %p85, %p86
    %s89 = sadd.s32 %s88, 1
    %p92 = scmp.eq.s32.totalorder %s12, 1
    %p93 = scmp.ne.s32.totalorder %s88, %s90
    %p94 = scmp.eq.s32.totalorder %s12, 0
    %p95 = por %p93, %p94
    %p96 = scmp.ne.s32.totalorder %s88, %s90
    %p97 = scmp.eq.s32.totalorder %s17, 1
    %p98 = por %p96, %p97
    %p99 = scmp.ne.s32.totalorder %s90, %s91
    %p100 = scmp.eq.s32.totalorder %s17, 0
    %p101 = por %p99, %p100
    %p102 = scmp.ne.s32.totalorder %s90, %s91
    %p103 = scmp.eq.s32.totalorder %s18, 1
    %p104 = por %p102, %p103
    %p106 = scmp.ne.s32.totalorder %s91, %s105
    %p107 = scmp.eq.s32.totalorder %s18, 0
    %p108 = por %p106, %p107
    %s110 = sadd.s32 %s109, 1
    %p113 = scmp.eq.s32.totalorder %s12, 1
    %p114 = scmp.ne.s32.totalorder %s109, %s111
    %p115 = scmp.eq.s32.totalorder %s12, 0
    %p116 = por %p114, %p115
    %p117 = scmp.ne.s32.totalorder %s109, %s111
    %p118 = scmp.eq.s32.totalorder %s17, 1
    %p119 = por %p117, %p118
    %p120 = scmp.ne.s32.totalorder %s111, %s112
    %p121 = scmp.eq.s32.totalorder %s17, 0
    %p122 = por %p120, %p121
    %p123 = scmp.ne.s32.totalorder %s111, %s112
    %p124 = scmp.eq.s32.totalorder %s18, 1
    %p125 = por %p123, %p124
    %p127 = scmp.ne.s32.totalorder %s112, %s126
    %p128 = scmp.eq.s32.totalorder %s18, 0
    %p129 = por %p127, %p128
    %s131 = sadd.s32 %s130, 1
    %p134 = scmp.eq.s32.totalorder %s12, 1
    %p135 = scmp.ne.s32.totalorder %s130, %s132
    %p136 = scmp.eq.s32.totalorder %s12, 0
    %p137 = por %p135, %p136
    %p138 = scmp.ne.s32.totalorder %s130, %s132
    %p139 = scmp.eq.s32.totalorder %s17, 1
    %p140 = por %p138, %p139
    %p141 = scmp.ne.s32.totalorder %s132, %s133
    %p142 = scmp.eq.s32.totalorder %s17, 0
    %p143 = por %p141, %p142
    %p144 = scmp.ne.s32.totalorder %s132, %s133
    %p145 = scmp.eq.s32.totalorder %s18, 1
    %p146 = por %p144, %p145
    %p148 = scmp.ne.s32.totalorder %s133, %s147
    %p149 = scmp.eq.s32.totalorder %s18, 0
    %p150 = por %p148, %p149
    %s151 = ssub.s32 %s12, %s19
    %p152 = scmp.eq.s32.totalorder %s151, 0
    %s154 = sadd.s32 %s153, 1
    %s155 = scalar_select %p152, %s153, %s154
    %p158 = pneg %p152
    %p159 = scmp.eq.s32.totalorder %s12, 1
    %p160 = por %p158, %p159
    %p161 = scmp.ne.s32.totalorder %s153, %s156
    %p162 = scmp.eq.s32.totalorder %s12, 0
    %p163 = por %p161, %p162
    %p164 = scmp.ne.s32.totalorder %s153, %s156
    %p165 = scmp.eq.s32.totalorder %s17, 1
    %p166 = por %p164, %p165
    %p167 = scmp.ne.s32.totalorder %s156, %s157
    %p168 = scmp.eq.s32.totalorder %s17, 0
    %p169 = por %p167, %p168
    %p170 = scmp.ne.s32.totalorder %s156, %s157
    %p171 = scmp.eq.s32.totalorder %s18, 1
    %p172 = por %p170, %p171
    %p174 = scmp.ne.s32.totalorder %s157, %s173
    %p175 = scmp.eq.s32.totalorder %s18, 0
    %p176 = por %p174, %p175
    %p177 = scmp.le.s32.totalorder 1, %s12
    %p178 = scmp.lt.s32.totalorder %s12, 3
    %p179 = pnand %p177, %p178
    %p180 = pneg %p179
    // Predicated region
    $region9: #{upsample_forward.3} parent=5 // pred_check
      _
    $region10: #{upsample_forward.3} parent=5 // pred_check_branch
      %182 = sbr.rel (%p179) target = $region12
    $region11: #{upsample_forward.3} parent=5 // pred_region
      %s183 = ssub.s32 %s12, 1
      // Predicated region
      $region13: #{upsample_forward.3} parent=11 // pred_check
        %p184 = pneg %p59
      $region14: #{upsample_forward.3} parent=11 // pred_check_branch
        %186 = sbr.rel (%p184) target = $region16
      $region15: #{upsample_forward.3} parent=11 // pred_region
        _
      $region16: #{upsample_forward.3} parent=11 // pred_fallthru
        _
      // Predicated region
      $region17: #{upsample_forward.3} parent=11 // pred_check
        %p187 = pneg %p80
      $region18: #{upsample_forward.3} parent=11 // pred_check_branch
        %189 = sbr.rel (%p187) target = $region20
      $region19: #{upsample_forward.3} parent=11 // pred_region
        _
      $region20: #{upsample_forward.3} parent=11 // pred_fallthru
        _
      // Predicated region
      $region21: #{upsample_forward.3} parent=11 // pred_check
        %p190 = pneg %p101
      $region22: #{upsample_forward.3} parent=11 // pred_check_branch
        %192 = sbr.rel (%p190) target = $region24
      $region23: #{upsample_forward.3} parent=11 // pred_region
        _
      $region24: #{upsample_forward.3} parent=11 // pred_fallthru
        _
      // Predicated region
      $region25: #{upsample_forward.3} parent=11 // pred_check
        %p193 = pneg %p122
      $region26: #{upsample_forward.3} parent=11 // pred_check_branch
        %195 = sbr.rel (%p193) target = $region28
      $region27: #{upsample_forward.3} parent=11 // pred_region
        _
      $region28: #{upsample_forward.3} parent=11 // pred_fallthru
        _
      // Predicated region
      $region29: #{upsample_forward.3} parent=11 // pred_check
        %p196 = pneg %p143
      $region30: #{upsample_forward.3} parent=11 // pred_check_branch
        %198 = sbr.rel (%p196) target = $region32
      $region31: #{upsample_forward.3} parent=11 // pred_region
        _
      $region32: #{upsample_forward.3} parent=11 // pred_fallthru
        _
    $region12: #{upsample_forward.3} parent=5 // pred_fallthru
      _
    %p199 = scmp.lt.s32.totalorder %s12, 2
    // Predicated region
    $region33: #{upsample_forward.3} parent=5 // pred_check
      %p200 = pneg %p199
    $region34: #{upsample_forward.3} parent=5 // pred_check_branch
      %202 = sbr.rel (%p200) target = $region36
    $region35: #{upsample_forward.3} parent=5 // pred_region
      // Predicated region
      $region37: #{upsample_forward.3} parent=35 // pred_check
        %p203 = pneg %p32
      $region38: #{upsample_forward.3} parent=35 // pred_check_branch
        %205 = sbr.rel (%p203) target = $region40
      $region39: #{upsample_forward.3} parent=35 // pred_region
        %p206 = scmp.lt.s32.totalorder %s12, 1
        %s207 = scalar_select %p206, %s12, 1
        %s208 = smul.addr %s207, 8
        %s209 = smul.addr %s208, 4
        %s210 = scalar_lea.vmem %s0, %s209
      $region40: #{upsample_forward.3} parent=35 // pred_fallthru
        _
    $region36: #{upsample_forward.3} parent=5 // pred_fallthru
      _
    %p211 = scmp.le.s32.totalorder 1, %s12
    %p212 = scmp.lt.s32.totalorder %s12, 3
    %p213 = pnand %p211, %p212
    %p214 = pneg %p213
    // Predicated region
    $region41: #{upsample_forward.3} parent=5 // pred_check
      _
    $region42: #{upsample_forward.3} parent=5 // pred_check_branch
      %216 = sbr.rel (%p213) target = $region44
    $region43: #{upsample_forward.3} parent=5 // pred_region
      %s217 = ssub.s32 %s12, 1
      %p218 = scmp.lt.s32.totalorder %s17, 1
      %s219 = scalar_select %p218, %s17, 1
      %s220 = smul.addr %s219, 8
      %s221 = smul.addr %s220, 4
      %s222 = scalar_lea.vmem %s0, %s221
      %p223 = pneg %p38
      %p224 = pneg %p35
      %p225 = pneg %p59
      %p226 = pneg %p56
      %p227 = pneg %p80
      %p228 = pneg %p77
      %p229 = pneg %p101
      %p230 = pneg %p98
      %p231 = pneg %p122
      %p232 = pneg %p119
      %p233 = pneg %p143
      %p234 = pneg %p140
      %p235 = pneg %p169
      %p236 = pneg %p166
      %p237 = scmp.lt.s32.totalorder %s17, 1
      %s238 = scalar_select %p237, %s17, 1
      %s239 = smul.addr %s238, 32
      %s240 = smul.addr %s239, 4
      %s241 = scalar_lea.vmem %s6, %s240
      %p242 = scmp.lt.s32.totalorder %s17, 1
      %s243 = scalar_select %p242, %s17, 1
      %s244 = smul.addr %s243, 8
      %s245 = smul.addr %s244, 4
      %s246 = scalar_lea.vmem %s0, %s245
      %p247 = scmp.lt.s32.totalorder %s17, 1
      %s248 = scalar_select %p247, %s17, 1
      %s249 = smul.addr %s248, 32
      %s250 = smul.addr %s249, 4
      %s251 = scalar_lea.vmem %s6, %s250
      %v253 = vld [vmem:[%s246] sm:$0xf]
      %v254 = vld [vmem:[%s246 + $0x4] sm:$0xf]
      %v255 = vld [vmem:[%s246 + $0x8] sm:$0xf]
      %v256 = vld [vmem:[%s246 + $0xc] sm:$0xf]
      %v257 = vld [vmem:[%s246 + $0x10] sm:$0xf]
      %v258 = vld [vmem:[%s246 + $0x14] sm:$0xf]
      %v259 = vld [vmem:[%s246 + $0x18] sm:$0xf]
      %v260 = vld [vmem:[%s246 + $0x1c] sm:$0xf]
      %v261 = vld [vmem:[%s2] sm:$0xf]
      %v262 = vld [vmem:[%s3] sm:$0x1]
      %v264 = vlaneseq
      %v265 = vshrl.u32 %v264, 7
      %v266 = vsub.s32 0, %v265
      %v267 = vrot.slane %v262, %v266
      %v277 = vunpack.c.l.b16 %v253
      %v278 = vunpack.c.l.b16 %v254
      %v279 = vunpack.c.l.b16 %v255
      %v280 = vunpack.c.l.b16 %v256
      %v281 = vunpack.c.l.b16 %v257
      %v282 = vunpack.c.l.b16 %v258
      %v283 = vunpack.c.l.b16 %v259
      %v284 = vunpack.c.l.b16 %v260
      %v285 = vpack.c.b16 %v278, %v277
      %v286 = vpack.c.b16 %v280, %v279
      %v287 = vpack.c.b16 %v282, %v281
      %v288 = vpack.c.b16 %v284, %v283
      %vm289 = vcmask 64512
      %v291 = vsel %vm289, %v285, 0
      %v294 = vsel %vm289, %v286, 0
      %v297 = vsel %vm289, %v287, 0
      %v300 = vsel %vm289, %v288, 0
      %vm302 = vcmask 1043456
      %v304 = vsel %vm302, %v261, 0
      %306 = vmatprep.subr.bf16.mxu0 0
      %307 = vmatpush1.bf16.msra.mxu0 %v304
      %308 = vmatprep.subr.bf16.mxu0 0
      %309 = vmatpush1.bf16.msra.mxu0 0
      %310 = vmatprep.subr.bf16.mxu0 0
      %311 = vmatpush1.bf16.msra.mxu0 0
      %312 = vmatprep.subr.bf16.mxu0 0
      %313 = vmatpush1.bf16.msra.mxu0 0
      %314 = vmatprep.subr.bf16.mxu0 0
      %315 = vmatpush1.bf16.msra.mxu0 0
      %316 = vmatprep.subr.bf16.mxu0 0
      %317 = vmatpush1.bf16.msra.mxu0 0
      %318 = vmatprep.subr.bf16.mxu0 0
      %319 = vmatpush1.bf16.msra.mxu0 0
      %320 = vmatprep.subr.bf16.mxu0 0
      %321 = vmatpush1.bf16.msra.mxu0 0
      %322 = vmatprep.subr.bf16.mxu0 0
      %323 = vmatpush1.bf16.msra.mxu0 0
      %324 = vmatprep.subr.bf16.mxu0 0
      %325 = vmatpush1.bf16.msra.mxu0 0
      %326 = vmatprep.subr.bf16.mxu0 0
      %327 = vmatpush1.bf16.msra.mxu0 0
      %328 = vmatprep.subr.bf16.mxu0 0
      %329 = vmatpush1.bf16.msra.mxu0 0
      %330 = vmatprep.subr.bf16.mxu0 0
      %331 = vmatpush1.bf16.msra.mxu0 0
      %332 = vmatprep.subr.bf16.mxu0 0
      %333 = vmatpush1.bf16.msra.mxu0 0
      %334 = vmatprep.subr.bf16.mxu0 0
      %335 = vmatpush1.bf16.msra.mxu0 0
      %336 = vmatprep.subr.bf16.mxu0 0
      %337 = vmatpush1.bf16.msra.mxu0 0
      %338 = vmatprep.mubr.bf16.mxu0 0
      %339 = vmatmul.mubr.bf16.gmra.mrb[0].mxu0 %v291
      %v340 = vpop.f32.mrb[0].mxu0
      %v341 = vadd.f32 %v267, %v340
      %v342 = vpop.f32.mrb[0].mxu0
      %v343 = vpop.f32.mrb[0].mxu0
      %v344 = vadd.f32 %v267, %v343
      %v345 = vpop.f32.mrb[0].mxu0
      %346 = vmatprep.mubr.bf16.mxu0 0
      %347 = vmatmul.mubr.bf16.gmra.mrb[0].mxu0 %v294
      %v348 = vpop.f32.mrb[0].mxu0
      %v349 = vadd.f32 %v267, %v348
      %v350 = vpop.f32.mrb[0].mxu0
      %v351 = vpop.f32.mrb[0].mxu0
      %v352 = vadd.f32 %v267, %v351
      %v353 = vpop.f32.mrb[0].mxu0
      %354 = vmatprep.mubr.bf16.mxu0 0
      %355 = vmatmul.mubr.bf16.gmra.mrb[0].mxu0 %v297
      %v356 = vpop.f32.mrb[0].mxu0
      %v357 = vadd.f32 %v267, %v356
      %v358 = vpop.f32.mrb[0].mxu0
      %v359 = vpop.f32.mrb[0].mxu0
      %v360 = vadd.f32 %v267, %v359
      %v361 = vpop.f32.mrb[0].mxu0
      %362 = vmatprep.mubr.bf16.mxu0 0
      %363 = vmatmul.mubr.bf16.gmra.mrb[0].mxu0 %v300
      %v364 = vpop.f32.mrb[0].mxu0
      %v365 = vadd.f32 %v267, %v364
      %v366 = vpop.f32.mrb[0].mxu0
      %v367 = vpop.f32.mrb[0].mxu0
      %v368 = vadd.f32 %v267, %v367
      %v369 = vpop.f32.mrb[0].mxu0
      %370 = vdwg.mxu0
      %v371 = vld [vmem:[%s1] sm:$0xf]
      %v372 = vld [vmem:[%s1 + $0x4] sm:$0xf]
      %v373 = vld [vmem:[%s1 + $0x8] sm:$0xf]
      %v374 = vld [vmem:[%s1 + $0xc] sm:$0xf]
      %v375 = vld [vmem:[%s1 + $0x10] sm:$0xf]
      %v376 = vld [vmem:[%s1 + $0x14] sm:$0xf]
      %v377 = vld [vmem:[%s1 + $0x18] sm:$0xf]
      %v378 = vld [vmem:[%s1 + $0x1c] sm:$0xf]
      %v379 = vld [vmem:[%s1 + $0x20] sm:$0xf]
      %v380 = vld [vmem:[%s1 + $0x24] sm:$0xf]
      %v381 = vld [vmem:[%s1 + $0x28] sm:$0xf]
      %v382 = vld [vmem:[%s1 + $0x2c] sm:$0xf]
      %v383 = vld [vmem:[%s1 + $0x30] sm:$0xf]
      %v384 = vld [vmem:[%s1 + $0x34] sm:$0xf]
      %v385 = vld [vmem:[%s1 + $0x38] sm:$0xf]
      %v386 = vld [vmem:[%s1 + $0x3c] sm:$0xf]
      %v387 = vld [vmem:[%s1 + $0x40] sm:$0xf]
      %v388 = vld [vmem:[%s1 + $0x44] sm:$0xf]
      %v389 = vld [vmem:[%s1 + $0x48] sm:$0xf]
      %v390 = vld [vmem:[%s1 + $0x4c] sm:$0xf]
      %v391 = vld [vmem:[%s1 + $0x50] sm:$0xf]
      %v392 = vld [vmem:[%s1 + $0x54] sm:$0xf]
      %v393 = vld [vmem:[%s1 + $0x58] sm:$0xf]
      %v394 = vld [vmem:[%s1 + $0x5c] sm:$0xf]
      %v395 = vld [vmem:[%s1 + $0x60] sm:$0xf]
      %v396 = vld [vmem:[%s1 + $0x64] sm:$0xf]
      %v397 = vld [vmem:[%s1 + $0x68] sm:$0xf]
      %v398 = vld [vmem:[%s1 + $0x6c] sm:$0xf]
      %v399 = vld [vmem:[%s1 + $0x70] sm:$0xf]
      %v400 = vld [vmem:[%s1 + $0x74] sm:$0xf]
      %v401 = vld [vmem:[%s1 + $0x78] sm:$0xf]
      %v402 = vld [vmem:[%s1 + $0x7c] sm:$0xf]
      %v403 = vpack.c.bf16 %v344, %v341
      %v404 = vpack.c.bf16 %v352, %v349
      %v405 = vpack.c.bf16 %v360, %v357
      %v406 = vpack.c.bf16 %v368, %v365
      %v439 = vunpack.c.l.b16 %v371
      %v440 = vunpack.c.l.b16 %v372
      %v441 = vunpack.c.l.b16 %v373
      %v442 = vunpack.c.l.b16 %v374
      %v443 = vunpack.c.l.b16 %v375
      %v444 = vunpack.c.l.b16 %v376
      %v445 = vunpack.c.l.b16 %v377
      %v446 = vunpack.c.l.b16 %v378
      %v447 = vunpack.c.l.b16 %v379
      %v448 = vunpack.c.l.b16 %v380
      %v449 = vunpack.c.l.b16 %v381
      %v450 = vunpack.c.l.b16 %v382
      %v451 = vunpack.c.l.b16 %v383
      %v452 = vunpack.c.l.b16 %v384
      %v453 = vunpack.c.l.b16 %v385
      %v454 = vunpack.c.l.b16 %v386
      %v455 = vunpack.c.l.b16 %v387
      %v456 = vunpack.c.l.b16 %v388
      %v457 = vunpack.c.l.b16 %v389
      %v458 = vunpack.c.l.b16 %v390
      %v459 = vunpack.c.l.b16 %v391
      %v460 = vunpack.c.l.b16 %v392
      %v461 = vunpack.c.l.b16 %v393
      %v462 = vunpack.c.l.b16 %v394
      %v463 = vunpack.c.l.b16 %v395
      %v464 = vunpack.c.l.b16 %v396
      %v465 = vunpack.c.l.b16 %v397
      %v466 = vunpack.c.l.b16 %v398
      %v467 = vunpack.c.l.b16 %v399
      %v468 = vunpack.c.l.b16 %v400
      %v469 = vunpack.c.l.b16 %v401
      %v470 = vunpack.c.l.b16 %v402
      %v471 = vpack.c.b16 %v440, %v439
      %v472 = vpack.c.b16 %v442, %v441
      %v473 = vpack.c.b16 %v444, %v443
      %v474 = vpack.c.b16 %v446, %v445
      %v475 = vpack.c.b16 %v448, %v447
      %v476 = vpack.c.b16 %v450, %v449
      %v477 = vpack.c.b16 %v452, %v451
      %v478 = vpack.c.b16 %v454, %v453
      %v479 = vpack.c.b16 %v456, %v455
      %v480 = vpack.c.b16 %v458, %v457
      %v481 = vpack.c.b16 %v460, %v459
      %v482 = vpack.c.b16 %v462, %v461
      %v483 = vpack.c.b16 %v464, %v463
      %v484 = vpack.c.b16 %v466, %v465
      %v485 = vpack.c.b16 %v468, %v467
      %v486 = vpack.c.b16 %v470, %v469
      %vm487 = vcmask 523264
      %v489 = vsel %vm487, %v471, 0
      %v492 = vsel %vm487, %v472, 0
      %v495 = vsel %vm487, %v473, 0
      %v498 = vsel %vm487, %v474, 0
      %v501 = vsel %vm487, %v475, 0
      %v504 = vsel %vm487, %v476, 0
      %v507 = vsel %vm487, %v477, 0
      %v510 = vsel %vm487, %v478, 0
      %v513 = vsel %vm487, %v479, 0
      %v516 = vsel %vm487, %v480, 0
      %v519 = vsel %vm487, %v481, 0
      %v522 = vsel %vm487, %v482, 0
      %v525 = vsel %vm487, %v483, 0
      %v528 = vsel %vm487, %v484, 0
      %v531 = vsel %vm487, %v485, 0
      %v534 = vsel %vm487, %v486, 0
      %536 = vmatprep.subr.bf16.mxu0 0
      %537 = vmatpush1.bf16.msra.mxu0 %v403
      %538 = vmatprep.subr.bf16.mxu0 0
      %539 = vmatpush1.bf16.msra.mxu0 %v404
      %540 = vmatprep.subr.bf16.mxu0 0
      %541 = vmatpush1.bf16.msra.mxu0 %v405
      %542 = vmatprep.subr.bf16.mxu0 0
      %543 = vmatpush1.bf16.msra.mxu0 %v406
      %544 = vmatprep.subr.bf16.mxu0 0
      %545 = vmatpush1.bf16.msra.mxu0 0
      %546 = vmatprep.subr.bf16.mxu0 0
      %547 = vmatpush1.bf16.msra.mxu0 0
      %548 = vmatprep.subr.bf16.mxu0 0
      %549 = vmatpush1.bf16.msra.mxu0 0
      %550 = vmatprep.subr.bf16.mxu0 0
      %551 = vmatpush1.bf16.msra.mxu0 0
      %552 = vmatprep.subr.bf16.mxu0 0
      %553 = vmatpush1.bf16.msra.mxu0 0
      %554 = vmatprep.subr.bf16.mxu0 0
      %555 = vmatpush1.bf16.msra.mxu0 0
      %556 = vmatprep.subr.bf16.mxu0 0
      %557 = vmatpush1.bf16.msra.mxu0 0
      %558 = vmatprep.subr.bf16.mxu0 0
      %559 = vmatpush1.bf16.msra.mxu0 0
      %560 = vmatprep.subr.bf16.mxu0 0
      %561 = vmatpush1.bf16.msra.mxu0 0
      %562 = vmatprep.subr.bf16.mxu0 0
      %563 = vmatpush1.bf16.msra.mxu0 0
      %564 = vmatprep.subr.bf16.mxu0 0
      %565 = vmatpush1.bf16.msra.mxu0 0
      %566 = vmatprep.subr.bf16.mxu0 0
      %567 = vmatpush1.bf16.msra.mxu0 0
      %568 = vmatprep.mubr.bf16.mxu0 0
      %569 = vmatmul.mubr.bf16.gmra.mrb[0].mxu0 %v489
      %v570 = vpop.f32.mrb[0].mxu0
      %v571 = vadd.f32 0.0, %v570
      %v572 = vpop.f32.mrb[0].mxu0
      %v573 = vpop.f32.mrb[0].mxu0
      %v574 = vadd.f32 0.0, %v573
      %v575 = vpop.f32.mrb[0].mxu0
      %576 = vmatprep.mubr.bf16.mxu0 0
      %577 = vmatmul.mubr.bf16.gmra.mrb[0].mxu0 %v492
      %v578 = vpop.f32.mrb[0].mxu0
      %v579 = vadd.f32 0.0, %v578
      %v580 = vpop.f32.mrb[0].mxu0
      %v581 = vpop.f32.mrb[0].mxu0
      %v582 = vadd.f32 0.0, %v581
      %v583 = vpop.f32.mrb[0].mxu0
      %584 = vmatprep.mubr.bf16.mxu0 0
      %585 = vmatmul.mubr.bf16.gmra.mrb[0].mxu0 %v495
      %v586 = vpop.f32.mrb[0].mxu0
      %v587 = vadd.f32 0.0, %v586
      %v588 = vpop.f32.mrb[0].mxu0
      %v589 = vpop.f32.mrb[0].mxu0
      %v590 = vadd.f32 0.0, %v589
      %v591 = vpop.f32.mrb[0].mxu0
      %592 = vmatprep.mubr.bf16.mxu0 0
      %593 = vmatmul.mubr.bf16.gmra.mrb[0].mxu0 %v498
      %v594 = vpop.f32.mrb[0].mxu0
      %v595 = vadd.f32 0.0, %v594
      %v596 = vpop.f32.mrb[0].mxu0
      %v597 = vpop.f32.mrb[0].mxu0
      %v598 = vadd.f32 0.0, %v597
      %v599 = vpop.f32.mrb[0].mxu0
      %600 = vmatprep.mubr.bf16.mxu0 0
      %601 = vmatmul.mubr.bf16.gmra.mrb[0].mxu0 %v501
      %v602 = vpop.f32.mrb[0].mxu0
      %v603 = vadd.f32 0.0, %v602
      %v604 = vpop.f32.mrb[0].mxu0
      %v605 = vpop.f32.mrb[0].mxu0
      %v606 = vadd.f32 0.0, %v605
      %v607 = vpop.f32.mrb[0].mxu0
      %608 = vmatprep.mubr.bf16.mxu0 0
      %609 = vmatmul.mubr.bf16.gmra.mrb[0].mxu0 %v504
      %v610 = vpop.f32.mrb[0].mxu0
      %v611 = vadd.f32 0.0, %v610
      %v612 = vpop.f32.mrb[0].mxu0
      %v613 = vpop.f32.mrb[0].mxu0
      %v614 = vadd.f32 0.0, %v613
      %v615 = vpop.f32.mrb[0].mxu0
      %616 = vmatprep.mubr.bf16.mxu0 0
      %617 = vmatmul.mubr.bf16.gmra.mrb[0].mxu0 %v507
      %v618 = vpop.f32.mrb[0].mxu0
      %v619 = vadd.f32 0.0, %v618
      %v620 = vpop.f32.mrb[0].mxu0
      %v621 = vpop.f32.mrb[0].mxu0
      %v622 = vadd.f32 0.0, %v621
      %v623 = vpop.f32.mrb[0].mxu0
      %624 = vmatprep.mubr.bf16.mxu0 0
      %625 = vmatmul.mubr.bf16.gmra.mrb[0].mxu0 %v510
      %v626 = vpop.f32.mrb[0].mxu0
      %v627 = vadd.f32 0.0, %v626
      %v628 = vpop.f32.mrb[0].mxu0
      %v629 = vpop.f32.mrb[0].mxu0
      %v630 = vadd.f32 0.0, %v629
      %v631 = vpop.f32.mrb[0].mxu0
      %632 = vmatprep.mubr.bf16.mxu0 0
      %633 = vmatmul.mubr.bf16.gmra.mrb[0].mxu0 %v513
      %v634 = vpop.f32.mrb[0].mxu0
      %v635 = vadd.f32 0.0, %v634
      %v636 = vpop.f32.mrb[0].mxu0
      %v637 = vpop.f32.mrb[0].mxu0
      %v638 = vadd.f32 0.0, %v637
      %v639 = vpop.f32.mrb[0].mxu0
      %640 = vmatprep.mubr.bf16.mxu0 0
      %641 = vmatmul.mubr.bf16.gmra.mrb[0].mxu0 %v516
      %v642 = vpop.f32.mrb[0].mxu0
      %v643 = vadd.f32 0.0, %v642
      %v644 = vpop.f32.mrb[0].mxu0
      %v645 = vpop.f32.mrb[0].mxu0
      %v646 = vadd.f32 0.0, %v645
      %v647 = vpop.f32.mrb[0].mxu0
      %648 = vmatprep.mubr.bf16.mxu0 0
      %649 = vmatmul.mubr.bf16.gmra.mrb[0].mxu0 %v519
      %v650 = vpop.f32.mrb[0].mxu0
      %v651 = vadd.f32 0.0, %v650
      %v652 = vpop.f32.mrb[0].mxu0
      %v653 = vpop.f32.mrb[0].mxu0
      %v654 = vadd.f32 0.0, %v653
      %v655 = vpop.f32.mrb[0].mxu0
      %656 = vmatprep.mubr.bf16.mxu0 0
      %657 = vmatmul.mubr.bf16.gmra.mrb[0].mxu0 %v522
      %v658 = vpop.f32.mrb[0].mxu0
      %v659 = vadd.f32 0.0, %v658
      %v660 = vpop.f32.mrb[0].mxu0
      %v661 = vpop.f32.mrb[0].mxu0
      %v662 = vadd.f32 0.0, %v661
      %v663 = vpop.f32.mrb[0].mxu0
      %664 = vmatprep.mubr.bf16.mxu0 0
      %665 = vmatmul.mubr.bf16.gmra.mrb[0].mxu0 %v525
      %v666 = vpop.f32.mrb[0].mxu0
      %v667 = vadd.f32 0.0, %v666
      %v668 = vpop.f32.mrb[0].mxu0
      %v669 = vpop.f32.mrb[0].mxu0
      %v670 = vadd.f32 0.0, %v669
      %v671 = vpop.f32.mrb[0].mxu0
      %672 = vmatprep.mubr.bf16.mxu0 0
      %673 = vmatmul.mubr.bf16.gmra.mrb[0].mxu0 %v528
      %v674 = vpop.f32.mrb[0].mxu0
      %v675 = vadd.f32 0.0, %v674
      %v676 = vpop.f32.mrb[0].mxu0
      %v677 = vpop.f32.mrb[0].mxu0
      %v678 = vadd.f32 0.0, %v677
      %v679 = vpop.f32.mrb[0].mxu0
      %680 = vmatprep.mubr.bf16.mxu0 0
      %681 = vmatmul.mubr.bf16.gmra.mrb[0].mxu0 %v531
      %v682 = vpop.f32.mrb[0].mxu0
      %v683 = vadd.f32 0.0, %v682
      %v684 = vpop.f32.mrb[0].mxu0
      %v685 = vpop.f32.mrb[0].mxu0
      %v686 = vadd.f32 0.0, %v685
      %v687 = vpop.f32.mrb[0].mxu0
      %688 = vmatprep.mubr.bf16.mxu0 0
      %689 = vmatmul.mubr.bf16.gmra.mrb[0].mxu0 %v534
      %v690 = vpop.f32.mrb[0].mxu0
      %v691 = vadd.f32 0.0, %v690
      %v692 = vpop.f32.mrb[0].mxu0
      %v693 = vpop.f32.mrb[0].mxu0
      %v694 = vadd.f32 0.0, %v693
      %v695 = vpop.f32.mrb[0].mxu0
      %696 = vdwg.mxu0
      %vm697 = vcmp.ge.f32.partialorder %v571, 0.0
      %vm698 = vcmp.ge.f32.partialorder %v574, 0.0
      %vm699 = vcmp.ge.f32.partialorder %v579, 0.0
      %vm700 = vcmp.ge.f32.partialorder %v582, 0.0
      %vm701 = vcmp.ge.f32.partialorder %v587, 0.0
      %vm702 = vcmp.ge.f32.partialorder %v590, 0.0
      %vm703 = vcmp.ge.f32.partialorder %v595, 0.0
      %vm704 = vcmp.ge.f32.partialorder %v598, 0.0
      %vm705 = vcmp.ge.f32.partialorder %v603, 0.0
      %vm706 = vcmp.ge.f32.partialorder %v606, 0.0
      %vm707 = vcmp.ge.f32.partialorder %v611, 0.0
      %vm708 = vcmp.ge.f32.partialorder %v614, 0.0
      %vm709 = vcmp.ge.f32.partialorder %v619, 0.0
      %vm710 = vcmp.ge.f32.partialorder %v622, 0.0
      %vm711 = vcmp.ge.f32.partialorder %v627, 0.0
      %vm712 = vcmp.ge.f32.partialorder %v630, 0.0
      %vm713 = vcmp.ge.f32.partialorder %v635, 0.0
      %vm714 = vcmp.ge.f32.partialorder %v638, 0.0
      %vm715 = vcmp.ge.f32.partialorder %v643, 0.0
      %vm716 = vcmp.ge.f32.partialorder %v646, 0.0
      %vm717 = vcmp.ge.f32.partialorder %v651, 0.0
      %vm718 = vcmp.ge.f32.partialorder %v654, 0.0
      %vm719 = vcmp.ge.f32.partialorder %v659, 0.0
      %vm720 = vcmp.ge.f32.partialorder %v662, 0.0
      %vm721 = vcmp.ge.f32.partialorder %v667, 0.0
      %vm722 = vcmp.ge.f32.partialorder %v670, 0.0
      %vm723 = vcmp.ge.f32.partialorder %v675, 0.0
      %vm724 = vcmp.ge.f32.partialorder %v678, 0.0
      %vm725 = vcmp.ge.f32.partialorder %v683, 0.0
      %vm726 = vcmp.ge.f32.partialorder %v686, 0.0
      %vm727 = vcmp.ge.f32.partialorder %v691, 0.0
      %vm728 = vcmp.ge.f32.partialorder %v694, 0.0
      %v729 = vmul.f32 %v571, 0.2
      %v730 = vmul.f32 %v574, 0.2
      %v731 = vmul.f32 %v579, 0.2
      %v732 = vmul.f32 %v582, 0.2
      %v733 = vmul.f32 %v587, 0.2
      %v734 = vmul.f32 %v590, 0.2
      %v735 = vmul.f32 %v595, 0.2
      %v736 = vmul.f32 %v598, 0.2
      %v737 = vmul.f32 %v603, 0.2
      %v738 = vmul.f32 %v606, 0.2
      %v739 = vmul.f32 %v611, 0.2
      %v740 = vmul.f32 %v614, 0.2
      %v741 = vmul.f32 %v619, 0.2
      %v742 = vmul.f32 %v622, 0.2
      %v743 = vmul.f32 %v627, 0.2
      %v744 = vmul.f32 %v630, 0.2
      %v745 = vmul.f32 %v635, 0.2
      %v746 = vmul.f32 %v638, 0.2
      %v747 = vmul.f32 %v643, 0.2
      %v748 = vmul.f32 %v646, 0.2
      %v749 = vmul.f32 %v651, 0.2
      %v750 = vmul.f32 %v654, 0.2
      %v751 = vmul.f32 %v659, 0.2
      %v752 = vmul.f32 %v662, 0.2
      %v753 = vmul.f32 %v667, 0.2
      %v754 = vmul.f32 %v670, 0.2
      %v755 = vmul.f32 %v675, 0.2
      %v756 = vmul.f32 %v678, 0.2
      %v757 = vmul.f32 %v683, 0.2
      %v758 = vmul.f32 %v686, 0.2
      %v759 = vmul.f32 %v691, 0.2
      %v760 = vmul.f32 %v694, 0.2
      %v761 = vsel %vm697, %v571, %v729
      %v762 = vsel %vm698, %v574, %v730
      %v763 = vsel %vm699, %v579, %v731
      %v764 = vsel %vm700, %v582, %v732
      %v765 = vsel %vm701, %v587, %v733
      %v766 = vsel %vm702, %v590, %v734
      %v767 = vsel %vm703, %v595, %v735
      %v768 = vsel %vm704, %v598, %v736
      %v769 = vsel %vm705, %v603, %v737
      %v770 = vsel %vm706, %v606, %v738
      %v771 = vsel %vm707, %v611, %v739
      %v772 = vsel %vm708, %v614, %v740
      %v773 = vsel %vm709, %v619, %v741
      %v774 = vsel %vm710, %v622, %v742
      %v775 = vsel %vm711, %v627, %v743
      %v776 = vsel %vm712, %v630, %v744
      %v777 = vsel %vm713, %v635, %v745
      %v778 = vsel %vm714, %v638, %v746
      %v779 = vsel %vm715, %v643, %v747
      %v780 = vsel %vm716, %v646, %v748
      %v781 = vsel %vm717, %v651, %v749
      %v782 = vsel %vm718, %v654, %v750
      %v783 = vsel %vm719, %v659, %v751
      %v784 = vsel %vm720, %v662, %v752
      %v785 = vsel %vm721, %v667, %v753
      %v786 = vsel %vm722, %v670, %v754
      %v787 = vsel %vm723, %v675, %v755
      %v788 = vsel %vm724, %v678, %v756
      %v789 = vsel %vm725, %v683, %v757
      %v790 = vsel %vm726, %v686, %v758
      %v791 = vsel %vm727, %v691, %v759
      %v792 = vsel %vm728, %v694, %v760
      %v793 = vld [vmem:[%s4] sm:$0x1]
      %v795 = vlaneseq
      %v796 = vshrl.u32 %v795, 7
      %v797 = vsub.s32 0, %v796
      %v798 = vrot.slane %v793, %v797
      %v800 = vmul.f32 %v761, %v798
      %v801 = vmul.f32 %v762, %v798
      %v802 = vmul.f32 %v763, %v798
      %v803 = vmul.f32 %v764, %v798
      %v804 = vmul.f32 %v765, %v798
      %v805 = vmul.f32 %v766, %v798
      %v806 = vmul.f32 %v767, %v798
      %v807 = vmul.f32 %v768, %v798
      %v808 = vmul.f32 %v769, %v798
      %v809 = vmul.f32 %v770, %v798
      %v810 = vmul.f32 %v771, %v798
      %v811 = vmul.f32 %v772, %v798
      %v812 = vmul.f32 %v773, %v798
      %v813 = vmul.f32 %v774, %v798
      %v814 = vmul.f32 %v775, %v798
      %v815 = vmul.f32 %v776, %v798
      %v816 = vmul.f32 %v777, %v798
      %v817 = vmul.f32 %v778, %v798
      %v818 = vmul.f32 %v779, %v798
      %v819 = vmul.f32 %v780, %v798
      %v820 = vmul.f32 %v781, %v798
      %v821 = vmul.f32 %v782, %v798
      %v822 = vmul.f32 %v783, %v798
      %v823 = vmul.f32 %v784, %v798
      %v824 = vmul.f32 %v785, %v798
      %v825 = vmul.f32 %v786, %v798
      %v826 = vmul.f32 %v787, %v798
      %v827 = vmul.f32 %v788, %v798
      %v828 = vmul.f32 %v789, %v798
      %v829 = vmul.f32 %v790, %v798
      %v830 = vmul.f32 %v791, %v798
      %v831 = vmul.f32 %v792, %v798
      %v832 = vld [vmem:[%s5] sm:$0x1]
      %v834 = vlaneseq
      %v835 = vshrl.u32 %v834, 7
      %v836 = vsub.s32 0, %v835
      %v837 = vrot.slane %v832, %v836
      %v839 = vadd.f32 %v800, %v837
      %v840 = vadd.f32 %v801, %v837
      %v841 = vadd.f32 %v802, %v837
      %v842 = vadd.f32 %v803, %v837
      %v843 = vadd.f32 %v804, %v837
      %v844 = vadd.f32 %v805, %v837
      %v845 = vadd.f32 %v806, %v837
      %v846 = vadd.f32 %v807, %v837
      %v847 = vadd.f32 %v808, %v837
      %v848 = vadd.f32 %v809, %v837
      %v849 = vadd.f32 %v810, %v837
      %v850 = vadd.f32 %v811, %v837
      %v851 = vadd.f32 %v812, %v837
      %v852 = vadd.f32 %v813, %v837
      %v853 = vadd.f32 %v814, %v837
      %v854 = vadd.f32 %v815, %v837
      %v855 = vadd.f32 %v816, %v837
      %v856 = vadd.f32 %v817, %v837
      %v857 = vadd.f32 %v818, %v837
      %v858 = vadd.f32 %v819, %v837
      %v859 = vadd.f32 %v820, %v837
      %v860 = vadd.f32 %v821, %v837
      %v861 = vadd.f32 %v822, %v837
      %v862 = vadd.f32 %v823, %v837
      %v863 = vadd.f32 %v824, %v837
      %v864 = vadd.f32 %v825, %v837
      %v865 = vadd.f32 %v826, %v837
      %v866 = vadd.f32 %v827, %v837
      %v867 = vadd.f32 %v828, %v837
      %v868 = vadd.f32 %v829, %v837
      %v869 = vadd.f32 %v830, %v837
      %v870 = vadd.f32 %v831, %v837
      %v871 = vpack.c.bf16 %v840, %v839
      %v872 = vpack.c.bf16 %v842, %v841
      %v873 = vpack.c.bf16 %v844, %v843
      %v874 = vpack.c.bf16 %v846, %v845
      %v875 = vpack.c.bf16 %v848, %v847
      %v876 = vpack.c.bf16 %v850, %v849
      %v877 = vpack.c.bf16 %v852, %v851
      %v878 = vpack.c.bf16 %v854, %v853
      %v879 = vpack.c.bf16 %v856, %v855
      %v880 = vpack.c.bf16 %v858, %v857
      %v881 = vpack.c.bf16 %v860, %v859
      %v882 = vpack.c.bf16 %v862, %v861
      %v883 = vpack.c.bf16 %v864, %v863
      %v884 = vpack.c.bf16 %v866, %v865
      %v885 = vpack.c.bf16 %v868, %v867
      %v886 = vpack.c.bf16 %v870, %v869
      %v903 = vunpack.c.l.b16 %v871
      %v904 = vunpack.c.h.b16 %v871
      %v905 = vunpack.c.l.b16 %v872
      %v906 = vunpack.c.h.b16 %v872
      %v907 = vunpack.c.l.b16 %v873
      %v908 = vunpack.c.h.b16 %v873
      %v909 = vunpack.c.l.b16 %v874
      %v910 = vunpack.c.h.b16 %v874
      %v911 = vunpack.c.l.b16 %v875
      %v912 = vunpack.c.h.b16 %v875
      %v913 = vunpack.c.l.b16 %v876
      %v914 = vunpack.c.h.b16 %v876
      %v915 = vunpack.c.l.b16 %v877
      %v916 = vunpack.c.h.b16 %v877
      %v917 = vunpack.c.l.b16 %v878
      %v918 = vunpack.c.h.b16 %v878
      %v919 = vunpack.c.l.b16 %v879
      %v920 = vunpack.c.h.b16 %v879
      %v921 = vunpack.c.l.b16 %v880
      %v922 = vunpack.c.h.b16 %v880
      %v923 = vunpack.c.l.b16 %v881
      %v924 = vunpack.c.h.b16 %v881
      %v925 = vunpack.c.l.b16 %v882
      %v926 = vunpack.c.h.b16 %v882
      %v927 = vunpack.c.l.b16 %v883
      %v928 = vunpack.c.h.b16 %v883
      %v929 = vunpack.c.l.b16 %v884
      %v930 = vunpack.c.h.b16 %v884
      %v931 = vunpack.c.l.b16 %v885
      %v932 = vunpack.c.h.b16 %v885
      %v933 = vunpack.c.l.b16 %v886
      %v934 = vunpack.c.h.b16 %v886
      %v935 = vpack.c.b16 %v903, %v903
      %v936 = vpack.c.b16 %v904, %v904
      %v937 = vpack.c.b16 %v905, %v905
      %v938 = vpack.c.b16 %v906, %v906
      %v939 = vpack.c.b16 %v907, %v907
      %v940 = vpack.c.b16 %v908, %v908
      %v941 = vpack.c.b16 %v909, %v909
      %v942 = vpack.c.b16 %v910, %v910
      %v943 = vpack.c.b16 %v911, %v911
      %v944 = vpack.c.b16 %v912, %v912
      %v945 = vpack.c.b16 %v913, %v913
      %v946 = vpack.c.b16 %v914, %v914
      %v947 = vpack.c.b16 %v915, %v915
      %v948 = vpack.c.b16 %v916, %v916
      %v949 = vpack.c.b16 %v917, %v917
      %v950 = vpack.c.b16 %v918, %v918
      %v951 = vpack.c.b16 %v919, %v919
      %v952 = vpack.c.b16 %v920, %v920
      %v953 = vpack.c.b16 %v921, %v921
      %v954 = vpack.c.b16 %v922, %v922
      %v955 = vpack.c.b16 %v923, %v923
      %v956 = vpack.c.b16 %v924, %v924
      %v957 = vpack.c.b16 %v925, %v925
      %v958 = vpack.c.b16 %v926, %v926
      %v959 = vpack.c.b16 %v927, %v927
      %v960 = vpack.c.b16 %v928, %v928
      %v961 = vpack.c.b16 %v929, %v929
      %v962 = vpack.c.b16 %v930, %v930
      %v963 = vpack.c.b16 %v931, %v931
      %v964 = vpack.c.b16 %v932, %v932
      %v965 = vpack.c.b16 %v933, %v933
      %v966 = vpack.c.b16 %v934, %v934
      %vm999 = vcmask 27648
      %1000 = vst.msk [vmem:[%s251] sm:$0xf] %vm999, %v935
      %1001 = vst.msk [vmem:[%s251 + $0x4] sm:$0xf] %vm999, %v936
      %1002 = vst.msk [vmem:[%s251 + $0x8] sm:$0xf] %vm999, %v937
      %1003 = vst.msk [vmem:[%s251 + $0xc] sm:$0xf] %vm999, %v938
      %1004 = vst.msk [vmem:[%s251 + $0x10] sm:$0xf] %vm999, %v939
      %1005 = vst.msk [vmem:[%s251 + $0x14] sm:$0xf] %vm999, %v940
      %1006 = vst.msk [vmem:[%s251 + $0x18] sm:$0xf] %vm999, %v941
      %1007 = vst.msk [vmem:[%s251 + $0x1c] sm:$0xf] %vm999, %v942
      %1008 = vst.msk [vmem:[%s251 + $0x20] sm:$0xf] %vm999, %v943
      %1009 = vst.msk [vmem:[%s251 + $0x24] sm:$0xf] %vm999, %v944
      %1010 = vst.msk [vmem:[%s251 + $0x28] sm:$0xf] %vm999, %v945
      %1011 = vst.msk [vmem:[%s251 + $0x2c] sm:$0xf] %vm999, %v946
      %1012 = vst.msk [vmem:[%s251 + $0x30] sm:$0xf] %vm999, %v947
      %1013 = vst.msk [vmem:[%s251 + $0x34] sm:$0xf] %vm999, %v948
      %1014 = vst.msk [vmem:[%s251 + $0x38] sm:$0xf] %vm999, %v949
      %1015 = vst.msk [vmem:[%s251 + $0x3c] sm:$0xf] %vm999, %v950
      %1016 = vst.msk [vmem:[%s251 + $0x40] sm:$0xf] %vm999, %v951
      %1017 = vst.msk [vmem:[%s251 + $0x44] sm:$0xf] %vm999, %v952
      %1018 = vst.msk [vmem:[%s251 + $0x48] sm:$0xf] %vm999, %v953
      %1019 = vst.msk [vmem:[%s251 + $0x4c] sm:$0xf] %vm999, %v954
      %1020 = vst.msk [vmem:[%s251 + $0x50] sm:$0xf] %vm999, %v955
      %1021 = vst.msk [vmem:[%s251 + $0x54] sm:$0xf] %vm999, %v956
      %1022 = vst.msk [vmem:[%s251 + $0x58] sm:$0xf] %vm999, %v957
      %1023 = vst.msk [vmem:[%s251 + $0x5c] sm:$0xf] %vm999, %v958
      %1024 = vst.msk [vmem:[%s251 + $0x60] sm:$0xf] %vm999, %v959
      %1025 = vst.msk [vmem:[%s251 + $0x64] sm:$0xf] %vm999, %v960
      %1026 = vst.msk [vmem:[%s251 + $0x68] sm:$0xf] %vm999, %v961
      %1027 = vst.msk [vmem:[%s251 + $0x6c] sm:$0xf] %vm999, %v962
      %1028 = vst.msk [vmem:[%s251 + $0x70] sm:$0xf] %vm999, %v963
      %1029 = vst.msk [vmem:[%s251 + $0x74] sm:$0xf] %vm999, %v964
      %1030 = vst.msk [vmem:[%s251 + $0x78] sm:$0xf] %vm999, %v965
      %1031 = vst.msk [vmem:[%s251 + $0x7c] sm:$0xf] %vm999, %v966
      %p1032 = scmp.lt.s32.totalorder %s17, 1
      %s1033 = scalar_select %p1032, %s17, 1
      %s1034 = smul.addr %s1033, 32
      %s1035 = smul.addr %s1034, 4
      %s1036 = scalar_lea.vmem %s6, %s1035
      // Predicated region
      $region45: #{upsample_forward.3} parent=43 // pred_check
        %p1037 = pneg %p166
      $region46: #{upsample_forward.3} parent=43 // pred_check_branch
        %1039 = sbr.rel (%p1037) target = $region48
      $region47: #{upsample_forward.3} parent=43 // pred_region
        _
      $region48: #{upsample_forward.3} parent=43 // pred_fallthru
        _
    $region44: #{upsample_forward.3} parent=5 // pred_fallthru
      _
    %p1040 = scmp.le.s32.totalorder 2, %s12
    // Predicated region
    $region49: #{upsample_forward.3} parent=5 // pred_check
      %p1041 = pneg %p1040
    $region50: #{upsample_forward.3} parent=5 // pred_check_branch
      %1043 = sbr.rel (%p1041) target = $region52
    $region51: #{upsample_forward.3} parent=5 // pred_region
      %s1044 = ssub.s32 %s12, 2
      // Predicated region
      $region53: #{upsample_forward.3} parent=51 // pred_check
        %p1045 = pneg %p172
      $region54: #{upsample_forward.3} parent=51 // pred_check_branch
        %1047 = sbr.rel (%p1045) target = $region56
      $region55: #{upsample_forward.3} parent=51 // pred_region
        %p1048 = scmp.lt.s32.totalorder %s18, 1
        %s1049 = scalar_select %p1048, %s18, 1
        %s1050 = smul.addr %s1049, 32
        %s1051 = smul.addr %s1050, 4
        %s1052 = scalar_lea.vmem %s6, %s1051
      $region56: #{upsample_forward.3} parent=51 // pred_fallthru
        _
    $region52: #{upsample_forward.3} parent=5 // pred_fallthru
      _
  $region6: #{upsample_forward.3} parent=0 // loop_footer
    %s16 = sadd.s32 1, %s12
  $region7: #{upsample_forward.3} parent=0 // loop_footer_branch
    %11 = sbr.rel target = $region3
  $region8: #{upsample_forward.3} parent=0 // loop_exit
    _

// kernel: upsample_forward.5
$region0: #{upsample_forward.5}
  #allocation0 [shape = 'u32[]', space=smem, size = 0x4, offset = 0x4, fixed_abs, tag = 'smem constant byte address 0x4 - core index']
  #allocation1 [shape = 'u32[144,128]{1,0:T(1,128)}', space=vmem, size = 0x12000, scoped, tag = 'internal scratch']
  %s0 = inlined_call_operand.vmem [shape: bf16[2,288,12], index: 0, kind: input, shape index: {}]
  %s1 = inlined_call_operand.vmem [shape: bf16[3,12,4], index: 1, kind: input, shape index: {}]
  %s2 = inlined_call_operand.vmem [shape: f32[1,4], index: 2, kind: input, shape index: {}]
  %s3 = inlined_call_operand.vmem [shape: f32[1,4], index: 3, kind: input, shape index: {}]
  %s4 = inlined_call_operand.vmem [shape: f32[2,256,4], index: 4, kind: output, shape index: {}]
  %s5 = sld [smem:[#allocation0]]
  $region49: #{upsample_forward.5} parent=0
    _
  %s7 = ssub.s32 1, %s5
  %s8 = scalar_select 0, %s7, %s5
  loop: start=0, step=1, limit=4
  $region2: #{upsample_forward.5} parent=0 // loop_pre_header
    _
  $region3: #{upsample_forward.5} parent=0 // loop_header
    %s10 = sphi 0, %s14
    %p11 = scmp.ge.s32.totalorder %s10, 4
    %s20 = sphi 0, %s22
    %s23 = sphi 0, %s20
    %s24 = sphi 0, %s23
    %s40 = sphi 0, %s24
    %s44 = sphi 0, %s44
    %s46 = sphi 0, %s44
    %s47 = sphi 0, %s46
    %s61 = sphi 0, %s47
    %s65 = sphi 0, %s65
    %s67 = sphi 0, %s65
    %s68 = sphi 0, %s67
    %s82 = sphi 0, %s68
    %s86 = sphi 0, %s86
    %s88 = sphi 0, %s86
    %s89 = sphi 0, %s88
    %s103 = sphi 0, %s89
    %s109 = sphi 0, %s111
    %s112 = sphi 0, %s109
    %s113 = sphi 0, %s112
    %s129 = sphi 0, %s113
  $region4: #{upsample_forward.5} parent=0 // loop_header_branch
    %13 = sbr.rel (%p11) target = $region8
  $region5: #{upsample_forward.5} parent=0 // loop_body
    %s15 = ssub.s32 %s10, 1
    %s16 = ssub.s32 %s10, 2
    %s17 = sadd.s32 %s10, 1
    %s18 = ssub.s32 %s10, %s17
    %p19 = scmp.eq.s32.totalorder %s18, 0
    %s21 = sadd.s32 %s20, 1
    %s22 = scalar_select %p19, %s20, %s21
    %p25 = pneg %p19
    %p26 = scmp.eq.s32.totalorder %s10, 1
    %p27 = por %p25, %p26
    %p28 = scmp.ne.s32.totalorder %s20, %s23
    %p29 = scmp.eq.s32.totalorder %s10, 0
    %p30 = por %p28, %p29
    %p31 = scmp.ne.s32.totalorder %s20, %s23
    %p32 = scmp.eq.s32.totalorder %s15, 1
    %p33 = por %p31, %p32
    %p34 = scmp.ne.s32.totalorder %s23, %s24
    %p35 = scmp.eq.s32.totalorder %s15, 0
    %p36 = por %p34, %p35
    %p37 = scmp.ne.s32.totalorder %s23, %s24
    %p38 = scmp.eq.s32.totalorder %s16, 1
    %p39 = por %p37, %p38
    %p41 = scmp.ne.s32.totalorder %s24, %s40
    %p42 = scmp.eq.s32.totalorder %s16, 0
    %p43 = por %p41, %p42
    %s45 = sadd.s32 %s44, 1
    %p48 = scmp.eq.s32.totalorder %s10, 1
    %p49 = scmp.ne.s32.totalorder %s44, %s46
    %p50 = scmp.eq.s32.totalorder %s10, 0
    %p51 = por %p49, %p50
    %p52 = scmp.ne.s32.totalorder %s44, %s46
    %p53 = scmp.eq.s32.totalorder %s15, 1
    %p54 = por %p52, %p53
    %p55 = scmp.ne.s32.totalorder %s46, %s47
    %p56 = scmp.eq.s32.totalorder %s15, 0
    %p57 = por %p55, %p56
    %p58 = scmp.ne.s32.totalorder %s46, %s47
    %p59 = scmp.eq.s32.totalorder %s16, 1
    %p60 = por %p58, %p59
    %p62 = scmp.ne.s32.totalorder %s47, %s61
    %p63 = scmp.eq.s32.totalorder %s16, 0
    %p64 = por %p62, %p63
    %s66 = sadd.s32 %s65, 1
    %p69 = scmp.eq.s32.totalorder %s10, 1
    %p70 = scmp.ne.s32.totalorder %s65, %s67
    %p71 = scmp.eq.s32.totalorder %s10, 0
    %p72 = por %p70, %p71
    %p73 = scmp.ne.s32.totalorder %s65, %s67
    %p74 = scmp.eq.s32.totalorder %s15, 1
    %p75 = por %p73, %p74
    %p76 = scmp.ne.s32.totalorder %s67, %s68
    %p77 = scmp.eq.s32.totalorder %s15, 0
    %p78 = por %p76, %p77
    %p79 = scmp.ne.s32.totalorder %s67, %s68
    %p80 = scmp.eq.s32.totalorder %s16, 1
    %p81 = por %p79, %p80
    %p83 = scmp.ne.s32.totalorder %s68, %s82
    %p84 = scmp.eq.s32.totalorder %s16, 0
    %p85 = por %p83, %p84
    %s87 = sadd.s32 %s86, 1
    %p90 = scmp.eq.s32.totalorder %s10, 1
    %p91 = scmp.ne.s32.totalorder %s86, %s88
    %p92 = scmp.eq.s32.totalorder %s10, 0
    %p93 = por %p91, %p92
    %p94 = scmp.ne.s32.totalorder %s86, %s88
    %p95 = scmp.eq.s32.totalorder %s15, 1
    %p96 = por %p94, %p95
    %p97 = scmp.ne.s32.totalorder %s88, %s89
    %p98 = scmp.eq.s32.totalorder %s15, 0
    %p99 = por %p97, %p98
    %p100 = scmp.ne.s32.totalorder %s88, %s89
    %p101 = scmp.eq.s32.totalorder %s16, 1
    %p102 = por %p100, %p101
    %p104 = scmp.ne.s32.totalorder %s89, %s103
    %p105 = scmp.eq.s32.totalorder %s16, 0
    %p106 = por %p104, %p105
    %s107 = ssub.s32 %s10, %s17
    %p108 = scmp.eq.s32.totalorder %s107, 0
    %s110 = sadd.s32 %s109, 1
    %s111 = scalar_select %p108, %s109, %s110
    %p114 = pneg %p108
    %p115 = scmp.eq.s32.totalorder %s10, 1
    %p116 = por %p114, %p115
    %p117 = scmp.ne.s32.totalorder %s109, %s112
    %p118 = scmp.eq.s32.totalorder %s10, 0
    %p119 = por %p117, %p118
    %p120 = scmp.ne.s32.totalorder %s109, %s112
    %p121 = scmp.eq.s32.totalorder %s15, 1
    %p122 = por %p120, %p121
    %p123 = scmp.ne.s32.totalorder %s112, %s113
    %p124 = scmp.eq.s32.totalorder %s15, 0
    %p125 = por %p123, %p124
    %p126 = scmp.ne.s32.totalorder %s112, %s113
    %p127 = scmp.eq.s32.totalorder %s16, 1
    %p128 = por %p126, %p127
    %p130 = scmp.ne.s32.totalorder %s113, %s129
    %p131 = scmp.eq.s32.totalorder %s16, 0
    %p132 = por %p130, %p131
    %p133 = scmp.le.s32.totalorder 1, %s10
    %p134 = scmp.lt.s32.totalorder %s10, 3
    %p135 = pnand %p133, %p134
    %p136 = pneg %p135
    // Predicated region
    $region9: #{upsample_forward.5} parent=5 // pred_check
      _
    $region10: #{upsample_forward.5} parent=5 // pred_check_branch
      %138 = sbr.rel (%p135) target = $region12
    $region11: #{upsample_forward.5} parent=5 // pred_region
      %s139 = ssub.s32 %s10, 1
      // Predicated region
      $region13: #{upsample_forward.5} parent=11 // pred_check
        %p140 = pneg %p57
      $region14: #{upsample_forward.5} parent=11 // pred_check_branch
        %142 = sbr.rel (%p140) target = $region16
      $region15: #{upsample_forward.5} parent=11 // pred_region
        _
      $region16: #{upsample_forward.5} parent=11 // pred_fallthru
        _
      // Predicated region
      $region17: #{upsample_forward.5} parent=11 // pred_check
        %p143 = pneg %p78
      $region18: #{upsample_forward.5} parent=11 // pred_check_branch
        %145 = sbr.rel (%p143) target = $region20
      $region19: #{upsample_forward.5} parent=11 // pred_region
        _
      $region20: #{upsample_forward.5} parent=11 // pred_fallthru
        _
      // Predicated region
      $region21: #{upsample_forward.5} parent=11 // pred_check
        %p146 = pneg %p99
      $region22: #{upsample_forward.5} parent=11 // pred_check_branch
        %148 = sbr.rel (%p146) target = $region24
      $region23: #{upsample_forward.5} parent=11 // pred_region
        _
      $region24: #{upsample_forward.5} parent=11 // pred_fallthru
        _
    $region12: #{upsample_forward.5} parent=5 // pred_fallthru
      _
    %p149 = scmp.lt.s32.totalorder %s10, 2
    // Predicated region
    $region25: #{upsample_forward.5} parent=5 // pred_check
      %p150 = pneg %p149
    $region26: #{upsample_forward.5} parent=5 // pred_check_branch
      %152 = sbr.rel (%p150) target = $region28
    $region27: #{upsample_forward.5} parent=5 // pred_region
      // Predicated region
      $region29: #{upsample_forward.5} parent=27 // pred_check
        %p153 = pneg %p30
      $region30: #{upsample_forward.5} parent=27 // pred_check_branch
        %155 = sbr.rel (%p153) target = $region32
      $region31: #{upsample_forward.5} parent=27 // pred_region
        %p156 = scmp.lt.s32.totalorder %s10, 1
        %s157 = scalar_select %p156, %s10, 1
        %s158 = smul.addr %s157, 36
        %s159 = smul.addr %s158, 4
        %s160 = scalar_lea.vmem %s0, %s159
      $region32: #{upsample_forward.5} parent=27 // pred_fallthru
        _
    $region28: #{upsample_forward.5} parent=5 // pred_fallthru
      _
    %p161 = scmp.le.s32.totalorder 1, %s10
    %p162 = scmp.lt.s32.totalorder %s10, 3
    %p163 = pnand %p161, %p162
    %p164 = pneg %p163
    // Predicated region
    $region33: #{upsample_forward.5} parent=5 // pred_check
      _
    $region34: #{upsample_forward.5} parent=5 // pred_check_branch
      %166 = sbr.rel (%p163) target = $region36
    $region35: #{upsample_forward.5} parent=5 // pred_region
      %s167 = ssub.s32 %s10, 1
      %p168 = scmp.lt.s32.totalorder %s15, 1
      %s169 = scalar_select %p168, %s15, 1
      %s170 = smul.addr %s169, 36
      %s171 = smul.addr %s170, 4
      %s172 = scalar_lea.vmem %s0, %s171
      %p173 = pneg %p36
      %p174 = pneg %p33
      %p175 = pneg %p57
      %p176 = pneg %p54
      %p177 = pneg %p78
      %p178 = pneg %p75
      %p179 = pneg %p99
      %p180 = pneg %p96
      %p181 = pneg %p125
      %p182 = pneg %p122
      %p183 = scmp.lt.s32.totalorder %s15, 1
      %s184 = scalar_select %p183, %s15, 1
      %s185 = smul.addr %s184, 32
      %s186 = smul.addr %s185, 8
      %s187 = scalar_lea.vmem %s4, %s186
      %p188 = scmp.lt.s32.totalorder %s15, 1
      %s189 = scalar_select %p188, %s15, 1
      %s190 = smul.addr %s189, 36
      %s191 = smul.addr %s190, 4
      %s192 = scalar_lea.vmem %s0, %s191
      %p193 = scmp.lt.s32.totalorder %s15, 1
      %s194 = scalar_select %p193, %s15, 1
      %s195 = smul.addr %s194, 32
      %s196 = smul.addr %s195, 8
      %s197 = scalar_lea.vmem %s4, %s196
      %v199 = vld [vmem:[%s192] sm:$0xf]
      %v200 = vld [vmem:[%s192 + $0x4] sm:$0xf]
      %v201 = vld [vmem:[%s192 + $0x8] sm:$0xf]
      %v202 = vld [vmem:[%s192 + $0xc] sm:$0xf]
      %v203 = vld [vmem:[%s192 + $0x10] sm:$0xf]
      %v204 = vld [vmem:[%s192 + $0x14] sm:$0xf]
      %v205 = vld [vmem:[%s192 + $0x18] sm:$0xf]
      %v206 = vld [vmem:[%s192 + $0x1c] sm:$0xf]
      %v207 = vld [vmem:[%s192 + $0x20] sm:$0xf]
      %v208 = vld [vmem:[%s192 + $0x24] sm:$0xf]
      %v209 = vld [vmem:[%s192 + $0x28] sm:$0xf]
      %v210 = vld [vmem:[%s192 + $0x2c] sm:$0xf]
      %v211 = vld [vmem:[%s192 + $0x30] sm:$0xf]
      %v212 = vld [vmem:[%s192 + $0x34] sm:$0xf]
      %v213 = vld [vmem:[%s192 + $0x38] sm:$0xf]
      %v214 = vld [vmem:[%s192 + $0x3c] sm:$0xf]
      %v215 = vld [vmem:[%s192 + $0x40] sm:$0xf]
      %v216 = vld [vmem:[%s192 + $0x44] sm:$0xf]
      %v217 = vld [vmem:[%s192 + $0x48] sm:$0xf]
      %v218 = vld [vmem:[%s192 + $0x4c] sm:$0xf]
      %v219 = vld [vmem:[%s192 + $0x50] sm:$0xf]
      %v220 = vld [vmem:[%s192 + $0x54] sm:$0xf]
      %v221 = vld [vmem:[%s192 + $0x58] sm:$0xf]
      %v222 = vld [vmem:[%s192 + $0x5c] sm:$0xf]
      %v223 = vld [vmem:[%s192 + $0x60] sm:$0xf]
      %v224 = vld [vmem:[%s192 + $0x64] sm:$0xf]
      %v225 = vld [vmem:[%s192 + $0x68] sm:$0xf]
      %v226 = vld [vmem:[%s192 + $0x6c] sm:$0xf]
      %v227 = vld [vmem:[%s192 + $0x70] sm:$0xf]
      %v228 = vld [vmem:[%s192 + $0x74] sm:$0xf]
      %v229 = vld [vmem:[%s192 + $0x78] sm:$0xf]
      %v230 = vld [vmem:[%s192 + $0x7c] sm:$0xf]
      %v231 = vld [vmem:[%s1] sm:$0xf]
      %v232 = vld [vmem:[%s1 + $0x4] sm:$0x3]
      %v233 = vld [vmem:[%s192 + $0x80] sm:$0xf]
      %v234 = vld [vmem:[%s192 + $0x84] sm:$0xf]
      %s235 = scalar_lea.vmem %s1, 8
      %v236 = vld [vmem:[%s235] sm:$0xf]
      %v237 = vld [vmem:[%s235 + $0x4] sm:$0x3]
      %v270 = vunpack.c.l.b16 %v201
      %v271 = vunpack.c.l.b16 %v202
      %v272 = vunpack.c.l.b16 %v203
      %v273 = vunpack.c.l.b16 %v204
      %v274 = vunpack.c.l.b16 %v205
      %v275 = vunpack.c.l.b16 %v206
      %v276 = vunpack.c.l.b16 %v207
      %v277 = vunpack.c.l.b16 %v208
      %v278 = vunpack.c.l.b16 %v209
      %v279 = vunpack.c.l.b16 %v210
      %v280 = vunpack.c.l.b16 %v211
      %v281 = vunpack.c.l.b16 %v212
      %v282 = vunpack.c.l.b16 %v213
      %v283 = vunpack.c.l.b16 %v214
      %v284 = vunpack.c.l.b16 %v215
      %v285 = vunpack.c.l.b16 %v216
      %v286 = vunpack.c.l.b16 %v217
      %v287 = vunpack.c.l.b16 %v218
      %v288 = vunpack.c.l.b16 %v219
      %v289 = vunpack.c.l.b16 %v220
      %v290 = vunpack.c.l.b16 %v221
      %v291 = vunpack.c.l.b16 %v222
      %v292 = vunpack.c.l.b16 %v223
      %v293 = vunpack.c.l.b16 %v224
      %v294 = vunpack.c.l.b16 %v225
      %v295 = vunpack.c.l.b16 %v226
      %v296 = vunpack.c.l.b16 %v227
      %v297 = vunpack.c.l.b16 %v228
      %v298 = vunpack.c.l.b16 %v229
      %v299 = vunpack.c.l.b16 %v230
      %v300 = vunpack.c.l.b16 %v233
      %v301 = vunpack.c.l.b16 %v234
      %v302 = vpack.c.b16 %v271, %v270
      %v303 = vpack.c.b16 %v273, %v272
      %v304 = vpack.c.b16 %v275, %v274
      %v305 = vpack.c.b16 %v277, %v276
      %v306 = vpack.c.b16 %v279, %v278
      %v307 = vpack.c.b16 %v281, %v280
      %v308 = vpack.c.b16 %v283, %v282
      %v309 = vpack.c.b16 %v285, %v284
      %v310 = vpack.c.b16 %v287, %v286
      %v311 = vpack.c.b16 %v289, %v288
      %v312 = vpack.c.b16 %v291, %v290
      %v313 = vpack.c.b16 %v293, %v292
      %v314 = vpack.c.b16 %v295, %v294
      %v315 = vpack.c.b16 %v297, %v296
      %v316 = vpack.c.b16 %v299, %v298
      %v317 = vpack.c.b16 %v301, %v300
      %v320 = vunpack.c.l.b16 %v236
      %v321 = vunpack.c.l.b16 %v237
      %v322 = vpack.c.b16 %v321, %v320
      %vm323 = vcmask 97280
      %v325 = vsel %vm323, %v302, 0
      %v328 = vsel %vm323, %v303, 0
      %v331 = vsel %vm323, %v304, 0
      %v334 = vsel %vm323, %v305, 0
      %v337 = vsel %vm323, %v306, 0
      %v340 = vsel %vm323, %v307, 0
      %v343 = vsel %vm323, %v308, 0
      %v346 = vsel %vm323, %v309, 0
      %v349 = vsel %vm323, %v310, 0
      %v352 = vsel %vm323, %v311, 0
      %v355 = vsel %vm323, %v312, 0
      %v358 = vsel %vm323, %v313, 0
      %v361 = vsel %vm323, %v314, 0
      %v364 = vsel %vm323, %v315, 0
      %v367 = vsel %vm323, %v316, 0
      %v370 = vsel %vm323, %v317, 0
      %vm372 = vcmask 1045504
      %v374 = vsel %vm372, %v322, 0
      %376 = vmatprep.subr.bf16.mxu0 0
      %377 = vmatpush1.bf16.msra.mxu0 %v374
      %378 = vmatprep.subr.bf16.mxu0 0
      %379 = vmatpush1.bf16.msra.mxu0 0
      %380 = vmatprep.subr.bf16.mxu0 0
      %381 = vmatpush1.bf16.msra.mxu0 0
      %382 = vmatprep.subr.bf16.mxu0 0
      %383 = vmatpush1.bf16.msra.mxu0 0
      %384 = vmatprep.subr.bf16.mxu0 0
      %385 = vmatpush1.bf16.msra.mxu0 0
      %386 = vmatprep.subr.bf16.mxu0 0
      %387 = vmatpush1.bf16.msra.mxu0 0
      %388 = vmatprep.subr.bf16.mxu0 0
      %389 = vmatpush1.bf16.msra.mxu0 0
      %390 = vmatprep.subr.bf16.mxu0 0
      %391 = vmatpush1.bf16.msra.mxu0 0
      %392 = vmatprep.subr.bf16.mxu0 0
      %393 = vmatpush1.bf16.msra.mxu0 0
      %394 = vmatprep.subr.bf16.mxu0 0
      %395 = vmatpush1.bf16.msra.mxu0 0
      %396 = vmatprep.subr.bf16.mxu0 0
      %397 = vmatpush1.bf16.msra.mxu0 0
      %398 = vmatprep.subr.bf16.mxu0 0
      %399 = vmatpush1.bf16.msra.mxu0 0
      %400 = vmatprep.subr.bf16.mxu0 0
      %401 = vmatpush1.bf16.msra.mxu0 0
      %402 = vmatprep.subr.bf16.mxu0 0
      %403 = vmatpush1.bf16.msra.mxu0 0
      %404 = vmatprep.subr.bf16.mxu0 0
      %405 = vmatpush1.bf16.msra.mxu0 0
      %406 = vmatprep.subr.bf16.mxu0 0
      %407 = vmatpush1.bf16.msra.mxu0 0
      %408 = vmatprep.mubr.bf16.mxu0 0
      %409 = vmatmul.mubr.bf16.gmra.mrb[0].mxu0 %v325
      %v410 = vpop.f32.mrb[0].mxu0
      %v411 = vadd.f32 0.0, %v410
      %v412 = vpop.f32.mrb[0].mxu0
      %v413 = vpop.f32.mrb[0].mxu0
      %v414 = vadd.f32 0.0, %v413
      %v415 = vpop.f32.mrb[0].mxu0
      %416 = vmatprep.mubr.bf16.mxu0 0
      %417 = vmatmul.mubr.bf16.gmra.mrb[0].mxu0 %v328
      %v418 = vpop.f32.mrb[0].mxu0
      %v419 = vadd.f32 0.0, %v418
      %v420 = vpop.f32.mrb[0].mxu0
      %v421 = vpop.f32.mrb[0].mxu0
      %v422 = vadd.f32 0.0, %v421
      %v423 = vpop.f32.mrb[0].mxu0
      %424 = vmatprep.mubr.bf16.mxu0 0
      %425 = vmatmul.mubr.bf16.gmra.mrb[0].mxu0 %v331
      %v426 = vpop.f32.mrb[0].mxu0
      %v427 = vadd.f32 0.0, %v426
      %v428 = vpop.f32.mrb[0].mxu0
      %v429 = vpop.f32.mrb[0].mxu0
      %v430 = vadd.f32 0.0, %v429
      %v431 = vpop.f32.mrb[0].mxu0
      %432 = vmatprep.mubr.bf16.mxu0 0
      %433 = vmatmul.mubr.bf16.gmra.mrb[0].mxu0 %v334
      %v434 = vpop.f32.mrb[0].mxu0
      %v435 = vadd.f32 0.0, %v434
      %v436 = vpop.f32.mrb[0].mxu0
      %v437 = vpop.f32.mrb[0].mxu0
      %v438 = vadd.f32 0.0, %v437
      %v439 = vpop.f32.mrb[0].mxu0
      %440 = vmatprep.mubr.bf16.mxu0 0
      %441 = vmatmul.mubr.bf16.gmra.mrb[0].mxu0 %v337
      %v442 = vpop.f32.mrb[0].mxu0
      %v443 = vadd.f32 0.0, %v442
      %v444 = vpop.f32.mrb[0].mxu0
      %v445 = vpop.f32.mrb[0].mxu0
      %v446 = vadd.f32 0.0, %v445
      %v447 = vpop.f32.mrb[0].mxu0
      %448 = vmatprep.mubr.bf16.mxu0 0
      %449 = vmatmul.mubr.bf16.gmra.mrb[0].mxu0 %v340
      %v450 = vpop.f32.mrb[0].mxu0
      %v451 = vadd.f32 0.0, %v450
      %v452 = vpop.f32.mrb[0].mxu0
      %v453 = vpop.f32.mrb[0].mxu0
      %v454 = vadd.f32 0.0, %v453
      %v455 = vpop.f32.mrb[0].mxu0
      %456 = vmatprep.mubr.bf16.mxu0 0
      %457 = vmatmul.mubr.bf16.gmra.mrb[0].mxu0 %v343
      %v458 = vpop.f32.mrb[0].mxu0
      %v459 = vadd.f32 0.0, %v458
      %v460 = vpop.f32.mrb[0].mxu0
      %v461 = vpop.f32.mrb[0].mxu0
      %v462 = vadd.f32 0.0, %v461
      %v463 = vpop.f32.mrb[0].mxu0
      %464 = vmatprep.mubr.bf16.mxu0 0
      %465 = vmatmul.mubr.bf16.gmra.mrb[0].mxu0 %v346
      %v466 = vpop.f32.mrb[0].mxu0
      %v467 = vadd.f32 0.0, %v466
      %v468 = vpop.f32.mrb[0].mxu0
      %v469 = vpop.f32.mrb[0].mxu0
      %v470 = vadd.f32 0.0, %v469
      %v471 = vpop.f32.mrb[0].mxu0
      %472 = vmatprep.mubr.bf16.mxu0 0
      %473 = vmatmul.mubr.bf16.gmra.mrb[0].mxu0 %v349
      %v474 = vpop.f32.mrb[0].mxu0
      %v475 = vadd.f32 0.0, %v474
      %v476 = vpop.f32.mrb[0].mxu0
      %v477 = vpop.f32.mrb[0].mxu0
      %v478 = vadd.f32 0.0, %v477
      %v479 = vpop.f32.mrb[0].mxu0
      %480 = vmatprep.mubr.bf16.mxu0 0
      %481 = vmatmul.mubr.bf16.gmra.mrb[0].mxu0 %v352
      %v482 = vpop.f32.mrb[0].mxu0
      %v483 = vadd.f32 0.0, %v482
      %v484 = vpop.f32.mrb[0].mxu0
      %v485 = vpop.f32.mrb[0].mxu0
      %v486 = vadd.f32 0.0, %v485
      %v487 = vpop.f32.mrb[0].mxu0
      %488 = vmatprep.mubr.bf16.mxu0 0
      %489 = vmatmul.mubr.bf16.gmra.mrb[0].mxu0 %v355
      %v490 = vpop.f32.mrb[0].mxu0
      %v491 = vadd.f32 0.0, %v490
      %v492 = vpop.f32.mrb[0].mxu0
      %v493 = vpop.f32.mrb[0].mxu0
      %v494 = vadd.f32 0.0, %v493
      %v495 = vpop.f32.mrb[0].mxu0
      %496 = vmatprep.mubr.bf16.mxu0 0
      %497 = vmatmul.mubr.bf16.gmra.mrb[0].mxu0 %v358
      %v498 = vpop.f32.mrb[0].mxu0
      %v499 = vadd.f32 0.0, %v498
      %v500 = vpop.f32.mrb[0].mxu0
      %v501 = vpop.f32.mrb[0].mxu0
      %v502 = vadd.f32 0.0, %v501
      %v503 = vpop.f32.mrb[0].mxu0
      %504 = vmatprep.mubr.bf16.mxu0 0
      %505 = vmatmul.mubr.bf16.gmra.mrb[0].mxu0 %v361
      %v506 = vpop.f32.mrb[0].mxu0
      %v507 = vadd.f32 0.0, %v506
      %v508 = vpop.f32.mrb[0].mxu0
      %v509 = vpop.f32.mrb[0].mxu0
      %v510 = vadd.f32 0.0, %v509
      %v511 = vpop.f32.mrb[0].mxu0
      %512 = vmatprep.mubr.bf16.mxu0 0
      %513 = vmatmul.mubr.bf16.gmra.mrb[0].mxu0 %v364
      %v514 = vpop.f32.mrb[0].mxu0
      %v515 = vadd.f32 0.0, %v514
      %v516 = vpop.f32.mrb[0].mxu0
      %v517 = vpop.f32.mrb[0].mxu0
      %v518 = vadd.f32 0.0, %v517
      %v519 = vpop.f32.mrb[0].mxu0
      %520 = vmatprep.mubr.bf16.mxu0 0
      %521 = vmatmul.mubr.bf16.gmra.mrb[0].mxu0 %v367
      %v522 = vpop.f32.mrb[0].mxu0
      %v523 = vadd.f32 0.0, %v522
      %v524 = vpop.f32.mrb[0].mxu0
      %v525 = vpop.f32.mrb[0].mxu0
      %v526 = vadd.f32 0.0, %v525
      %v527 = vpop.f32.mrb[0].mxu0
      %528 = vmatprep.mubr.bf16.mxu0 0
      %529 = vmatmul.mubr.bf16.gmra.mrb[0].mxu0 %v370
      %v530 = vpop.f32.mrb[0].mxu0
      %v531 = vadd.f32 0.0, %v530
      %v532 = vpop.f32.mrb[0].mxu0
      %v533 = vpop.f32.mrb[0].mxu0
      %v534 = vadd.f32 0.0, %v533
      %v535 = vpop.f32.mrb[0].mxu0
      %536 = vdwg.mxu0
      %v539 = vunpack.c.l.b16 %v199
      %v540 = vunpack.c.l.b16 %v200
      %v541 = vpack.c.b16 %v540, %v539
      %v544 = vunpack.c.l.b16 %v231
      %v545 = vunpack.c.l.b16 %v232
      %v546 = vpack.c.b16 %v545, %v544
      %v548 = vsel %vm323, %v541, 0
      %v551 = vsel %vm372, %v546, 0
      %553 = vmatprep.subr.bf16.mxu0 0
      %554 = vmatpush1.bf16.msra.mxu0 %v551
      %555 = vmatprep.subr.bf16.mxu0 0
      %556 = vmatpush1.bf16.msra.mxu0 0
      %557 = vmatprep.subr.bf16.mxu0 0
      %558 = vmatpush1.bf16.msra.mxu0 0
      %559 = vmatprep.subr.bf16.mxu0 0
      %560 = vmatpush1.bf16.msra.mxu0 0
      %561 = vmatprep.subr.bf16.mxu0 0
      %562 = vmatpush1.bf16.msra.mxu0 0
      %563 = vmatprep.subr.bf16.mxu0 0
      %564 = vmatpush1.bf16.msra.mxu0 0
      %565 = vmatprep.subr.bf16.mxu0 0
      %566 = vmatpush1.bf16.msra.mxu0 0
      %567 = vmatprep.subr.bf16.mxu0 0
      %568 = vmatpush1.bf16.msra.mxu0 0
      %569 = vmatprep.subr.bf16.mxu0 0
      %570 = vmatpush1.bf16.msra.mxu0 0
      %571 = vmatprep.subr.bf16.mxu0 0
      %572 = vmatpush1.bf16.msra.mxu0 0
      %573 = vmatprep.subr.bf16.mxu0 0
      %574 = vmatpush1.bf16.msra.mxu0 0
      %575 = vmatprep.subr.bf16.mxu0 0
      %576 = vmatpush1.bf16.msra.mxu0 0
      %577 = vmatprep.subr.bf16.mxu0 0
      %578 = vmatpush1.bf16.msra.mxu0 0
      %579 = vmatprep.subr.bf16.mxu0 0
      %580 = vmatpush1.bf16.msra.mxu0 0
      %581 = vmatprep.subr.bf16.mxu0 0
      %582 = vmatpush1.bf16.msra.mxu0 0
      %583 = vmatprep.subr.bf16.mxu0 0
      %584 = vmatpush1.bf16.msra.mxu0 0
      %585 = vmatprep.mubr.bf16.mxu0 0
      %586 = vmatmul.mubr.bf16.gmra.mrb[0].mxu0 %v548
      %v587 = vpop.f32.mrb[0].mxu0
      %v588 = vadd.f32 %v411, %v587
      %v589 = vpop.f32.mrb[0].mxu0
      %v590 = vpop.f32.mrb[0].mxu0
      %v591 = vadd.f32 %v414, %v590
      %v592 = vpop.f32.mrb[0].mxu0
      %593 = vmatprep.mubr.bf16.mxu0 0
      %594 = vmatmul.mubr.bf16.gmra.mrb[0].mxu0 %v325
      %v595 = vpop.f32.mrb[0].mxu0
      %v596 = vadd.f32 %v419, %v595
      %v597 = vpop.f32.mrb[0].mxu0
      %v598 = vpop.f32.mrb[0].mxu0
      %v599 = vadd.f32 %v422, %v598
      %v600 = vpop.f32.mrb[0].mxu0
      %601 = vmatprep.mubr.bf16.mxu0 0
      %602 = vmatmul.mubr.bf16.gmra.mrb[0].mxu0 %v328
      %v603 = vpop.f32.mrb[0].mxu0
      %v604 = vadd.f32 %v427, %v603
      %v605 = vpop.f32.mrb[0].mxu0
      %v606 = vpop.f32.mrb[0].mxu0
      %v607 = vadd.f32 %v430, %v606
      %v608 = vpop.f32.mrb[0].mxu0
      %609 = vmatprep.mubr.bf16.mxu0 0
      %610 = vmatmul.mubr.bf16.gmra.mrb[0].mxu0 %v331
      %v611 = vpop.f32.mrb[0].mxu0
      %v612 = vadd.f32 %v435, %v611
      %v613 = vpop.f32.mrb[0].mxu0
      %v614 = vpop.f32.mrb[0].mxu0
      %v615 = vadd.f32 %v438, %v614
      %v616 = vpop.f32.mrb[0].mxu0
      %617 = vmatprep.mubr.bf16.mxu0 0
      %618 = vmatmul.mubr.bf16.gmra.mrb[0].mxu0 %v334
      %v619 = vpop.f32.mrb[0].mxu0
      %v620 = vadd.f32 %v443, %v619
      %v621 = vpop.f32.mrb[0].mxu0
      %v622 = vpop.f32.mrb[0].mxu0
      %v623 = vadd.f32 %v446, %v622
      %v624 = vpop.f32.mrb[0].mxu0
      %625 = vmatprep.mubr.bf16.mxu0 0
      %626 = vmatmul.mubr.bf16.gmra.mrb[0].mxu0 %v337
      %v627 = vpop.f32.mrb[0].mxu0
      %v628 = vadd.f32 %v451, %v627
      %v629 = vpop.f32.mrb[0].mxu0
      %v630 = vpop.f32.mrb[0].mxu0
      %v631 = vadd.f32 %v454, %v630
      %v632 = vpop.f32.mrb[0].mxu0
      %633 = vmatprep.mubr.bf16.mxu0 0
      %634 = vmatmul.mubr.bf16.gmra.mrb[0].mxu0 %v340
      %v635 = vpop.f32.mrb[0].mxu0
      %v636 = vadd.f32 %v459, %v635
      %v637 = vpop.f32.mrb[0].mxu0
      %v638 = vpop.f32.mrb[0].mxu0
      %v639 = vadd.f32 %v462, %v638
      %v640 = vpop.f32.mrb[0].mxu0
      %641 = vmatprep.mubr.bf16.mxu0 0
      %642 = vmatmul.mubr.bf16.gmra.mrb[0].mxu0 %v343
      %v643 = vpop.f32.mrb[0].mxu0
      %v644 = vadd.f32 %v467, %v643
      %v645 = vpop.f32.mrb[0].mxu0
      %v646 = vpop.f32.mrb[0].mxu0
      %v647 = vadd.f32 %v470, %v646
      %v648 = vpop.f32.mrb[0].mxu0
      %649 = vmatprep.mubr.bf16.mxu0 0
      %650 = vmatmul.mubr.bf16.gmra.mrb[0].mxu0 %v346
      %v651 = vpop.f32.mrb[0].mxu0
      %v652 = vadd.f32 %v475, %v651
      %v653 = vpop.f32.mrb[0].mxu0
      %v654 = vpop.f32.mrb[0].mxu0
      %v655 = vadd.f32 %v478, %v654
      %v656 = vpop.f32.mrb[0].mxu0
      %657 = vmatprep.mubr.bf16.mxu0 0
      %658 = vmatmul.mubr.bf16.gmra.mrb[0].mxu0 %v349
      %v659 = vpop.f32.mrb[0].mxu0
      %v660 = vadd.f32 %v483, %v659
      %v661 = vpop.f32.mrb[0].mxu0
      %v662 = vpop.f32.mrb[0].mxu0
      %v663 = vadd.f32 %v486, %v662
      %v664 = vpop.f32.mrb[0].mxu0
      %665 = vmatprep.mubr.bf16.mxu0 0
      %666 = vmatmul.mubr.bf16.gmra.mrb[0].mxu0 %v352
      %v667 = vpop.f32.mrb[0].mxu0
      %v668 = vadd.f32 %v491, %v667
      %v669 = vpop.f32.mrb[0].mxu0
      %v670 = vpop.f32.mrb[0].mxu0
      %v671 = vadd.f32 %v494, %v670
      %v672 = vpop.f32.mrb[0].mxu0
      %673 = vmatprep.mubr.bf16.mxu0 0
      %674 = vmatmul.mubr.bf16.gmra.mrb[0].mxu0 %v355
      %v675 = vpop.f32.mrb[0].mxu0
      %v676 = vadd.f32 %v499, %v675
      %v677 = vpop.f32.mrb[0].mxu0
      %v678 = vpop.f32.mrb[0].mxu0
      %v679 = vadd.f32 %v502, %v678
      %v680 = vpop.f32.mrb[0].mxu0
      %681 = vmatprep.mubr.bf16.mxu0 0
      %682 = vmatmul.mubr.bf16.gmra.mrb[0].mxu0 %v358
      %v683 = vpop.f32.mrb[0].mxu0
      %v684 = vadd.f32 %v507, %v683
      %v685 = vpop.f32.mrb[0].mxu0
      %v686 = vpop.f32.mrb[0].mxu0
      %v687 = vadd.f32 %v510, %v686
      %v688 = vpop.f32.mrb[0].mxu0
      %689 = vmatprep.mubr.bf16.mxu0 0
      %690 = vmatmul.mubr.bf16.gmra.mrb[0].mxu0 %v361
      %v691 = vpop.f32.mrb[0].mxu0
      %v692 = vadd.f32 %v515, %v691
      %v693 = vpop.f32.mrb[0].mxu0
      %v694 = vpop.f32.mrb[0].mxu0
      %v695 = vadd.f32 %v518, %v694
      %v696 = vpop.f32.mrb[0].mxu0
      %697 = vmatprep.mubr.bf16.mxu0 0
      %698 = vmatmul.mubr.bf16.gmra.mrb[0].mxu0 %v364
      %v699 = vpop.f32.mrb[0].mxu0
      %v700 = vadd.f32 %v523, %v699
      %v701 = vpop.f32.mrb[0].mxu0
      %v702 = vpop.f32.mrb[0].mxu0
      %v703 = vadd.f32 %v526, %v702
      %v704 = vpop.f32.mrb[0].mxu0
      %705 = vmatprep.mubr.bf16.mxu0 0
      %706 = vmatmul.mubr.bf16.gmra.mrb[0].mxu0 %v367
      %v707 = vpop.f32.mrb[0].mxu0
      %v708 = vadd.f32 %v531, %v707
      %v709 = vpop.f32.mrb[0].mxu0
      %v710 = vpop.f32.mrb[0].mxu0
      %v711 = vadd.f32 %v534, %v710
      %v712 = vpop.f32.mrb[0].mxu0
      %713 = vdwg.mxu0
      %v714 = vld [vmem:[%s192 + $0x10] sm:$0xf]
      %v715 = vld [vmem:[%s192 + $0x14] sm:$0xf]
      %v716 = vld [vmem:[%s192 + $0x18] sm:$0xf]
      %v717 = vld [vmem:[%s192 + $0x1c] sm:$0xf]
      %v718 = vld [vmem:[%s192 + $0x20] sm:$0xf]
      %v719 = vld [vmem:[%s192 + $0x24] sm:$0xf]
      %v720 = vld [vmem:[%s192 + $0x28] sm:$0xf]
      %v721 = vld [vmem:[%s192 + $0x2c] sm:$0xf]
      %v722 = vld [vmem:[%s192 + $0x30] sm:$0xf]
      %v723 = vld [vmem:[%s192 + $0x34] sm:$0xf]
      %v724 = vld [vmem:[%s192 + $0x38] sm:$0xf]
      %v725 = vld [vmem:[%s192 + $0x3c] sm:$0xf]
      %v726 = vld [vmem:[%s192 + $0x40] sm:$0xf]
      %v727 = vld [vmem:[%s192 + $0x44] sm:$0xf]
      %v728 = vld [vmem:[%s192 + $0x48] sm:$0xf]
      %v729 = vld [vmem:[%s192 + $0x4c] sm:$0xf]
      %v730 = vld [vmem:[%s192 + $0x50] sm:$0xf]
      %v731 = vld [vmem:[%s192 + $0x54] sm:$0xf]
      %v732 = vld [vmem:[%s192 + $0x58] sm:$0xf]
      %v733 = vld [vmem:[%s192 + $0x5c] sm:$0xf]
      %v734 = vld [vmem:[%s192 + $0x60] sm:$0xf]
      %v735 = vld [vmem:[%s192 + $0x64] sm:$0xf]
      %v736 = vld [vmem:[%s192 + $0x68] sm:$0xf]
      %v737 = vld [vmem:[%s192 + $0x6c] sm:$0xf]
      %v738 = vld [vmem:[%s192 + $0x70] sm:$0xf]
      %v739 = vld [vmem:[%s192 + $0x74] sm:$0xf]
      %v740 = vld [vmem:[%s192 + $0x78] sm:$0xf]
      %v741 = vld [vmem:[%s192 + $0x7c] sm:$0xf]
      %v742 = vld [vmem:[%s192 + $0x80] sm:$0xf]
      %v743 = vld [vmem:[%s192 + $0x84] sm:$0xf]
      %v744 = vld [vmem:[%s192 + $0x88] sm:$0xf]
      %v745 = vld [vmem:[%s192 + $0x8c] sm:$0xf]
      %s746 = scalar_lea.vmem %s1, 16
      %v747 = vld [vmem:[%s746] sm:$0xf]
      %v748 = vld [vmem:[%s746 + $0x4] sm:$0x3]
      %v781 = vunpack.c.l.b16 %v714
      %v782 = vunpack.c.l.b16 %v715
      %v783 = vunpack.c.l.b16 %v716
      %v784 = vunpack.c.l.b16 %v717
      %v785 = vunpack.c.l.b16 %v718
      %v786 = vunpack.c.l.b16 %v719
      %v787 = vunpack.c.l.b16 %v720
      %v788 = vunpack.c.l.b16 %v721
      %v789 = vunpack.c.l.b16 %v722
      %v790 = vunpack.c.l.b16 %v723
      %v791 = vunpack.c.l.b16 %v724
      %v792 = vunpack.c.l.b16 %v725
      %v793 = vunpack.c.l.b16 %v726
      %v794 = vunpack.c.l.b16 %v727
      %v795 = vunpack.c.l.b16 %v728
      %v796 = vunpack.c.l.b16 %v729
      %v797 = vunpack.c.l.b16 %v730
      %v798 = vunpack.c.l.b16 %v731
      %v799 = vunpack.c.l.b16 %v732
      %v800 = vunpack.c.l.b16 %v733
      %v801 = vunpack.c.l.b16 %v734
      %v802 = vunpack.c.l.b16 %v735
      %v803 = vunpack.c.l.b16 %v736
      %v804 = vunpack.c.l.b16 %v737
      %v805 = vunpack.c.l.b16 %v738
      %v806 = vunpack.c.l.b16 %v739
      %v807 = vunpack.c.l.b16 %v740
      %v808 = vunpack.c.l.b16 %v741
      %v809 = vunpack.c.l.b16 %v742
      %v810 = vunpack.c.l.b16 %v743
      %v811 = vunpack.c.l.b16 %v744
      %v812 = vunpack.c.l.b16 %v745
      %v813 = vpack.c.b16 %v782, %v781
      %v814 = vpack.c.b16 %v784, %v783
      %v815 = vpack.c.b16 %v786, %v785
      %v816 = vpack.c.b16 %v788, %v787
      %v817 = vpack.c.b16 %v790, %v789
      %v818 = vpack.c.b16 %v792, %v791
      %v819 = vpack.c.b16 %v794, %v793
      %v820 = vpack.c.b16 %v796, %v795
      %v821 = vpack.c.b16 %v798, %v797
      %v822 = vpack.c.b16 %v800, %v799
      %v823 = vpack.c.b16 %v802, %v801
      %v824 = vpack.c.b16 %v804, %v803
      %v825 = vpack.c.b16 %v806, %v805
      %v826 = vpack.c.b16 %v808, %v807
      %v827 = vpack.c.b16 %v810, %v809
      %v828 = vpack.c.b16 %v812, %v811
      %v831 = vunpack.c.l.b16 %v747
      %v832 = vunpack.c.l.b16 %v748
      %v833 = vpack.c.b16 %v832, %v831
      %v835 = vsel %vm323, %v813, 0
      %v838 = vsel %vm323, %v814, 0
      %v841 = vsel %vm323, %v815, 0
      %v844 = vsel %vm323, %v816, 0
      %v847 = vsel %vm323, %v817, 0
      %v850 = vsel %vm323, %v818, 0
      %v853 = vsel %vm323, %v819, 0
      %v856 = vsel %vm323, %v820, 0
      %v859 = vsel %vm323, %v821, 0
      %v862 = vsel %vm323, %v822, 0
      %v865 = vsel %vm323, %v823, 0
      %v868 = vsel %vm323, %v824, 0
      %v871 = vsel %vm323, %v825, 0
      %v874 = vsel %vm323, %v826, 0
      %v877 = vsel %vm323, %v827, 0
      %v880 = vsel %vm323, %v828, 0
      %v883 = vsel %vm372, %v833, 0
      %885 = vmatprep.subr.bf16.mxu0 0
      %886 = vmatpush1.bf16.msra.mxu0 %v883
      %887 = vmatprep.subr.bf16.mxu0 0
      %888 = vmatpush1.bf16.msra.mxu0 0
      %889 = vmatprep.subr.bf16.mxu0 0
      %890 = vmatpush1.bf16.msra.mxu0 0
      %891 = vmatprep.subr.bf16.mxu0 0
      %892 = vmatpush1.bf16.msra.mxu0 0
      %893 = vmatprep.subr.bf16.mxu0 0
      %894 = vmatpush1.bf16.msra.mxu0 0
      %895 = vmatprep.subr.bf16.mxu0 0
      %896 = vmatpush1.bf16.msra.mxu0 0
      %897 = vmatprep.subr.bf16.mxu0 0
      %898 = vmatpush1.bf16.msra.mxu0 0
      %899 = vmatprep.subr.bf16.mxu0 0
      %900 = vmatpush1.bf16.msra.mxu0 0
      %901 = vmatprep.subr.bf16.mxu0 0
      %902 = vmatpush1.bf16.msra.mxu0 0
      %903 = vmatprep.subr.bf16.mxu0 0
      %904 = vmatpush1.bf16.msra.mxu0 0
      %905 = vmatprep.subr.bf16.mxu0 0
      %906 = vmatpush1.bf16.msra.mxu0 0
      %907 = vmatprep.subr.bf16.mxu0 0
      %908 = vmatpush1.bf16.msra.mxu0 0
      %909 = vmatprep.subr.bf16.mxu0 0
      %910 = vmatpush1.bf16.msra.mxu0 0
      %911 = vmatprep.subr.bf16.mxu0 0
      %912 = vmatpush1.bf16.msra.mxu0 0
      %913 = vmatprep.subr.bf16.mxu0 0
      %914 = vmatpush1.bf16.msra.mxu0 0
      %915 = vmatprep.subr.bf16.mxu0 0
      %916 = vmatpush1.bf16.msra.mxu0 0
      %917 = vmatprep.mubr.bf16.mxu0 0
      %918 = vmatmul.mubr.bf16.gmra.mrb[0].mxu0 %v835
      %v919 = vpop.f32.mrb[0].mxu0
      %v920 = vadd.f32 0.0, %v919
      %v921 = vpop.f32.mrb[0].mxu0
      %v922 = vpop.f32.mrb[0].mxu0
      %v923 = vadd.f32 0.0, %v922
      %v924 = vpop.f32.mrb[0].mxu0
      %925 = vmatprep.mubr.bf16.mxu0 0
      %926 = vmatmul.mubr.bf16.gmra.mrb[0].mxu0 %v838
      %v927 = vpop.f32.mrb[0].mxu0
      %v928 = vadd.f32 0.0, %v927
      %v929 = vpop.f32.mrb[0].mxu0
      %v930 = vpop.f32.mrb[0].mxu0
      %v931 = vadd.f32 0.0, %v930
      %v932 = vpop.f32.mrb[0].mxu0
      %933 = vmatprep.mubr.bf16.mxu0 0
      %934 = vmatmul.mubr.bf16.gmra.mrb[0].mxu0 %v841
      %v935 = vpop.f32.mrb[0].mxu0
      %v936 = vadd.f32 0.0, %v935
      %v937 = vpop.f32.mrb[0].mxu0
      %v938 = vpop.f32.mrb[0].mxu0
      %v939 = vadd.f32 0.0, %v938
      %v940 = vpop.f32.mrb[0].mxu0
      %941 = vmatprep.mubr.bf16.mxu0 0
      %942 = vmatmul.mubr.bf16.gmra.mrb[0].mxu0 %v844
      %v943 = vpop.f32.mrb[0].mxu0
      %v944 = vadd.f32 0.0, %v943
      %v945 = vpop.f32.mrb[0].mxu0
      %v946 = vpop.f32.mrb[0].mxu0
      %v947 = vadd.f32 0.0, %v946
      %v948 = vpop.f32.mrb[0].mxu0
      %949 = vmatprep.mubr.bf16.mxu0 0
      %950 = vmatmul.mubr.bf16.gmra.mrb[0].mxu0 %v847
      %v951 = vpop.f32.mrb[0].mxu0
      %v952 = vadd.f32 0.0, %v951
      %v953 = vpop.f32.mrb[0].mxu0
      %v954 = vpop.f32.mrb[0].mxu0
      %v955 = vadd.f32 0.0, %v954
      %v956 = vpop.f32.mrb[0].mxu0
      %957 = vmatprep.mubr.bf16.mxu0 0
      %958 = vmatmul.mubr.bf16.gmra.mrb[0].mxu0 %v850
      %v959 = vpop.f32.mrb[0].mxu0
      %v960 = vadd.f32 0.0, %v959
      %v961 = vpop.f32.mrb[0].mxu0
      %v962 = vpop.f32.mrb[0].mxu0
      %v963 = vadd.f32 0.0, %v962
      %v964 = vpop.f32.mrb[0].mxu0
      %965 = vmatprep.mubr.bf16.mxu0 0
      %966 = vmatmul.mubr.bf16.gmra.mrb[0].mxu0 %v853
      %v967 = vpop.f32.mrb[0].mxu0
      %v968 = vadd.f32 0.0, %v967
      %v969 = vpop.f32.mrb[0].mxu0
      %v970 = vpop.f32.mrb[0].mxu0
      %v971 = vadd.f32 0.0, %v970
      %v972 = vpop.f32.mrb[0].mxu0
      %973 = vmatprep.mubr.bf16.mxu0 0
      %974 = vmatmul.mubr.bf16.gmra.mrb[0].mxu0 %v856
      %v975 = vpop.f32.mrb[0].mxu0
      %v976 = vadd.f32 0.0, %v975
      %v977 = vpop.f32.mrb[0].mxu0
      %v978 = vpop.f32.mrb[0].mxu0
      %v979 = vadd.f32 0.0, %v978
      %v980 = vpop.f32.mrb[0].mxu0
      %981 = vmatprep.mubr.bf16.mxu0 0
      %982 = vmatmul.mubr.bf16.gmra.mrb[0].mxu0 %v859
      %v983 = vpop.f32.mrb[0].mxu0
      %v984 = vadd.f32 0.0, %v983
      %v985 = vpop.f32.mrb[0].mxu0
      %v986 = vpop.f32.mrb[0].mxu0
      %v987 = vadd.f32 0.0, %v986
      %v988 = vpop.f32.mrb[0].mxu0
      %989 = vmatprep.mubr.bf16.mxu0 0
      %990 = vmatmul.mubr.bf16.gmra.mrb[0].mxu0 %v862
      %v991 = vpop.f32.mrb[0].mxu0
      %v992 = vadd.f32 0.0, %v991
      %v993 = vpop.f32.mrb[0].mxu0
      %v994 = vpop.f32.mrb[0].mxu0
      %v995 = vadd.f32 0.0, %v994
      %v996 = vpop.f32.mrb[0].mxu0
      %997 = vmatprep.mubr.bf16.mxu0 0
      %998 = vmatmul.mubr.bf16.gmra.mrb[0].mxu0 %v865
      %v999 = vpop.f32.mrb[0].mxu0
      %v1000 = vadd.f32 0.0, %v999
      %v1001 = vpop.f32.mrb[0].mxu0
      %v1002 = vpop.f32.mrb[0].mxu0
      %v1003 = vadd.f32 0.0, %v1002
      %v1004 = vpop.f32.mrb[0].mxu0
      %1005 = vmatprep.mubr.bf16.mxu0 0
      %1006 = vmatmul.mubr.bf16.gmra.mrb[0].mxu0 %v868
      %v1007 = vpop.f32.mrb[0].mxu0
      %v1008 = vadd.f32 0.0, %v1007
      %v1009 = vpop.f32.mrb[0].mxu0
      %v1010 = vpop.f32.mrb[0].mxu0
      %v1011 = vadd.f32 0.0, %v1010
      %v1012 = vpop.f32.mrb[0].mxu0
      %1013 = vmatprep.mubr.bf16.mxu0 0
      %1014 = vmatmul.mubr.bf16.gmra.mrb[0].mxu0 %v871
      %v1015 = vpop.f32.mrb[0].mxu0
      %v1016 = vadd.f32 0.0, %v1015
      %v1017 = vpop.f32.mrb[0].mxu0
      %v1018 = vpop.f32.mrb[0].mxu0
      %v1019 = vadd.f32 0.0, %v1018
      %v1020 = vpop.f32.mrb[0].mxu0
      %1021 = vmatprep.mubr.bf16.mxu0 0
      %1022 = vmatmul.mubr.bf16.gmra.mrb[0].mxu0 %v874
      %v1023 = vpop.f32.mrb[0].mxu0
      %v1024 = vadd.f32 0.0, %v1023
      %v1025 = vpop.f32.mrb[0].mxu0
      %v1026 = vpop.f32.mrb[0].mxu0
      %v1027 = vadd.f32 0.0, %v1026
      %v1028 = vpop.f32.mrb[0].mxu0
      %1029 = vmatprep.mubr.bf16.mxu0 0
      %1030 = vmatmul.mubr.bf16.gmra.mrb[0].mxu0 %v877
      %v1031 = vpop.f32.mrb[0].mxu0
      %v1032 = vadd.f32 0.0, %v1031
      %v1033 = vpop.f32.mrb[0].mxu0
      %v1034 = vpop.f32.mrb[0].mxu0
      %v1035 = vadd.f32 0.0, %v1034
      %v1036 = vpop.f32.mrb[0].mxu0
      %1037 = vmatprep.mubr.bf16.mxu0 0
      %1038 = vmatmul.mubr.bf16.gmra.mrb[0].mxu0 %v880
      %v1039 = vpop.f32.mrb[0].mxu0
      %v1040 = vadd.f32 0.0, %v1039
      %v1041 = vpop.f32.mrb[0].mxu0
      %v1042 = vpop.f32.mrb[0].mxu0
      %v1043 = vadd.f32 0.0, %v1042
      %v1044 = vpop.f32.mrb[0].mxu0
      %1045 = vdwg.mxu0
      %v1046 = vadd.f32 %v588, %v920
      %v1047 = vadd.f32 %v591, %v923
      %v1048 = vadd.f32 %v596, %v928
      %v1049 = vadd.f32 %v599, %v931
      %v1050 = vadd.f32 %v604, %v936
      %v1051 = vadd.f32 %v607, %v939
      %v1052 = vadd.f32 %v612, %v944
      %v1053 = vadd.f32 %v615, %v947
      %v1054 = vadd.f32 %v620, %v952
      %v1055 = vadd.f32 %v623, %v955
      %v1056 = vadd.f32 %v628, %v960
      %v1057 = vadd.f32 %v631, %v963
      %v1058 = vadd.f32 %v636, %v968
      %v1059 = vadd.f32 %v639, %v971
      %v1060 = vadd.f32 %v644, %v976
      %v1061 = vadd.f32 %v647, %v979
      %v1062 = vadd.f32 %v652, %v984
      %v1063 = vadd.f32 %v655, %v987
      %v1064 = vadd.f32 %v660, %v992
      %v1065 = vadd.f32 %v663, %v995
      %v1066 = vadd.f32 %v668, %v1000
      %v1067 = vadd.f32 %v671, %v1003
      %v1068 = vadd.f32 %v676, %v1008
      %v1069 = vadd.f32 %v679, %v1011
      %v1070 = vadd.f32 %v684, %v1016
      %v1071 = vadd.f32 %v687, %v1019
      %v1072 = vadd.f32 %v692, %v1024
      %v1073 = vadd.f32 %v695, %v1027
      %v1074 = vadd.f32 %v700, %v1032
      %v1075 = vadd.f32 %v703, %v1035
      %v1076 = vadd.f32 %v708, %v1040
      %v1077 = vadd.f32 %v711, %v1043
      %vm1078 = vcmp.ge.f32.partialorder %v1046, 0.0
      %vm1079 = vcmp.ge.f32.partialorder %v1047, 0.0
      %vm1080 = vcmp.ge.f32.partialorder %v1048, 0.0
      %vm1081 = vcmp.ge.f32.partialorder %v1049, 0.0
      %vm1082 = vcmp.ge.f32.partialorder %v1050, 0.0
      %vm1083 = vcmp.ge.f32.partialorder %v1051, 0.0
      %vm1084 = vcmp.ge.f32.partialorder %v1052, 0.0
      %vm1085 = vcmp.ge.f32.partialorder %v1053, 0.0
      %vm1086 = vcmp.ge.f32.partialorder %v1054, 0.0
      %vm1087 = vcmp.ge.f32.partialorder %v1055, 0.0
      %vm1088 = vcmp.ge.f32.partialorder %v1056, 0.0
      %vm1089 = vcmp.ge.f32.partialorder %v1057, 0.0
      %vm1090 = vcmp.ge.f32.partialorder %v1058, 0.0
      %vm1091 = vcmp.ge.f32.partialorder %v1059, 0.0
      %vm1092 = vcmp.ge.f32.partialorder %v1060, 0.0
      %vm1093 = vcmp.ge.f32.partialorder %v1061, 0.0
      %vm1094 = vcmp.ge.f32.partialorder %v1062, 0.0
      %vm1095 = vcmp.ge.f32.partialorder %v1063, 0.0
      %vm1096 = vcmp.ge.f32.partialorder %v1064, 0.0
      %vm1097 = vcmp.ge.f32.partialorder %v1065, 0.0
      %vm1098 = vcmp.ge.f32.partialorder %v1066, 0.0
      %vm1099 = vcmp.ge.f32.partialorder %v1067, 0.0
      %vm1100 = vcmp.ge.f32.partialorder %v1068, 0.0
      %vm1101 = vcmp.ge.f32.partialorder %v1069, 0.0
      %vm1102 = vcmp.ge.f32.partialorder %v1070, 0.0
      %vm1103 = vcmp.ge.f32.partialorder %v1071, 0.0
      %vm1104 = vcmp.ge.f32.partialorder %v1072, 0.0
      %vm1105 = vcmp.ge.f32.partialorder %v1073, 0.0
      %vm1106 = vcmp.ge.f32.partialorder %v1074, 0.0
      %vm1107 = vcmp.ge.f32.partialorder %v1075, 0.0
      %vm1108 = vcmp.ge.f32.partialorder %v1076, 0.0
      %vm1109 = vcmp.ge.f32.partialorder %v1077, 0.0
      %v1110 = vmul.f32 %v1046, 0.2
      %v1111 = vmul.f32 %v1047, 0.2
      %v1112 = vmul.f32 %v1048, 0.2
      %v1113 = vmul.f32 %v1049, 0.2
      %v1114 = vmul.f32 %v1050, 0.2
      %v1115 = vmul.f32 %v1051, 0.2
      %v1116 = vmul.f32 %v1052, 0.2
      %v1117 = vmul.f32 %v1053, 0.2
      %v1118 = vmul.f32 %v1054, 0.2
      %v1119 = vmul.f32 %v1055, 0.2
      %v1120 = vmul.f32 %v1056, 0.2
      %v1121 = vmul.f32 %v1057, 0.2
      %v1122 = vmul.f32 %v1058, 0.2
      %v1123 = vmul.f32 %v1059, 0.2
      %v1124 = vmul.f32 %v1060, 0.2
      %v1125 = vmul.f32 %v1061, 0.2
      %v1126 = vmul.f32 %v1062, 0.2
      %v1127 = vmul.f32 %v1063, 0.2
      %v1128 = vmul.f32 %v1064, 0.2
      %v1129 = vmul.f32 %v1065, 0.2
      %v1130 = vmul.f32 %v1066, 0.2
      %v1131 = vmul.f32 %v1067, 0.2
      %v1132 = vmul.f32 %v1068, 0.2
      %v1133 = vmul.f32 %v1069, 0.2
      %v1134 = vmul.f32 %v1070, 0.2
      %v1135 = vmul.f32 %v1071, 0.2
      %v1136 = vmul.f32 %v1072, 0.2
      %v1137 = vmul.f32 %v1073, 0.2
      %v1138 = vmul.f32 %v1074, 0.2
      %v1139 = vmul.f32 %v1075, 0.2
      %v1140 = vmul.f32 %v1076, 0.2
      %v1141 = vmul.f32 %v1077, 0.2
      %v1142 = vsel %vm1078, %v1046, %v1110
      %v1143 = vsel %vm1079, %v1047, %v1111
      %v1144 = vsel %vm1080, %v1048, %v1112
      %v1145 = vsel %vm1081, %v1049, %v1113
      %v1146 = vsel %vm1082, %v1050, %v1114
      %v1147 = vsel %vm1083, %v1051, %v1115
      %v1148 = vsel %vm1084, %v1052, %v1116
      %v1149 = vsel %vm1085, %v1053, %v1117
      %v1150 = vsel %vm1086, %v1054, %v1118
      %v1151 = vsel %vm1087, %v1055, %v1119
      %v1152 = vsel %vm1088, %v1056, %v1120
      %v1153 = vsel %vm1089, %v1057, %v1121
      %v1154 = vsel %vm1090, %v1058, %v1122
      %v1155 = vsel %vm1091, %v1059, %v1123
      %v1156 = vsel %vm1092, %v1060, %v1124
      %v1157 = vsel %vm1093, %v1061, %v1125
      %v1158 = vsel %vm1094, %v1062, %v1126
      %v1159 = vsel %vm1095, %v1063, %v1127
      %v1160 = vsel %vm1096, %v1064, %v1128
      %v1161 = vsel %vm1097, %v1065, %v1129
      %v1162 = vsel %vm1098, %v1066, %v1130
      %v1163 = vsel %vm1099, %v1067, %v1131
      %v1164 = vsel %vm1100, %v1068, %v1132
      %v1165 = vsel %vm1101, %v1069, %v1133
      %v1166 = vsel %vm1102, %v1070, %v1134
      %v1167 = vsel %vm1103, %v1071, %v1135
      %v1168 = vsel %vm1104, %v1072, %v1136
      %v1169 = vsel %vm1105, %v1073, %v1137
      %v1170 = vsel %vm1106, %v1074, %v1138
      %v1171 = vsel %vm1107, %v1075, %v1139
      %v1172 = vsel %vm1108, %v1076, %v1140
      %v1173 = vsel %vm1109, %v1077, %v1141
      %v1174 = vld [vmem:[%s2] sm:$0x1]
      %v1176 = vlaneseq
      %v1177 = vshrl.u32 %v1176, 7
      %v1178 = vsub.s32 0, %v1177
      %v1179 = vrot.slane %v1174, %v1178
      %v1181 = vmul.f32 %v1142, %v1179
      %v1182 = vmul.f32 %v1143, %v1179
      %v1183 = vmul.f32 %v1144, %v1179
      %v1184 = vmul.f32 %v1145, %v1179
      %v1185 = vmul.f32 %v1146, %v1179
      %v1186 = vmul.f32 %v1147, %v1179
      %v1187 = vmul.f32 %v1148, %v1179
      %v1188 = vmul.f32 %v1149, %v1179
      %v1189 = vmul.f32 %v1150, %v1179
      %v1190 = vmul.f32 %v1151, %v1179
      %v1191 = vmul.f32 %v1152, %v1179
      %v1192 = vmul.f32 %v1153, %v1179
      %v1193 = vmul.f32 %v1154, %v1179
      %v1194 = vmul.f32 %v1155, %v1179
      %v1195 = vmul.f32 %v1156, %v1179
      %v1196 = vmul.f32 %v1157, %v1179
      %v1197 = vmul.f32 %v1158, %v1179
      %v1198 = vmul.f32 %v1159, %v1179
      %v1199 = vmul.f32 %v1160, %v1179
      %v1200 = vmul.f32 %v1161, %v1179
      %v1201 = vmul.f32 %v1162, %v1179
      %v1202 = vmul.f32 %v1163, %v1179
      %v1203 = vmul.f32 %v1164, %v1179
      %v1204 = vmul.f32 %v1165, %v1179
      %v1205 = vmul.f32 %v1166, %v1179
      %v1206 = vmul.f32 %v1167, %v1179
      %v1207 = vmul.f32 %v1168, %v1179
      %v1208 = vmul.f32 %v1169, %v1179
      %v1209 = vmul.f32 %v1170, %v1179
      %v1210 = vmul.f32 %v1171, %v1179
      %v1211 = vmul.f32 %v1172, %v1179
      %v1212 = vmul.f32 %v1173, %v1179
      %v1213 = vld [vmem:[%s3] sm:$0x1]
      %v1215 = vlaneseq
      %v1216 = vshrl.u32 %v1215, 7
      %v1217 = vsub.s32 0, %v1216
      %v1218 = vrot.slane %v1213, %v1217
      %v1220 = vadd.f32 %v1181, %v1218
      %v1221 = vadd.f32 %v1182, %v1218
      %v1222 = vadd.f32 %v1183, %v1218
      %v1223 = vadd.f32 %v1184, %v1218
      %v1224 = vadd.f32 %v1185, %v1218
      %v1225 = vadd.f32 %v1186, %v1218
      %v1226 = vadd.f32 %v1187, %v1218
      %v1227 = vadd.f32 %v1188, %v1218
      %v1228 = vadd.f32 %v1189, %v1218
      %v1229 = vadd.f32 %v1190, %v1218
      %v1230 = vadd.f32 %v1191, %v1218
      %v1231 = vadd.f32 %v1192, %v1218
      %v1232 = vadd.f32 %v1193, %v1218
      %v1233 = vadd.f32 %v1194, %v1218
      %v1234 = vadd.f32 %v1195, %v1218
      %v1235 = vadd.f32 %v1196, %v1218
      %v1236 = vadd.f32 %v1197, %v1218
      %v1237 = vadd.f32 %v1198, %v1218
      %v1238 = vadd.f32 %v1199, %v1218
      %v1239 = vadd.f32 %v1200, %v1218
      %v1240 = vadd.f32 %v1201, %v1218
      %v1241 = vadd.f32 %v1202, %v1218
      %v1242 = vadd.f32 %v1203, %v1218
      %v1243 = vadd.f32 %v1204, %v1218
      %v1244 = vadd.f32 %v1205, %v1218
      %v1245 = vadd.f32 %v1206, %v1218
      %v1246 = vadd.f32 %v1207, %v1218
      %v1247 = vadd.f32 %v1208, %v1218
      %v1248 = vadd.f32 %v1209, %v1218
      %v1249 = vadd.f32 %v1210, %v1218
      %v1250 = vadd.f32 %v1211, %v1218
      %v1251 = vadd.f32 %v1212, %v1218
      %vm1252 = vcmask 31744
      %1253 = vst.msk [vmem:[%s197] sm:$0xff] %vm1252, %v1220
      %1254 = vst.msk [vmem:[%s197 + $0x8] sm:$0xff] %vm1252, %v1221
      %1255 = vst.msk [vmem:[%s197 + $0x10] sm:$0xff] %vm1252, %v1222
      %1256 = vst.msk [vmem:[%s197 + $0x18] sm:$0xff] %vm1252, %v1223
      %1257 = vst.msk [vmem:[%s197 + $0x20] sm:$0xff] %vm1252, %v1224
      %1258 = vst.msk [vmem:[%s197 + $0x28] sm:$0xff] %vm1252, %v1225
      %1259 = vst.msk [vmem:[%s197 + $0x30] sm:$0xff] %vm1252, %v1226
      %1260 = vst.msk [vmem:[%s197 + $0x38] sm:$0xff] %vm1252, %v1227
      %1261 = vst.msk [vmem:[%s197 + $0x40] sm:$0xff] %vm1252, %v1228
      %1262 = vst.msk [vmem:[%s197 + $0x48] sm:$0xff] %vm1252, %v1229
      %1263 = vst.msk [vmem:[%s197 + $0x50] sm:$0xff] %vm1252, %v1230
      %1264 = vst.msk [vmem:[%s197 + $0x58] sm:$0xff] %vm1252, %v1231
      %1265 = vst.msk [vmem:[%s197 + $0x60] sm:$0xff] %vm1252, %v1232
      %1266 = vst.msk [vmem:[%s197 + $0x68] sm:$0xff] %vm1252, %v1233
      %1267 = vst.msk [vmem:[%s197 + $0x70] sm:$0xff] %vm1252, %v1234
      %1268 = vst.msk [vmem:[%s197 + $0x78] sm:$0xff] %vm1252, %v1235
      %1269 = vst.msk [vmem:[%s197 + $0x80] sm:$0xff] %vm1252, %v1236
      %1270 = vst.msk [vmem:[%s197 + $0x88] sm:$0xff] %vm1252, %v1237
      %1271 = vst.msk [vmem:[%s197 + $0x90] sm:$0xff] %vm1252, %v1238
      %1272 = vst.msk [vmem:[%s197 + $0x98] sm:$0xff] %vm1252, %v1239
      %1273 = vst.msk [vmem:[%s197 + $0xa0] sm:$0xff] %vm1252, %v1240
      %1274 = vst.msk [vmem:[%s197 + $0xa8] sm:$0xff] %vm1252, %v1241
      %1275 = vst.msk [vmem:[%s197 + $0xb0] sm:$0xff] %vm1252, %v1242
      %1276 = vst.msk [vmem:[%s197 + $0xb8] sm:$0xff] %vm1252, %v1243
      %1277 = vst.msk [vmem:[%s197 + $0xc0] sm:$0xff] %vm1252, %v1244
      %1278 = vst.msk [vmem:[%s197 + $0xc8] sm:$0xff] %vm1252, %v1245
      %1279 = vst.msk [vmem:[%s197 + $0xd0] sm:$0xff] %vm1252, %v1246
      %1280 = vst.msk [vmem:[%s197 + $0xd8] sm:$0xff] %vm1252, %v1247
      %1281 = vst.msk [vmem:[%s197 + $0xe0] sm:$0xff] %vm1252, %v1248
      %1282 = vst.msk [vmem:[%s197 + $0xe8] sm:$0xff] %vm1252, %v1249
      %1283 = vst.msk [vmem:[%s197 + $0xf0] sm:$0xff] %vm1252, %v1250
      %1284 = vst.msk [vmem:[%s197 + $0xf8] sm:$0xff] %vm1252, %v1251
      %p1285 = scmp.lt.s32.totalorder %s15, 1
      %s1286 = scalar_select %p1285, %s15, 1
      %s1287 = smul.addr %s1286, 32
      %s1288 = smul.addr %s1287, 8
      %s1289 = scalar_lea.vmem %s4, %s1288
      // Predicated region
      $region37: #{upsample_forward.5} parent=35 // pred_check
        %p1290 = pneg %p122
      $region38: #{upsample_forward.5} parent=35 // pred_check_branch
        %1292 = sbr.rel (%p1290) target = $region40
      $region39: #{upsample_forward.5} parent=35 // pred_region
        _
      $region40: #{upsample_forward.5} parent=35 // pred_fallthru
        _
    $region36: #{upsample_forward.5} parent=5 // pred_fallthru
      _
    %p1293 = scmp.le.s32.totalorder 2, %s10
    // Predicated region
    $region41: #{upsample_forward.5} parent=5 // pred_check
      %p1294 = pneg %p1293
    $region42: #{upsample_forward.5} parent=5 // pred_check_branch
      %1296 = sbr.rel (%p1294) target = $region44
    $region43: #{upsample_forward.5} parent=5 // pred_region
      %s1297 = ssub.s32 %s10, 2
      // Predicated region
      $region45: #{upsample_forward.5} parent=43 // pred_check
        %p1298 = pneg %p128
      $region46: #{upsample_forward.5} parent=43 // pred_check_branch
        %1300 = sbr.rel (%p1298) target = $region48
      $region47: #{upsample_forward.5} parent=43 // pred_region
        %p1301 = scmp.lt.s32.totalorder %s16, 1
        %s1302 = scalar_select %p1301, %s16, 1
        %s1303 = smul.addr %s1302, 32
        %s1304 = smul.addr %s1303, 8
        %s1305 = scalar_lea.vmem %s4, %s1304
      $region48: #{upsample_forward.5} parent=43 // pred_fallthru
        _
    $region44: #{upsample_forward.5} parent=5 // pred_fallthru
      _
  $region6: #{upsample_forward.5} parent=0 // loop_footer
    %s14 = sadd.s32 1, %s10
  $region7: #{upsample_forward.5} parent=0 // loop_footer_branch
    %9 = sbr.rel target = $region3
  $region8: #{upsample_forward.5} parent=0 // loop_exit
    _

// kernel: upsample_forward.4
$region0: #{upsample_forward.4}
  #allocation0 [shape = 'u32[]', space=smem, size = 0x4, offset = 0x4, fixed_abs, tag = 'smem constant byte address 0x4 - core index']
  #allocation1 [shape = 'u32[144,128]{1,0:T(1,128)}', space=vmem, size = 0x12000, scoped, tag = 'internal scratch']
  %s0 = inlined_call_operand.vmem [shape: bf16[2,288,12], index: 0, kind: input, shape index: {}]
  %s1 = inlined_call_operand.vmem [shape: bf16[2,288,12], index: 1, kind: input, shape index: {}]
  %s2 = inlined_call_operand.vmem [shape: bf16[3,12,4], index: 2, kind: input, shape index: {}]
  %s3 = inlined_call_operand.vmem [shape: bf16[3,12,4], index: 3, kind: input, shape index: {}]
  %s4 = inlined_call_operand.vmem [shape: f32[1,4], index: 4, kind: input, shape index: {}]
  %s5 = inlined_call_operand.vmem [shape: f32[1,4], index: 5, kind: input, shape index: {}]
  %s6 = inlined_call_operand.vmem [shape: bf16[2,256,4], index: 6, kind: output, shape index: {}]
  %s7 = sld [smem:[#allocation0]]
  $region57: #{upsample_forward.4} parent=0
    _
  %s9 = ssub.s32 1, %s7
  %s10 = scalar_select 0, %s9, %s7
  loop: start=0, step=1, limit=4
  $region2: #{upsample_forward.4} parent=0 // loop_pre_header
    _
  $region3: #{upsample_forward.4} parent=0 // loop_header
    %s12 = sphi 0, %s16
    %p13 = scmp.ge.s32.totalorder %s12, 4
    %s22 = sphi 0, %s24
    %s25 = sphi 0, %s22
    %s26 = sphi 0, %s25
    %s42 = sphi 0, %s26
    %s48 = sphi 0, %s50
    %s51 = sphi 0, %s48
    %s52 = sphi 0, %s51
    %s68 = sphi 0, %s52
    %s72 = sphi 0, %s72
    %s74 = sphi 0, %s72
    %s75 = sphi 0, %s74
    %s89 = sphi 0, %s75
    %s93 = sphi 0, %s93
    %s95 = sphi 0, %s93
    %s96 = sphi 0, %s95
    %s110 = sphi 0, %s96
    %s114 = sphi 0, %s114
    %s116 = sphi 0, %s114
    %s117 = sphi 0, %s116
    %s131 = sphi 0, %s117
    %s135 = sphi 0, %s135
    %s137 = sphi 0, %s135
    %s138 = sphi 0, %s137
    %s152 = sphi 0, %s138
    %s158 = sphi 0, %s160
    %s161 = sphi 0, %s158
    %s162 = sphi 0, %s161
    %s178 = sphi 0, %s162
  $region4: #{upsample_forward.4} parent=0 // loop_header_branch
    %15 = sbr.rel (%p13) target = $region8
  $region5: #{upsample_forward.4} parent=0 // loop_body
    %s17 = ssub.s32 %s12, 1
    %s18 = ssub.s32 %s12, 2
    %s19 = sadd.s32 %s12, 1
    %s20 = ssub.s32 %s12, %s19
    %p21 = scmp.eq.s32.totalorder %s20, 0
    %s23 = sadd.s32 %s22, 1
    %s24 = scalar_select %p21, %s22, %s23
    %p27 = pneg %p21
    %p28 = scmp.eq.s32.totalorder %s12, 1
    %p29 = por %p27, %p28
    %p30 = scmp.ne.s32.totalorder %s22, %s25
    %p31 = scmp.eq.s32.totalorder %s12, 0
    %p32 = por %p30, %p31
    %p33 = scmp.ne.s32.totalorder %s22, %s25
    %p34 = scmp.eq.s32.totalorder %s17, 1
    %p35 = por %p33, %p34
    %p36 = scmp.ne.s32.totalorder %s25, %s26
    %p37 = scmp.eq.s32.totalorder %s17, 0
    %p38 = por %p36, %p37
    %p39 = scmp.ne.s32.totalorder %s25, %s26
    %p40 = scmp.eq.s32.totalorder %s18, 1
    %p41 = por %p39, %p40
    %p43 = scmp.ne.s32.totalorder %s26, %s42
    %p44 = scmp.eq.s32.totalorder %s18, 0
    %p45 = por %p43, %p44
    %s46 = ssub.s32 %s12, %s19
    %p47 = scmp.eq.s32.totalorder %s46, 0
    %s49 = sadd.s32 %s48, 1
    %s50 = scalar_select %p47, %s48, %s49
    %p53 = pneg %p47
    %p54 = scmp.eq.s32.totalorder %s12, 1
    %p55 = por %p53, %p54
    %p56 = scmp.ne.s32.totalorder %s48, %s51
    %p57 = scmp.eq.s32.totalorder %s12, 0
    %p58 = por %p56, %p57
    %p59 = scmp.ne.s32.totalorder %s48, %s51
    %p60 = scmp.eq.s32.totalorder %s17, 1
    %p61 = por %p59, %p60
    %p62 = scmp.ne.s32.totalorder %s51, %s52
    %p63 = scmp.eq.s32.totalorder %s17, 0
    %p64 = por %p62, %p63
    %p65 = scmp.ne.s32.totalorder %s51, %s52
    %p66 = scmp.eq.s32.totalorder %s18, 1
    %p67 = por %p65, %p66
    %p69 = scmp.ne.s32.totalorder %s52, %s68
    %p70 = scmp.eq.s32.totalorder %s18, 0
    %p71 = por %p69, %p70
    %s73 = sadd.s32 %s72, 1
    %p76 = scmp.eq.s32.totalorder %s12, 1
    %p77 = scmp.ne.s32.totalorder %s72, %s74
    %p78 = scmp.eq.s32.totalorder %s12, 0
    %p79 = por %p77, %p78
    %p80 = scmp.ne.s32.totalorder %s72, %s74
    %p81 = scmp.eq.s32.totalorder %s17, 1
    %p82 = por %p80, %p81
    %p83 = scmp.ne.s32.totalorder %s74, %s75
    %p84 = scmp.eq.s32.totalorder %s17, 0
    %p85 = por %p83, %p84
    %p86 = scmp.ne.s32.totalorder %s74, %s75
    %p87 = scmp.eq.s32.totalorder %s18, 1
    %p88 = por %p86, %p87
    %p90 = scmp.ne.s32.totalorder %s75, %s89
    %p91 = scmp.eq.s32.totalorder %s18, 0
    %p92 = por %p90, %p91
    %s94 = sadd.s32 %s93, 1
    %p97 = scmp.eq.s32.totalorder %s12, 1
    %p98 = scmp.ne.s32.totalorder %s93, %s95
    %p99 = scmp.eq.s32.totalorder %s12, 0
    %p100 = por %p98, %p99
    %p101 = scmp.ne.s32.totalorder %s93, %s95
    %p102 = scmp.eq.s32.totalorder %s17, 1
    %p103 = por %p101, %p102
    %p104 = scmp.ne.s32.totalorder %s95, %s96
    %p105 = scmp.eq.s32.totalorder %s17, 0
    %p106 = por %p104, %p105
    %p107 = scmp.ne.s32.totalorder %s95, %s96
    %p108 = scmp.eq.s32.totalorder %s18, 1
    %p109 = por %p107, %p108
    %p111 = scmp.ne.s32.totalorder %s96, %s110
    %p112 = scmp.eq.s32.totalorder %s18, 0
    %p113 = por %p111, %p112
    %s115 = sadd.s32 %s114, 1
    %p118 = scmp.eq.s32.totalorder %s12, 1
    %p119 = scmp.ne.s32.totalorder %s114, %s116
    %p120 = scmp.eq.s32.totalorder %s12, 0
    %p121 = por %p119, %p120
    %p122 = scmp.ne.s32.totalorder %s114, %s116
    %p123 = scmp.eq.s32.totalorder %s17, 1
    %p124 = por %p122, %p123
    %p125 = scmp.ne.s32.totalorder %s116, %s117
    %p126 = scmp.eq.s32.totalorder %s17, 0
    %p127 = por %p125, %p126
    %p128 = scmp.ne.s32.totalorder %s116, %s117
    %p129 = scmp.eq.s32.totalorder %s18, 1
    %p130 = por %p128, %p129
    %p132 = scmp.ne.s32.totalorder %s117, %s131
    %p133 = scmp.eq.s32.totalorder %s18, 0
    %p134 = por %p132, %p133
    %s136 = sadd.s32 %s135, 1
    %p139 = scmp.eq.s32.totalorder %s12, 1
    %p140 = scmp.ne.s32.totalorder %s135, %s137
    %p141 = scmp.eq.s32.totalorder %s12, 0
    %p142 = por %p140, %p141
    %p143 = scmp.ne.s32.totalorder %s135, %s137
    %p144 = scmp.eq.s32.totalorder %s17, 1
    %p145 = por %p143, %p144
    %p146 = scmp.ne.s32.totalorder %s137, %s138
    %p147 = scmp.eq.s32.totalorder %s17, 0
    %p148 = por %p146, %p147
    %p149 = scmp.ne.s32.totalorder %s137, %s138
    %p150 = scmp.eq.s32.totalorder %s18, 1
    %p151 = por %p149, %p150
    %p153 = scmp.ne.s32.totalorder %s138, %s152
    %p154 = scmp.eq.s32.totalorder %s18, 0
    %p155 = por %p153, %p154
    %s156 = ssub.s32 %s12, %s19
    %p157 = scmp.eq.s32.totalorder %s156, 0
    %s159 = sadd.s32 %s158, 1
    %s160 = scalar_select %p157, %s158, %s159
    %p163 = pneg %p157
    %p164 = scmp.eq.s32.totalorder %s12, 1
    %p165 = por %p163, %p164
    %p166 = scmp.ne.s32.totalorder %s158, %s161
    %p167 = scmp.eq.s32.totalorder %s12, 0
    %p168 = por %p166, %p167
    %p169 = scmp.ne.s32.totalorder %s158, %s161
    %p170 = scmp.eq.s32.totalorder %s17, 1
    %p171 = por %p169, %p170
    %p172 = scmp.ne.s32.totalorder %s161, %s162
    %p173 = scmp.eq.s32.totalorder %s17, 0
    %p174 = por %p172, %p173
    %p175 = scmp.ne.s32.totalorder %s161, %s162
    %p176 = scmp.eq.s32.totalorder %s18, 1
    %p177 = por %p175, %p176
    %p179 = scmp.ne.s32.totalorder %s162, %s178
    %p180 = scmp.eq.s32.totalorder %s18, 0
    %p181 = por %p179, %p180
    %p182 = scmp.le.s32.totalorder 1, %s12
    %p183 = scmp.lt.s32.totalorder %s12, 3
    %p184 = pnand %p182, %p183
    %p185 = pneg %p184
    // Predicated region
    $region9: #{upsample_forward.4} parent=5 // pred_check
      _
    $region10: #{upsample_forward.4} parent=5 // pred_check_branch
      %187 = sbr.rel (%p184) target = $region12
    $region11: #{upsample_forward.4} parent=5 // pred_region
      %s188 = ssub.s32 %s12, 1
      // Predicated region
      $region13: #{upsample_forward.4} parent=11 // pred_check
        %p189 = pneg %p85
      $region14: #{upsample_forward.4} parent=11 // pred_check_branch
        %191 = sbr.rel (%p189) target = $region16
      $region15: #{upsample_forward.4} parent=11 // pred_region
        _
      $region16: #{upsample_forward.4} parent=11 // pred_fallthru
        _
      // Predicated region
      $region17: #{upsample_forward.4} parent=11 // pred_check
        %p192 = pneg %p106
      $region18: #{upsample_forward.4} parent=11 // pred_check_branch
        %194 = sbr.rel (%p192) target = $region20
      $region19: #{upsample_forward.4} parent=11 // pred_region
        _
      $region20: #{upsample_forward.4} parent=11 // pred_fallthru
        _
      // Predicated region
      $region21: #{upsample_forward.4} parent=11 // pred_check
        %p195 = pneg %p127
      $region22: #{upsample_forward.4} parent=11 // pred_check_branch
        %197 = sbr.rel (%p195) target = $region24
      $region23: #{upsample_forward.4} parent=11 // pred_region
        _
      $region24: #{upsample_forward.4} parent=11 // pred_fallthru
        _
      // Predicated region
      $region25: #{upsample_forward.4} parent=11 // pred_check
        %p198 = pneg %p148
      $region26: #{upsample_forward.4} parent=11 // pred_check_branch
        %200 = sbr.rel (%p198) target = $region28
      $region27: #{upsample_forward.4} parent=11 // pred_region
        _
      $region28: #{upsample_forward.4} parent=11 // pred_fallthru
        _
    $region12: #{upsample_forward.4} parent=5 // pred_fallthru
      _
    %p201 = scmp.lt.s32.totalorder %s12, 2
    // Predicated region
    $region29: #{upsample_forward.4} parent=5 // pred_check
      %p202 = pneg %p201
    $region30: #{upsample_forward.4} parent=5 // pred_check_branch
      %204 = sbr.rel (%p202) target = $region32
    $region31: #{upsample_forward.4} parent=5 // pred_region
      // Predicated region
      $region33: #{upsample_forward.4} parent=31 // pred_check
        %p205 = pneg %p32
      $region34: #{upsample_forward.4} parent=31 // pred_check_branch
        %207 = sbr.rel (%p205) target = $region36
      $region35: #{upsample_forward.4} parent=31 // pred_region
        %p208 = scmp.lt.s32.totalorder %s12, 1
        %s209 = scalar_select %p208, %s12, 1
        %s210 = smul.addr %s209, 36
        %s211 = smul.addr %s210, 4
        %s212 = scalar_lea.vmem %s0, %s211
      $region36: #{upsample_forward.4} parent=31 // pred_fallthru
        _
      // Predicated region
      $region37: #{upsample_forward.4} parent=31 // pred_check
        %p213 = pneg %p58
      $region38: #{upsample_forward.4} parent=31 // pred_check_branch
        %215 = sbr.rel (%p213) target = $region40
      $region39: #{upsample_forward.4} parent=31 // pred_region
        %p216 = scmp.lt.s32.totalorder %s12, 1
        %s217 = scalar_select %p216, %s12, 1
        %s218 = smul.addr %s217, 36
        %s219 = smul.addr %s218, 4
        %s220 = scalar_lea.vmem %s1, %s219
      $region40: #{upsample_forward.4} parent=31 // pred_fallthru
        _
    $region32: #{upsample_forward.4} parent=5 // pred_fallthru
      _
    %p221 = scmp.le.s32.totalorder 1, %s12
    %p222 = scmp.lt.s32.totalorder %s12, 3
    %p223 = pnand %p221, %p222
    %p224 = pneg %p223
    // Predicated region
    $region41: #{upsample_forward.4} parent=5 // pred_check
      _
    $region42: #{upsample_forward.4} parent=5 // pred_check_branch
      %226 = sbr.rel (%p223) target = $region44
    $region43: #{upsample_forward.4} parent=5 // pred_region
      %s227 = ssub.s32 %s12, 1
      %p228 = scmp.lt.s32.totalorder %s17, 1
      %s229 = scalar_select %p228, %s17, 1
      %s230 = smul.addr %s229, 36
      %s231 = smul.addr %s230, 4
      %s232 = scalar_lea.vmem %s0, %s231
      %p233 = pneg %p38
      %p234 = pneg %p35
      %p235 = scmp.lt.s32.totalorder %s17, 1
      %s236 = scalar_select %p235, %s17, 1
      %s237 = smul.addr %s236, 36
      %s238 = smul.addr %s237, 4
      %s239 = scalar_lea.vmem %s1, %s238
      %p240 = pneg %p64
      %p241 = pneg %p61
      %p242 = pneg %p85
      %p243 = pneg %p82
      %p244 = pneg %p106
      %p245 = pneg %p103
      %p246 = pneg %p127
      %p247 = pneg %p124
      %p248 = pneg %p148
      %p249 = pneg %p145
      %p250 = pneg %p174
      %p251 = pneg %p171
      %p252 = scmp.lt.s32.totalorder %s17, 1
      %s253 = scalar_select %p252, %s17, 1
      %s254 = smul.addr %s253, 32
      %s255 = smul.addr %s254, 4
      %s256 = scalar_lea.vmem %s6, %s255
      %p257 = scmp.lt.s32.totalorder %s17, 1
      %s258 = scalar_select %p257, %s17, 1
      %s259 = smul.addr %s258, 36
      %s260 = smul.addr %s259, 4
      %s261 = scalar_lea.vmem %s0, %s260
      %p262 = scmp.lt.s32.totalorder %s17, 1
      %s263 = scalar_select %p262, %s17, 1
      %s264 = smul.addr %s263, 36
      %s265 = smul.addr %s264, 4
      %s266 = scalar_lea.vmem %s1, %s265
      %p267 = scmp.lt.s32.totalorder %s17, 1
      %s268 = scalar_select %p267, %s17, 1
      %s269 = smul.addr %s268, 32
      %s270 = smul.addr %s269, 4
      %s271 = scalar_lea.vmem %s6, %s270
      %v273 = vld [vmem:[%s261] sm:$0xf]
      %v274 = vld [vmem:[%s261 + $0x4] sm:$0xf]
      %v275 = vld [vmem:[%s261 + $0x8] sm:$0xf]
      %v276 = vld [vmem:[%s261 + $0xc] sm:$0xf]
      %v277 = vld [vmem:[%s261 + $0x10] sm:$0xf]
      %v278 = vld [vmem:[%s261 + $0x14] sm:$0xf]
      %v279 = vld [vmem:[%s261 + $0x18] sm:$0xf]
      %v280 = vld [vmem:[%s261 + $0x1c] sm:$0xf]
      %v281 = vld [vmem:[%s261 + $0x20] sm:$0xf]
      %v282 = vld [vmem:[%s261 + $0x24] sm:$0xf]
      %v283 = vld [vmem:[%s261 + $0x28] sm:$0xf]
      %v284 = vld [vmem:[%s261 + $0x2c] sm:$0xf]
      %v285 = vld [vmem:[%s261 + $0x30] sm:$0xf]
      %v286 = vld [vmem:[%s261 + $0x34] sm:$0xf]
      %v287 = vld [vmem:[%s261 + $0x38] sm:$0xf]
      %v288 = vld [vmem:[%s261 + $0x3c] sm:$0xf]
      %v289 = vld [vmem:[%s261 + $0x40] sm:$0xf]
      %v290 = vld [vmem:[%s261 + $0x44] sm:$0xf]
      %v291 = vld [vmem:[%s261 + $0x48] sm:$0xf]
      %v292 = vld [vmem:[%s261 + $0x4c] sm:$0xf]
      %v293 = vld [vmem:[%s261 + $0x50] sm:$0xf]
      %v294 = vld [vmem:[%s261 + $0x54] sm:$0xf]
      %v295 = vld [vmem:[%s261 + $0x58] sm:$0xf]
      %v296 = vld [vmem:[%s261 + $0x5c] sm:$0xf]
      %v297 = vld [vmem:[%s261 + $0x60] sm:$0xf]
      %v298 = vld [vmem:[%s261 + $0x64] sm:$0xf]
      %v299 = vld [vmem:[%s261 + $0x68] sm:$0xf]
      %v300 = vld [vmem:[%s261 + $0x6c] sm:$0xf]
      %v301 = vld [vmem:[%s261 + $0x70] sm:$0xf]
      %v302 = vld [vmem:[%s261 + $0x74] sm:$0xf]
      %v303 = vld [vmem:[%s261 + $0x78] sm:$0xf]
      %v304 = vld [vmem:[%s261 + $0x7c] sm:$0xf]
      %v305 = vld [vmem:[%s2] sm:$0xf]
      %v306 = vld [vmem:[%s2 + $0x4] sm:$0x3]
      %v307 = vld [vmem:[%s261 + $0x80] sm:$0xf]
      %v308 = vld [vmem:[%s261 + $0x84] sm:$0xf]
      %s309 = scalar_lea.vmem %s2, 8
      %v310 = vld [vmem:[%s309] sm:$0xf]
      %v311 = vld [vmem:[%s309 + $0x4] sm:$0x3]
      %v344 = vunpack.c.l.b16 %v275
      %v345 = vunpack.c.l.b16 %v276
      %v346 = vunpack.c.l.b16 %v277
      %v347 = vunpack.c.l.b16 %v278
      %v348 = vunpack.c.l.b16 %v279
      %v349 = vunpack.c.l.b16 %v280
      %v350 = vunpack.c.l.b16 %v281
      %v351 = vunpack.c.l.b16 %v282
      %v352 = vunpack.c.l.b16 %v283
      %v353 = vunpack.c.l.b16 %v284
      %v354 = vunpack.c.l.b16 %v285
      %v355 = vunpack.c.l.b16 %v286
      %v356 = vunpack.c.l.b16 %v287
      %v357 = vunpack.c.l.b16 %v288
      %v358 = vunpack.c.l.b16 %v289
      %v359 = vunpack.c.l.b16 %v290
      %v360 = vunpack.c.l.b16 %v291
      %v361 = vunpack.c.l.b16 %v292
      %v362 = vunpack.c.l.b16 %v293
      %v363 = vunpack.c.l.b16 %v294
      %v364 = vunpack.c.l.b16 %v295
      %v365 = vunpack.c.l.b16 %v296
      %v366 = vunpack.c.l.b16 %v297
      %v367 = vunpack.c.l.b16 %v298
      %v368 = vunpack.c.l.b16 %v299
      %v369 = vunpack.c.l.b16 %v300
      %v370 = vunpack.c.l.b16 %v301
      %v371 = vunpack.c.l.b16 %v302
      %v372 = vunpack.c.l.b16 %v303
      %v373 = vunpack.c.l.b16 %v304
      %v374 = vunpack.c.l.b16 %v307
      %v375 = vunpack.c.l.b16 %v308
      %v376 = vpack.c.b16 %v345, %v344
      %v377 = vpack.c.b16 %v347, %v346
      %v378 = vpack.c.b16 %v349, %v348
      %v379 = vpack.c.b16 %v351, %v350
      %v380 = vpack.c.b16 %v353, %v352
      %v381 = vpack.c.b16 %v355, %v354
      %v382 = vpack.c.b16 %v357, %v356
      %v383 = vpack.c.b16 %v359, %v358
      %v384 = vpack.c.b16 %v361, %v360
      %v385 = vpack.c.b16 %v363, %v362
      %v386 = vpack.c.b16 %v365, %v364
      %v387 = vpack.c.b16 %v367, %v366
      %v388 = vpack.c.b16 %v369, %v368
      %v389 = vpack.c.b16 %v371, %v370
      %v390 = vpack.c.b16 %v373, %v372
      %v391 = vpack.c.b16 %v375, %v374
      %v394 = vunpack.c.l.b16 %v310
      %v395 = vunpack.c.l.b16 %v311
      %v396 = vpack.c.b16 %v395, %v394
      %vm397 = vcmask 97280
      %v399 = vsel %vm397, %v376, 0
      %v402 = vsel %vm397, %v377, 0
      %v405 = vsel %vm397, %v378, 0
      %v408 = vsel %vm397, %v379, 0
      %v411 = vsel %vm397, %v380, 0
      %v414 = vsel %vm397, %v381, 0
      %v417 = vsel %vm397, %v382, 0
      %v420 = vsel %vm397, %v383, 0
      %v423 = vsel %vm397, %v384, 0
      %v426 = vsel %vm397, %v385, 0
      %v429 = vsel %vm397, %v386, 0
      %v432 = vsel %vm397, %v387, 0
      %v435 = vsel %vm397, %v388, 0
      %v438 = vsel %vm397, %v389, 0
      %v441 = vsel %vm397, %v390, 0
      %v444 = vsel %vm397, %v391, 0
      %vm446 = vcmask 1045504
      %v448 = vsel %vm446, %v396, 0
      %450 = vmatprep.subr.bf16.mxu0 0
      %451 = vmatpush1.bf16.msra.mxu0 %v448
      %452 = vmatprep.subr.bf16.mxu0 0
      %453 = vmatpush1.bf16.msra.mxu0 0
      %454 = vmatprep.subr.bf16.mxu0 0
      %455 = vmatpush1.bf16.msra.mxu0 0
      %456 = vmatprep.subr.bf16.mxu0 0
      %457 = vmatpush1.bf16.msra.mxu0 0
      %458 = vmatprep.subr.bf16.mxu0 0
      %459 = vmatpush1.bf16.msra.mxu0 0
      %460 = vmatprep.subr.bf16.mxu0 0
      %461 = vmatpush1.bf16.msra.mxu0 0
      %462 = vmatprep.subr.bf16.mxu0 0
      %463 = vmatpush1.bf16.msra.mxu0 0
      %464 = vmatprep.subr.bf16.mxu0 0
      %465 = vmatpush1.bf16.msra.mxu0 0
      %466 = vmatprep.subr.bf16.mxu0 0
      %467 = vmatpush1.bf16.msra.mxu0 0
      %468 = vmatprep.subr.bf16.mxu0 0
      %469 = vmatpush1.bf16.msra.mxu0 0
      %470 = vmatprep.subr.bf16.mxu0 0
      %471 = vmatpush1.bf16.msra.mxu0 0
      %472 = vmatprep.subr.bf16.mxu0 0
      %473 = vmatpush1.bf16.msra.mxu0 0
      %474 = vmatprep.subr.bf16.mxu0 0
      %475 = vmatpush1.bf16.msra.mxu0 0
      %476 = vmatprep.subr.bf16.mxu0 0
      %477 = vmatpush1.bf16.msra.mxu0 0
      %478 = vmatprep.subr.bf16.mxu0 0
      %479 = vmatpush1.bf16.msra.mxu0 0
      %480 = vmatprep.subr.bf16.mxu0 0
      %481 = vmatpush1.bf16.msra.mxu0 0
      %482 = vmatprep.mubr.bf16.mxu0 0
      %483 = vmatmul.mubr.bf16.gmra.mrb[0].mxu0 %v399
      %v484 = vpop.f32.mrb[0].mxu0
      %v485 = vadd.f32 0.0, %v484
      %v486 = vpop.f32.mrb[0].mxu0
      %v487 = vpop.f32.mrb[0].mxu0
      %v488 = vadd.f32 0.0, %v487
      %v489 = vpop.f32.mrb[0].mxu0
      %490 = vmatprep.mubr.bf16.mxu0 0
      %491 = vmatmul.mubr.bf16.gmra.mrb[0].mxu0 %v402
      %v492 = vpop.f32.mrb[0].mxu0
      %v493 = vadd.f32 0.0, %v492
      %v494 = vpop.f32.mrb[0].mxu0
      %v495 = vpop.f32.mrb[0].mxu0
      %v496 = vadd.f32 0.0, %v495
      %v497 = vpop.f32.mrb[0].mxu0
      %498 = vmatprep.mubr.bf16.mxu0 0
      %499 = vmatmul.mubr.bf16.gmra.mrb[0].mxu0 %v405
      %v500 = vpop.f32.mrb[0].mxu0
      %v501 = vadd.f32 0.0, %v500
      %v502 = vpop.f32.mrb[0].mxu0
      %v503 = vpop.f32.mrb[0].mxu0
      %v504 = vadd.f32 0.0, %v503
      %v505 = vpop.f32.mrb[0].mxu0
      %506 = vmatprep.mubr.bf16.mxu0 0
      %507 = vmatmul.mubr.bf16.gmra.mrb[0].mxu0 %v408
      %v508 = vpop.f32.mrb[0].mxu0
      %v509 = vadd.f32 0.0, %v508
      %v510 = vpop.f32.mrb[0].mxu0
      %v511 = vpop.f32.mrb[0].mxu0
      %v512 = vadd.f32 0.0, %v511
      %v513 = vpop.f32.mrb[0].mxu0
      %514 = vmatprep.mubr.bf16.mxu0 0
      %515 = vmatmul.mubr.bf16.gmra.mrb[0].mxu0 %v411
      %v516 = vpop.f32.mrb[0].mxu0
      %v517 = vadd.f32 0.0, %v516
      %v518 = vpop.f32.mrb[0].mxu0
      %v519 = vpop.f32.mrb[0].mxu0
      %v520 = vadd.f32 0.0, %v519
      %v521 = vpop.f32.mrb[0].mxu0
      %522 = vmatprep.mubr.bf16.mxu0 0
      %523 = vmatmul.mubr.bf16.gmra.mrb[0].mxu0 %v414
      %v524 = vpop.f32.mrb[0].mxu0
      %v525 = vadd.f32 0.0, %v524
      %v526 = vpop.f32.mrb[0].mxu0
      %v527 = vpop.f32.mrb[0].mxu0
      %v528 = vadd.f32 0.0, %v527
      %v529 = vpop.f32.mrb[0].mxu0
      %530 = vmatprep.mubr.bf16.mxu0 0
      %531 = vmatmul.mubr.bf16.gmra.mrb[0].mxu0 %v417
      %v532 = vpop.f32.mrb[0].mxu0
      %v533 = vadd.f32 0.0, %v532
      %v534 = vpop.f32.mrb[0].mxu0
      %v535 = vpop.f32.mrb[0].mxu0
      %v536 = vadd.f32 0.0, %v535
      %v537 = vpop.f32.mrb[0].mxu0
      %538 = vmatprep.mubr.bf16.mxu0 0
      %539 = vmatmul.mubr.bf16.gmra.mrb[0].mxu0 %v420
      %v540 = vpop.f32.mrb[0].mxu0
      %v541 = vadd.f32 0.0, %v540
      %v542 = vpop.f32.mrb[0].mxu0
      %v543 = vpop.f32.mrb[0].mxu0
      %v544 = vadd.f32 0.0, %v543
      %v545 = vpop.f32.mrb[0].mxu0
      %546 = vmatprep.mubr.bf16.mxu0 0
      %547 = vmatmul.mubr.bf16.gmra.mrb[0].mxu0 %v423
      %v548 = vpop.f32.mrb[0].mxu0
      %v549 = vadd.f32 0.0, %v548
      %v550 = vpop.f32.mrb[0].mxu0
      %v551 = vpop.f32.mrb[0].mxu0
      %v552 = vadd.f32 0.0, %v551
      %v553 = vpop.f32.mrb[0].mxu0
      %554 = vmatprep.mubr.bf16.mxu0 0
      %555 = vmatmul.mubr.bf16.gmra.mrb[0].mxu0 %v426
      %v556 = vpop.f32.mrb[0].mxu0
      %v557 = vadd.f32 0.0, %v556
      %v558 = vpop.f32.mrb[0].mxu0
      %v559 = vpop.f32.mrb[0].mxu0
      %v560 = vadd.f32 0.0, %v559
      %v561 = vpop.f32.mrb[0].mxu0
      %562 = vmatprep.mubr.bf16.mxu0 0
      %563 = vmatmul.mubr.bf16.gmra.mrb[0].mxu0 %v429
      %v564 = vpop.f32.mrb[0].mxu0
      %v565 = vadd.f32 0.0, %v564
      %v566 = vpop.f32.mrb[0].mxu0
      %v567 = vpop.f32.mrb[0].mxu0
      %v568 = vadd.f32 0.0, %v567
      %v569 = vpop.f32.mrb[0].mxu0
      %570 = vmatprep.mubr.bf16.mxu0 0
      %571 = vmatmul.mubr.bf16.gmra.mrb[0].mxu0 %v432
      %v572 = vpop.f32.mrb[0].mxu0
      %v573 = vadd.f32 0.0, %v572
      %v574 = vpop.f32.mrb[0].mxu0
      %v575 = vpop.f32.mrb[0].mxu0
      %v576 = vadd.f32 0.0, %v575
      %v577 = vpop.f32.mrb[0].mxu0
      %578 = vmatprep.mubr.bf16.mxu0 0
      %579 = vmatmul.mubr.bf16.gmra.mrb[0].mxu0 %v435
      %v580 = vpop.f32.mrb[0].mxu0
      %v581 = vadd.f32 0.0, %v580
      %v582 = vpop.f32.mrb[0].mxu0
      %v583 = vpop.f32.mrb[0].mxu0
      %v584 = vadd.f32 0.0, %v583
      %v585 = vpop.f32.mrb[0].mxu0
      %586 = vmatprep.mubr.bf16.mxu0 0
      %587 = vmatmul.mubr.bf16.gmra.mrb[0].mxu0 %v438
      %v588 = vpop.f32.mrb[0].mxu0
      %v589 = vadd.f32 0.0, %v588
      %v590 = vpop.f32.mrb[0].mxu0
      %v591 = vpop.f32.mrb[0].mxu0
      %v592 = vadd.f32 0.0, %v591
      %v593 = vpop.f32.mrb[0].mxu0
      %594 = vmatprep.mubr.bf16.mxu0 0
      %595 = vmatmul.mubr.bf16.gmra.mrb[0].mxu0 %v441
      %v596 = vpop.f32.mrb[0].mxu0
      %v597 = vadd.f32 0.0, %v596
      %v598 = vpop.f32.mrb[0].mxu0
      %v599 = vpop.f32.mrb[0].mxu0
      %v600 = vadd.f32 0.0, %v599
      %v601 = vpop.f32.mrb[0].mxu0
      %602 = vmatprep.mubr.bf16.mxu0 0
      %603 = vmatmul.mubr.bf16.gmra.mrb[0].mxu0 %v444
      %v604 = vpop.f32.mrb[0].mxu0
      %v605 = vadd.f32 0.0, %v604
      %v606 = vpop.f32.mrb[0].mxu0
      %v607 = vpop.f32.mrb[0].mxu0
      %v608 = vadd.f32 0.0, %v607
      %v609 = vpop.f32.mrb[0].mxu0
      %610 = vdwg.mxu0
      %v613 = vunpack.c.l.b16 %v273
      %v614 = vunpack.c.l.b16 %v274
      %v615 = vpack.c.b16 %v614, %v613
      %v618 = vunpack.c.l.b16 %v305
      %v619 = vunpack.c.l.b16 %v306
      %v620 = vpack.c.b16 %v619, %v618
      %v622 = vsel %vm397, %v615, 0
      %v625 = vsel %vm446, %v620, 0
      %627 = vmatprep.subr.bf16.mxu0 0
      %628 = vmatpush1.bf16.msra.mxu0 %v625
      %629 = vmatprep.subr.bf16.mxu0 0
      %630 = vmatpush1.bf16.msra.mxu0 0
      %631 = vmatprep.subr.bf16.mxu0 0
      %632 = vmatpush1.bf16.msra.mxu0 0
      %633 = vmatprep.subr.bf16.mxu0 0
      %634 = vmatpush1.bf16.msra.mxu0 0
      %635 = vmatprep.subr.bf16.mxu0 0
      %636 = vmatpush1.bf16.msra.mxu0 0
      %637 = vmatprep.subr.bf16.mxu0 0
      %638 = vmatpush1.bf16.msra.mxu0 0
      %639 = vmatprep.subr.bf16.mxu0 0
      %640 = vmatpush1.bf16.msra.mxu0 0
      %641 = vmatprep.subr.bf16.mxu0 0
      %642 = vmatpush1.bf16.msra.mxu0 0
      %643 = vmatprep.subr.bf16.mxu0 0
      %644 = vmatpush1.bf16.msra.mxu0 0
      %645 = vmatprep.subr.bf16.mxu0 0
      %646 = vmatpush1.bf16.msra.mxu0 0
      %647 = vmatprep.subr.bf16.mxu0 0
      %648 = vmatpush1.bf16.msra.mxu0 0
      %649 = vmatprep.subr.bf16.mxu0 0
      %650 = vmatpush1.bf16.msra.mxu0 0
      %651 = vmatprep.subr.bf16.mxu0 0
      %652 = vmatpush1.bf16.msra.mxu0 0
      %653 = vmatprep.subr.bf16.mxu0 0
      %654 = vmatpush1.bf16.msra.mxu0 0
      %655 = vmatprep.subr.bf16.mxu0 0
      %656 = vmatpush1.bf16.msra.mxu0 0
      %657 = vmatprep.subr.bf16.mxu0 0
      %658 = vmatpush1.bf16.msra.mxu0 0
      %659 = vmatprep.mubr.bf16.mxu0 0
      %660 = vmatmul.mubr.bf16.gmra.mrb[0].mxu0 %v622
      %v661 = vpop.f32.mrb[0].mxu0
      %v662 = vadd.f32 %v485, %v661
      %v663 = vpop.f32.mrb[0].mxu0
      %v664 = vpop.f32.mrb[0].mxu0
      %v665 = vadd.f32 %v488, %v664
      %v666 = vpop.f32.mrb[0].mxu0
      %667 = vmatprep.mubr.bf16.mxu0 0
      %668 = vmatmul.mubr.bf16.gmra.mrb[0].mxu0 %v399
      %v669 = vpop.f32.mrb[0].mxu0
      %v670 = vadd.f32 %v493, %v669
      %v671 = vpop.f32.mrb[0].mxu0
      %v672 = vpop.f32.mrb[0].mxu0
      %v673 = vadd.f32 %v496, %v672
      %v674 = vpop.f32.mrb[0].mxu0
      %675 = vmatprep.mubr.bf16.mxu0 0
      %676 = vmatmul.mubr.bf16.gmra.mrb[0].mxu0 %v402
      %v677 = vpop.f32.mrb[0].mxu0
      %v678 = vadd.f32 %v501, %v677
      %v679 = vpop.f32.mrb[0].mxu0
      %v680 = vpop.f32.mrb[0].mxu0
      %v681 = vadd.f32 %v504, %v680
      %v682 = vpop.f32.mrb[0].mxu0
      %683 = vmatprep.mubr.bf16.mxu0 0
      %684 = vmatmul.mubr.bf16.gmra.mrb[0].mxu0 %v405
      %v685 = vpop.f32.mrb[0].mxu0
      %v686 = vadd.f32 %v509, %v685
      %v687 = vpop.f32.mrb[0].mxu0
      %v688 = vpop.f32.mrb[0].mxu0
      %v689 = vadd.f32 %v512, %v688
      %v690 = vpop.f32.mrb[0].mxu0
      %691 = vmatprep.mubr.bf16.mxu0 0
      %692 = vmatmul.mubr.bf16.gmra.mrb[0].mxu0 %v408
      %v693 = vpop.f32.mrb[0].mxu0
      %v694 = vadd.f32 %v517, %v693
      %v695 = vpop.f32.mrb[0].mxu0
      %v696 = vpop.f32.mrb[0].mxu0
      %v697 = vadd.f32 %v520, %v696
      %v698 = vpop.f32.mrb[0].mxu0
      %699 = vmatprep.mubr.bf16.mxu0 0
      %700 = vmatmul.mubr.bf16.gmra.mrb[0].mxu0 %v411
      %v701 = vpop.f32.mrb[0].mxu0
      %v702 = vadd.f32 %v525, %v701
      %v703 = vpop.f32.mrb[0].mxu0
      %v704 = vpop.f32.mrb[0].mxu0
      %v705 = vadd.f32 %v528, %v704
      %v706 = vpop.f32.mrb[0].mxu0
      %707 = vmatprep.mubr.bf16.mxu0 0
      %708 = vmatmul.mubr.bf16.gmra.mrb[0].mxu0 %v414
      %v709 = vpop.f32.mrb[0].mxu0
      %v710 = vadd.f32 %v533, %v709
      %v711 = vpop.f32.mrb[0].mxu0
      %v712 = vpop.f32.mrb[0].mxu0
      %v713 = vadd.f32 %v536, %v712
      %v714 = vpop.f32.mrb[0].mxu0
      %715 = vmatprep.mubr.bf16.mxu0 0
      %716 = vmatmul.mubr.bf16.gmra.mrb[0].mxu0 %v417
      %v717 = vpop.f32.mrb[0].mxu0
      %v718 = vadd.f32 %v541, %v717
      %v719 = vpop.f32.mrb[0].mxu0
      %v720 = vpop.f32.mrb[0].mxu0
      %v721 = vadd.f32 %v544, %v720
      %v722 = vpop.f32.mrb[0].mxu0
      %723 = vmatprep.mubr.bf16.mxu0 0
      %724 = vmatmul.mubr.bf16.gmra.mrb[0].mxu0 %v420
      %v725 = vpop.f32.mrb[0].mxu0
      %v726 = vadd.f32 %v549, %v725
      %v727 = vpop.f32.mrb[0].mxu0
      %v728 = vpop.f32.mrb[0].mxu0
      %v729 = vadd.f32 %v552, %v728
      %v730 = vpop.f32.mrb[0].mxu0
      %731 = vmatprep.mubr.bf16.mxu0 0
      %732 = vmatmul.mubr.bf16.gmra.mrb[0].mxu0 %v423
      %v733 = vpop.f32.mrb[0].mxu0
      %v734 = vadd.f32 %v557, %v733
      %v735 = vpop.f32.mrb[0].mxu0
      %v736 = vpop.f32.mrb[0].mxu0
      %v737 = vadd.f32 %v560, %v736
      %v738 = vpop.f32.mrb[0].mxu0
      %739 = vmatprep.mubr.bf16.mxu0 0
      %740 = vmatmul.mubr.bf16.gmra.mrb[0].mxu0 %v426
      %v741 = vpop.f32.mrb[0].mxu0
      %v742 = vadd.f32 %v565, %v741
      %v743 = vpop.f32.mrb[0].mxu0
      %v744 = vpop.f32.mrb[0].mxu0
      %v745 = vadd.f32 %v568, %v744
      %v746 = vpop.f32.mrb[0].mxu0
      %747 = vmatprep.mubr.bf16.mxu0 0
      %748 = vmatmul.mubr.bf16.gmra.mrb[0].mxu0 %v429
      %v749 = vpop.f32.mrb[0].mxu0
      %v750 = vadd.f32 %v573, %v749
      %v751 = vpop.f32.mrb[0].mxu0
      %v752 = vpop.f32.mrb[0].mxu0
      %v753 = vadd.f32 %v576, %v752
      %v754 = vpop.f32.mrb[0].mxu0
      %755 = vmatprep.mubr.bf16.mxu0 0
      %756 = vmatmul.mubr.bf16.gmra.mrb[0].mxu0 %v432
      %v757 = vpop.f32.mrb[0].mxu0
      %v758 = vadd.f32 %v581, %v757
      %v759 = vpop.f32.mrb[0].mxu0
      %v760 = vpop.f32.mrb[0].mxu0
      %v761 = vadd.f32 %v584, %v760
      %v762 = vpop.f32.mrb[0].mxu0
      %763 = vmatprep.mubr.bf16.mxu0 0
      %764 = vmatmul.mubr.bf16.gmra.mrb[0].mxu0 %v435
      %v765 = vpop.f32.mrb[0].mxu0
      %v766 = vadd.f32 %v589, %v765
      %v767 = vpop.f32.mrb[0].mxu0
      %v768 = vpop.f32.mrb[0].mxu0
      %v769 = vadd.f32 %v592, %v768
      %v770 = vpop.f32.mrb[0].mxu0
      %771 = vmatprep.mubr.bf16.mxu0 0
      %772 = vmatmul.mubr.bf16.gmra.mrb[0].mxu0 %v438
      %v773 = vpop.f32.mrb[0].mxu0
      %v774 = vadd.f32 %v597, %v773
      %v775 = vpop.f32.mrb[0].mxu0
      %v776 = vpop.f32.mrb[0].mxu0
      %v777 = vadd.f32 %v600, %v776
      %v778 = vpop.f32.mrb[0].mxu0
      %779 = vmatprep.mubr.bf16.mxu0 0
      %780 = vmatmul.mubr.bf16.gmra.mrb[0].mxu0 %v441
      %v781 = vpop.f32.mrb[0].mxu0
      %v782 = vadd.f32 %v605, %v781
      %v783 = vpop.f32.mrb[0].mxu0
      %v784 = vpop.f32.mrb[0].mxu0
      %v785 = vadd.f32 %v608, %v784
      %v786 = vpop.f32.mrb[0].mxu0
      %787 = vdwg.mxu0
      %v788 = vld [vmem:[%s261 + $0x10] sm:$0xf]
      %v789 = vld [vmem:[%s261 + $0x14] sm:$0xf]
      %v790 = vld [vmem:[%s261 + $0x18] sm:$0xf]
      %v791 = vld [vmem:[%s261 + $0x1c] sm:$0xf]
      %v792 = vld [vmem:[%s261 + $0x20] sm:$0xf]
      %v793 = vld [vmem:[%s261 + $0x24] sm:$0xf]
      %v794 = vld [vmem:[%s261 + $0x28] sm:$0xf]
      %v795 = vld [vmem:[%s261 + $0x2c] sm:$0xf]
      %v796 = vld [vmem:[%s261 + $0x30] sm:$0xf]
      %v797 = vld [vmem:[%s261 + $0x34] sm:$0xf]
      %v798 = vld [vmem:[%s261 + $0x38] sm:$0xf]
      %v799 = vld [vmem:[%s261 + $0x3c] sm:$0xf]
      %v800 = vld [vmem:[%s261 + $0x40] sm:$0xf]
      %v801 = vld [vmem:[%s261 + $0x44] sm:$0xf]
      %v802 = vld [vmem:[%s261 + $0x48] sm:$0xf]
      %v803 = vld [vmem:[%s261 + $0x4c] sm:$0xf]
      %v804 = vld [vmem:[%s261 + $0x50] sm:$0xf]
      %v805 = vld [vmem:[%s261 + $0x54] sm:$0xf]
      %v806 = vld [vmem:[%s261 + $0x58] sm:$0xf]
      %v807 = vld [vmem:[%s261 + $0x5c] sm:$0xf]
      %v808 = vld [vmem:[%s261 + $0x60] sm:$0xf]
      %v809 = vld [vmem:[%s261 + $0x64] sm:$0xf]
      %v810 = vld [vmem:[%s261 + $0x68] sm:$0xf]
      %v811 = vld [vmem:[%s261 + $0x6c] sm:$0xf]
      %v812 = vld [vmem:[%s261 + $0x70] sm:$0xf]
      %v813 = vld [vmem:[%s261 + $0x74] sm:$0xf]
      %v814 = vld [vmem:[%s261 + $0x78] sm:$0xf]
      %v815 = vld [vmem:[%s261 + $0x7c] sm:$0xf]
      %v816 = vld [vmem:[%s261 + $0x80] sm:$0xf]
      %v817 = vld [vmem:[%s261 + $0x84] sm:$0xf]
      %v818 = vld [vmem:[%s261 + $0x88] sm:$0xf]
      %v819 = vld [vmem:[%s261 + $0x8c] sm:$0xf]
      %s820 = scalar_lea.vmem %s2, 16
      %v821 = vld [vmem:[%s820] sm:$0xf]
      %v822 = vld [vmem:[%s820 + $0x4] sm:$0x3]
      %v855 = vunpack.c.l.b16 %v788
      %v856 = vunpack.c.l.b16 %v789
      %v857 = vunpack.c.l.b16 %v790
      %v858 = vunpack.c.l.b16 %v791
      %v859 = vunpack.c.l.b16 %v792
      %v860 = vunpack.c.l.b16 %v793
      %v861 = vunpack.c.l.b16 %v794
      %v862 = vunpack.c.l.b16 %v795
      %v863 = vunpack.c.l.b16 %v796
      %v864 = vunpack.c.l.b16 %v797
      %v865 = vunpack.c.l.b16 %v798
      %v866 = vunpack.c.l.b16 %v799
      %v867 = vunpack.c.l.b16 %v800
      %v868 = vunpack.c.l.b16 %v801
      %v869 = vunpack.c.l.b16 %v802
      %v870 = vunpack.c.l.b16 %v803
      %v871 = vunpack.c.l.b16 %v804
      %v872 = vunpack.c.l.b16 %v805
      %v873 = vunpack.c.l.b16 %v806
      %v874 = vunpack.c.l.b16 %v807
      %v875 = vunpack.c.l.b16 %v808
      %v876 = vunpack.c.l.b16 %v809
      %v877 = vunpack.c.l.b16 %v810
      %v878 = vunpack.c.l.b16 %v811
      %v879 = vunpack.c.l.b16 %v812
      %v880 = vunpack.c.l.b16 %v813
      %v881 = vunpack.c.l.b16 %v814
      %v882 = vunpack.c.l.b16 %v815
      %v883 = vunpack.c.l.b16 %v816
      %v884 = vunpack.c.l.b16 %v817
      %v885 = vunpack.c.l.b16 %v818
      %v886 = vunpack.c.l.b16 %v819
      %v887 = vpack.c.b16 %v856, %v855
      %v888 = vpack.c.b16 %v858, %v857
      %v889 = vpack.c.b16 %v860, %v859
      %v890 = vpack.c.b16 %v862, %v861
      %v891 = vpack.c.b16 %v864, %v863
      %v892 = vpack.c.b16 %v866, %v865
      %v893 = vpack.c.b16 %v868, %v867
      %v894 = vpack.c.b16 %v870, %v869
      %v895 = vpack.c.b16 %v872, %v871
      %v896 = vpack.c.b16 %v874, %v873
      %v897 = vpack.c.b16 %v876, %v875
      %v898 = vpack.c.b16 %v878, %v877
      %v899 = vpack.c.b16 %v880, %v879
      %v900 = vpack.c.b16 %v882, %v881
      %v901 = vpack.c.b16 %v884, %v883
      %v902 = vpack.c.b16 %v886, %v885
      %v905 = vunpack.c.l.b16 %v821
      %v906 = vunpack.c.l.b16 %v822
      %v907 = vpack.c.b16 %v906, %v905
      %v909 = vsel %vm397, %v887, 0
      %v912 = vsel %vm397, %v888, 0
      %v915 = vsel %vm397, %v889, 0
      %v918 = vsel %vm397, %v890, 0
      %v921 = vsel %vm397, %v891, 0
      %v924 = vsel %vm397, %v892, 0
      %v927 = vsel %vm397, %v893, 0
      %v930 = vsel %vm397, %v894, 0
      %v933 = vsel %vm397, %v895, 0
      %v936 = vsel %vm397, %v896, 0
      %v939 = vsel %vm397, %v897, 0
      %v942 = vsel %vm397, %v898, 0
      %v945 = vsel %vm397, %v899, 0
      %v948 = vsel %vm397, %v900, 0
      %v951 = vsel %vm397, %v901, 0
      %v954 = vsel %vm397, %v902, 0
      %v957 = vsel %vm446, %v907, 0
      %959 = vmatprep.subr.bf16.mxu0 0
      %960 = vmatpush1.bf16.msra.mxu0 %v957
      %961 = vmatprep.subr.bf16.mxu0 0
      %962 = vmatpush1.bf16.msra.mxu0 0
      %963 = vmatprep.subr.bf16.mxu0 0
      %964 = vmatpush1.bf16.msra.mxu0 0
      %965 = vmatprep.subr.bf16.mxu0 0
      %966 = vmatpush1.bf16.msra.mxu0 0
      %967 = vmatprep.subr.bf16.mxu0 0
      %968 = vmatpush1.bf16.msra.mxu0 0
      %969 = vmatprep.subr.bf16.mxu0 0
      %970 = vmatpush1.bf16.msra.mxu0 0
      %971 = vmatprep.subr.bf16.mxu0 0
      %972 = vmatpush1.bf16.msra.mxu0 0
      %973 = vmatprep.subr.bf16.mxu0 0
      %974 = vmatpush1.bf16.msra.mxu0 0
      %975 = vmatprep.subr.bf16.mxu0 0
      %976 = vmatpush1.bf16.msra.mxu0 0
      %977 = vmatprep.subr.bf16.mxu0 0
      %978 = vmatpush1.bf16.msra.mxu0 0
      %979 = vmatprep.subr.bf16.mxu0 0
      %980 = vmatpush1.bf16.msra.mxu0 0
      %981 = vmatprep.subr.bf16.mxu0 0
      %982 = vmatpush1.bf16.msra.mxu0 0
      %983 = vmatprep.subr.bf16.mxu0 0
      %984 = vmatpush1.bf16.msra.mxu0 0
      %985 = vmatprep.subr.bf16.mxu0 0
      %986 = vmatpush1.bf16.msra.mxu0 0
      %987 = vmatprep.subr.bf16.mxu0 0
      %988 = vmatpush1.bf16.msra.mxu0 0
      %989 = vmatprep.subr.bf16.mxu0 0
      %990 = vmatpush1.bf16.msra.mxu0 0
      %991 = vmatprep.mubr.bf16.mxu0 0
      %992 = vmatmul.mubr.bf16.gmra.mrb[0].mxu0 %v909
      %v993 = vpop.f32.mrb[0].mxu0
      %v994 = vadd.f32 0.0, %v993
      %v995 = vpop.f32.mrb[0].mxu0
      %v996 = vpop.f32.mrb[0].mxu0
      %v997 = vadd.f32 0.0, %v996
      %v998 = vpop.f32.mrb[0].mxu0
      %999 = vmatprep.mubr.bf16.mxu0 0
      %1000 = vmatmul.mubr.bf16.gmra.mrb[0].mxu0 %v912
      %v1001 = vpop.f32.mrb[0].mxu0
      %v1002 = vadd.f32 0.0, %v1001
      %v1003 = vpop.f32.mrb[0].mxu0
      %v1004 = vpop.f32.mrb[0].mxu0
      %v1005 = vadd.f32 0.0, %v1004
      %v1006 = vpop.f32.mrb[0].mxu0
      %1007 = vmatprep.mubr.bf16.mxu0 0
      %1008 = vmatmul.mubr.bf16.gmra.mrb[0].mxu0 %v915
      %v1009 = vpop.f32.mrb[0].mxu0
      %v1010 = vadd.f32 0.0, %v1009
      %v1011 = vpop.f32.mrb[0].mxu0
      %v1012 = vpop.f32.mrb[0].mxu0
      %v1013 = vadd.f32 0.0, %v1012
      %v1014 = vpop.f32.mrb[0].mxu0
      %1015 = vmatprep.mubr.bf16.mxu0 0
      %1016 = vmatmul.mubr.bf16.gmra.mrb[0].mxu0 %v918
      %v1017 = vpop.f32.mrb[0].mxu0
      %v1018 = vadd.f32 0.0, %v1017
      %v1019 = vpop.f32.mrb[0].mxu0
      %v1020 = vpop.f32.mrb[0].mxu0
      %v1021 = vadd.f32 0.0, %v1020
      %v1022 = vpop.f32.mrb[0].mxu0
      %1023 = vmatprep.mubr.bf16.mxu0 0
      %1024 = vmatmul.mubr.bf16.gmra.mrb[0].mxu0 %v921
      %v1025 = vpop.f32.mrb[0].mxu0
      %v1026 = vadd.f32 0.0, %v1025
      %v1027 = vpop.f32.mrb[0].mxu0
      %v1028 = vpop.f32.mrb[0].mxu0
      %v1029 = vadd.f32 0.0, %v1028
      %v1030 = vpop.f32.mrb[0].mxu0
      %1031 = vmatprep.mubr.bf16.mxu0 0
      %1032 = vmatmul.mubr.bf16.gmra.mrb[0].mxu0 %v924
      %v1033 = vpop.f32.mrb[0].mxu0
      %v1034 = vadd.f32 0.0, %v1033
      %v1035 = vpop.f32.mrb[0].mxu0
      %v1036 = vpop.f32.mrb[0].mxu0
      %v1037 = vadd.f32 0.0, %v1036
      %v1038 = vpop.f32.mrb[0].mxu0
      %1039 = vmatprep.mubr.bf16.mxu0 0
      %1040 = vmatmul.mubr.bf16.gmra.mrb[0].mxu0 %v927
      %v1041 = vpop.f32.mrb[0].mxu0
      %v1042 = vadd.f32 0.0, %v1041
      %v1043 = vpop.f32.mrb[0].mxu0
      %v1044 = vpop.f32.mrb[0].mxu0
      %v1045 = vadd.f32 0.0, %v1044
      %v1046 = vpop.f32.mrb[0].mxu0
      %1047 = vmatprep.mubr.bf16.mxu0 0
      %1048 = vmatmul.mubr.bf16.gmra.mrb[0].mxu0 %v930
      %v1049 = vpop.f32.mrb[0].mxu0
      %v1050 = vadd.f32 0.0, %v1049
      %v1051 = vpop.f32.mrb[0].mxu0
      %v1052 = vpop.f32.mrb[0].mxu0
      %v1053 = vadd.f32 0.0, %v1052
      %v1054 = vpop.f32.mrb[0].mxu0
      %1055 = vmatprep.mubr.bf16.mxu0 0
      %1056 = vmatmul.mubr.bf16.gmra.mrb[0].mxu0 %v933
      %v1057 = vpop.f32.mrb[0].mxu0
      %v1058 = vadd.f32 0.0, %v1057
      %v1059 = vpop.f32.mrb[0].mxu0
      %v1060 = vpop.f32.mrb[0].mxu0
      %v1061 = vadd.f32 0.0, %v1060
      %v1062 = vpop.f32.mrb[0].mxu0
      %1063 = vmatprep.mubr.bf16.mxu0 0
      %1064 = vmatmul.mubr.bf16.gmra.mrb[0].mxu0 %v936
      %v1065 = vpop.f32.mrb[0].mxu0
      %v1066 = vadd.f32 0.0, %v1065
      %v1067 = vpop.f32.mrb[0].mxu0
      %v1068 = vpop.f32.mrb[0].mxu0
      %v1069 = vadd.f32 0.0, %v1068
      %v1070 = vpop.f32.mrb[0].mxu0
      %1071 = vmatprep.mubr.bf16.mxu0 0
      %1072 = vmatmul.mubr.bf16.gmra.mrb[0].mxu0 %v939
      %v1073 = vpop.f32.mrb[0].mxu0
      %v1074 = vadd.f32 0.0, %v1073
      %v1075 = vpop.f32.mrb[0].mxu0
      %v1076 = vpop.f32.mrb[0].mxu0
      %v1077 = vadd.f32 0.0, %v1076
      %v1078 = vpop.f32.mrb[0].mxu0
      %1079 = vmatprep.mubr.bf16.mxu0 0
      %1080 = vmatmul.mubr.bf16.gmra.mrb[0].mxu0 %v942
      %v1081 = vpop.f32.mrb[0].mxu0
      %v1082 = vadd.f32 0.0, %v1081
      %v1083 = vpop.f32.mrb[0].mxu0
      %v1084 = vpop.f32.mrb[0].mxu0
      %v1085 = vadd.f32 0.0, %v1084
      %v1086 = vpop.f32.mrb[0].mxu0
      %1087 = vmatprep.mubr.bf16.mxu0 0
      %1088 = vmatmul.mubr.bf16.gmra.mrb[0].mxu0 %v945
      %v1089 = vpop.f32.mrb[0].mxu0
      %v1090 = vadd.f32 0.0, %v1089
      %v1091 = vpop.f32.mrb[0].mxu0
      %v1092 = vpop.f32.mrb[0].mxu0
      %v1093 = vadd.f32 0.0, %v1092
      %v1094 = vpop.f32.mrb[0].mxu0
      %1095 = vmatprep.mubr.bf16.mxu0 0
      %1096 = vmatmul.mubr.bf16.gmra.mrb[0].mxu0 %v948
      %v1097 = vpop.f32.mrb[0].mxu0
      %v1098 = vadd.f32 0.0, %v1097
      %v1099 = vpop.f32.mrb[0].mxu0
      %v1100 = vpop.f32.mrb[0].mxu0
      %v1101 = vadd.f32 0.0, %v1100
      %v1102 = vpop.f32.mrb[0].mxu0
      %1103 = vmatprep.mubr.bf16.mxu0 0
      %1104 = vmatmul.mubr.bf16.gmra.mrb[0].mxu0 %v951
      %v1105 = vpop.f32.mrb[0].mxu0
      %v1106 = vadd.f32 0.0, %v1105
      %v1107 = vpop.f32.mrb[0].mxu0
      %v1108 = vpop.f32.mrb[0].mxu0
      %v1109 = vadd.f32 0.0, %v1108
      %v1110 = vpop.f32.mrb[0].mxu0
      %1111 = vmatprep.mubr.bf16.mxu0 0
      %1112 = vmatmul.mubr.bf16.gmra.mrb[0].mxu0 %v954
      %v1113 = vpop.f32.mrb[0].mxu0
      %v1114 = vadd.f32 0.0, %v1113
      %v1115 = vpop.f32.mrb[0].mxu0
      %v1116 = vpop.f32.mrb[0].mxu0
      %v1117 = vadd.f32 0.0, %v1116
      %v1118 = vpop.f32.mrb[0].mxu0
      %1119 = vdwg.mxu0
      %v1120 = vadd.f32 %v662, %v994
      %v1121 = vadd.f32 %v665, %v997
      %v1122 = vadd.f32 %v670, %v1002
      %v1123 = vadd.f32 %v673, %v1005
      %v1124 = vadd.f32 %v678, %v1010
      %v1125 = vadd.f32 %v681, %v1013
      %v1126 = vadd.f32 %v686, %v1018
      %v1127 = vadd.f32 %v689, %v1021
      %v1128 = vadd.f32 %v694, %v1026
      %v1129 = vadd.f32 %v697, %v1029
      %v1130 = vadd.f32 %v702, %v1034
      %v1131 = vadd.f32 %v705, %v1037
      %v1132 = vadd.f32 %v710, %v1042
      %v1133 = vadd.f32 %v713, %v1045
      %v1134 = vadd.f32 %v718, %v1050
      %v1135 = vadd.f32 %v721, %v1053
      %v1136 = vadd.f32 %v726, %v1058
      %v1137 = vadd.f32 %v729, %v1061
      %v1138 = vadd.f32 %v734, %v1066
      %v1139 = vadd.f32 %v737, %v1069
      %v1140 = vadd.f32 %v742, %v1074
      %v1141 = vadd.f32 %v745, %v1077
      %v1142 = vadd.f32 %v750, %v1082
      %v1143 = vadd.f32 %v753, %v1085
      %v1144 = vadd.f32 %v758, %v1090
      %v1145 = vadd.f32 %v761, %v1093
      %v1146 = vadd.f32 %v766, %v1098
      %v1147 = vadd.f32 %v769, %v1101
      %v1148 = vadd.f32 %v774, %v1106
      %v1149 = vadd.f32 %v777, %v1109
      %v1150 = vadd.f32 %v782, %v1114
      %v1151 = vadd.f32 %v785, %v1117
      %v1152 = vld [vmem:[%s266] sm:$0xf]
      %v1153 = vld [vmem:[%s266 + $0x4] sm:$0xf]
      %v1154 = vld [vmem:[%s266 + $0x8] sm:$0xf]
      %v1155 = vld [vmem:[%s266 + $0xc] sm:$0xf]
      %v1156 = vld [vmem:[%s266 + $0x10] sm:$0xf]
      %v1157 = vld [vmem:[%s266 + $0x14] sm:$0xf]
      %v1158 = vld [vmem:[%s266 + $0x18] sm:$0xf]
      %v1159 = vld [vmem:[%s266 + $0x1c] sm:$0xf]
      %v1160 = vld [vmem:[%s266 + $0x20] sm:$0xf]
      %v1161 = vld [vmem:[%s266 + $0x24] sm:$0xf]
      %v1162 = vld [vmem:[%s266 + $0x28] sm:$0xf]
      %v1163 = vld [vmem:[%s266 + $0x2c] sm:$0xf]
      %v1164 = vld [vmem:[%s266 + $0x30] sm:$0xf]
      %v1165 = vld [vmem:[%s266 + $0x34] sm:$0xf]
      %v1166 = vld [vmem:[%s266 + $0x38] sm:$0xf]
      %v1167 = vld [vmem:[%s266 + $0x3c] sm:$0xf]
      %v1168 = vld [vmem:[%s266 + $0x40] sm:$0xf]
      %v1169 = vld [vmem:[%s266 + $0x44] sm:$0xf]
      %v1170 = vld [vmem:[%s266 + $0x48] sm:$0xf]
      %v1171 = vld [vmem:[%s266 + $0x4c] sm:$0xf]
      %v1172 = vld [vmem:[%s266 + $0x50] sm:$0xf]
      %v1173 = vld [vmem:[%s266 + $0x54] sm:$0xf]
      %v1174 = vld [vmem:[%s266 + $0x58] sm:$0xf]
      %v1175 = vld [vmem:[%s266 + $0x5c] sm:$0xf]
      %v1176 = vld [vmem:[%s266 + $0x60] sm:$0xf]
      %v1177 = vld [vmem:[%s266 + $0x64] sm:$0xf]
      %v1178 = vld [vmem:[%s266 + $0x68] sm:$0xf]
      %v1179 = vld [vmem:[%s266 + $0x6c] sm:$0xf]
      %v1180 = vld [vmem:[%s266 + $0x70] sm:$0xf]
      %v1181 = vld [vmem:[%s266 + $0x74] sm:$0xf]
      %v1182 = vld [vmem:[%s266 + $0x78] sm:$0xf]
      %v1183 = vld [vmem:[%s266 + $0x7c] sm:$0xf]
      %v1184 = vld [vmem:[%s3] sm:$0xf]
      %v1185 = vld [vmem:[%s3 + $0x4] sm:$0x3]
      %v1218 = vunpack.c.l.b16 %v1152
      %v1219 = vunpack.c.l.b16 %v1153
      %v1220 = vunpack.c.l.b16 %v1154
      %v1221 = vunpack.c.l.b16 %v1155
      %v1222 = vunpack.c.l.b16 %v1156
      %v1223 = vunpack.c.l.b16 %v1157
      %v1224 = vunpack.c.l.b16 %v1158
      %v1225 = vunpack.c.l.b16 %v1159
      %v1226 = vunpack.c.l.b16 %v1160
      %v1227 = vunpack.c.l.b16 %v1161
      %v1228 = vunpack.c.l.b16 %v1162
      %v1229 = vunpack.c.l.b16 %v1163
      %v1230 = vunpack.c.l.b16 %v1164
      %v1231 = vunpack.c.l.b16 %v1165
      %v1232 = vunpack.c.l.b16 %v1166
      %v1233 = vunpack.c.l.b16 %v1167
      %v1234 = vunpack.c.l.b16 %v1168
      %v1235 = vunpack.c.l.b16 %v1169
      %v1236 = vunpack.c.l.b16 %v1170
      %v1237 = vunpack.c.l.b16 %v1171
      %v1238 = vunpack.c.l.b16 %v1172
      %v1239 = vunpack.c.l.b16 %v1173
      %v1240 = vunpack.c.l.b16 %v1174
      %v1241 = vunpack.c.l.b16 %v1175
      %v1242 = vunpack.c.l.b16 %v1176
      %v1243 = vunpack.c.l.b16 %v1177
      %v1244 = vunpack.c.l.b16 %v1178
      %v1245 = vunpack.c.l.b16 %v1179
      %v1246 = vunpack.c.l.b16 %v1180
      %v1247 = vunpack.c.l.b16 %v1181
      %v1248 = vunpack.c.l.b16 %v1182
      %v1249 = vunpack.c.l.b16 %v1183
      %v1250 = vpack.c.b16 %v1219, %v1218
      %v1251 = vpack.c.b16 %v1221, %v1220
      %v1252 = vpack.c.b16 %v1223, %v1222
      %v1253 = vpack.c.b16 %v1225, %v1224
      %v1254 = vpack.c.b16 %v1227, %v1226
      %v1255 = vpack.c.b16 %v1229, %v1228
      %v1256 = vpack.c.b16 %v1231, %v1230
      %v1257 = vpack.c.b16 %v1233, %v1232
      %v1258 = vpack.c.b16 %v1235, %v1234
      %v1259 = vpack.c.b16 %v1237, %v1236
      %v1260 = vpack.c.b16 %v1239, %v1238
      %v1261 = vpack.c.b16 %v1241, %v1240
      %v1262 = vpack.c.b16 %v1243, %v1242
      %v1263 = vpack.c.b16 %v1245, %v1244
      %v1264 = vpack.c.b16 %v1247, %v1246
      %v1265 = vpack.c.b16 %v1249, %v1248
      %v1268 = vunpack.c.l.b16 %v1184
      %v1269 = vunpack.c.l.b16 %v1185
      %v1270 = vpack.c.b16 %v1269, %v1268
      %v1272 = vsel %vm397, %v1250, 0
      %v1275 = vsel %vm397, %v1251, 0
      %v1278 = vsel %vm397, %v1252, 0
      %v1281 = vsel %vm397, %v1253, 0
      %v1284 = vsel %vm397, %v1254, 0
      %v1287 = vsel %vm397, %v1255, 0
      %v1290 = vsel %vm397, %v1256, 0
      %v1293 = vsel %vm397, %v1257, 0
      %v1296 = vsel %vm397, %v1258, 0
      %v1299 = vsel %vm397, %v1259, 0
      %v1302 = vsel %vm397, %v1260, 0
      %v1305 = vsel %vm397, %v1261, 0
      %v1308 = vsel %vm397, %v1262, 0
      %v1311 = vsel %vm397, %v1263, 0
      %v1314 = vsel %vm397, %v1264, 0
      %v1317 = vsel %vm397, %v1265, 0
      %v1320 = vsel %vm446, %v1270, 0
      %1322 = vmatprep.subr.bf16.mxu0 0
      %1323 = vmatpush1.bf16.msra.mxu0 %v1320
      %1324 = vmatprep.subr.bf16.mxu0 0
      %1325 = vmatpush1.bf16.msra.mxu0 0
      %1326 = vmatprep.subr.bf16.mxu0 0
      %1327 = vmatpush1.bf16.msra.mxu0 0
      %1328 = vmatprep.subr.bf16.mxu0 0
      %1329 = vmatpush1.bf16.msra.mxu0 0
      %1330 = vmatprep.subr.bf16.mxu0 0
      %1331 = vmatpush1.bf16.msra.mxu0 0
      %1332 = vmatprep.subr.bf16.mxu0 0
      %1333 = vmatpush1.bf16.msra.mxu0 0
      %1334 = vmatprep.subr.bf16.mxu0 0
      %1335 = vmatpush1.bf16.msra.mxu0 0
      %1336 = vmatprep.subr.bf16.mxu0 0
      %1337 = vmatpush1.bf16.msra.mxu0 0
      %1338 = vmatprep.subr.bf16.mxu0 0
      %1339 = vmatpush1.bf16.msra.mxu0 0
      %1340 = vmatprep.subr.bf16.mxu0 0
      %1341 = vmatpush1.bf16.msra.mxu0 0
      %1342 = vmatprep.subr.bf16.mxu0 0
      %1343 = vmatpush1.bf16.msra.mxu0 0
      %1344 = vmatprep.subr.bf16.mxu0 0
      %1345 = vmatpush1.bf16.msra.mxu0 0
      %1346 = vmatprep.subr.bf16.mxu0 0
      %1347 = vmatpush1.bf16.msra.mxu0 0
      %1348 = vmatprep.subr.bf16.mxu0 0
      %1349 = vmatpush1.bf16.msra.mxu0 0
      %1350 = vmatprep.subr.bf16.mxu0 0
      %1351 = vmatpush1.bf16.msra.mxu0 0
      %1352 = vmatprep.subr.bf16.mxu0 0
      %1353 = vmatpush1.bf16.msra.mxu0 0
      %1354 = vmatprep.mubr.bf16.mxu0 0
      %1355 = vmatmul.mubr.bf16.gmra.mrb[0].mxu0 %v1272
      %v1356 = vpop.f32.mrb[0].mxu0
      %v1357 = vadd.f32 0.0, %v1356
      %v1358 = vpop.f32.mrb[0].mxu0
      %v1359 = vpop.f32.mrb[0].mxu0
      %v1360 = vadd.f32 0.0, %v1359
      %v1361 = vpop.f32.mrb[0].mxu0
      %1362 = vmatprep.mubr.bf16.mxu0 0
      %1363 = vmatmul.mubr.bf16.gmra.mrb[0].mxu0 %v1275
      %v1364 = vpop.f32.mrb[0].mxu0
      %v1365 = vadd.f32 0.0, %v1364
      %v1366 = vpop.f32.mrb[0].mxu0
      %v1367 = vpop.f32.mrb[0].mxu0
      %v1368 = vadd.f32 0.0, %v1367
      %v1369 = vpop.f32.mrb[0].mxu0
      %1370 = vmatprep.mubr.bf16.mxu0 0
      %1371 = vmatmul.mubr.bf16.gmra.mrb[0].mxu0 %v1278
      %v1372 = vpop.f32.mrb[0].mxu0
      %v1373 = vadd.f32 0.0, %v1372
      %v1374 = vpop.f32.mrb[0].mxu0
      %v1375 = vpop.f32.mrb[0].mxu0
      %v1376 = vadd.f32 0.0, %v1375
      %v1377 = vpop.f32.mrb[0].mxu0
      %1378 = vmatprep.mubr.bf16.mxu0 0
      %1379 = vmatmul.mubr.bf16.gmra.mrb[0].mxu0 %v1281
      %v1380 = vpop.f32.mrb[0].mxu0
      %v1381 = vadd.f32 0.0, %v1380
      %v1382 = vpop.f32.mrb[0].mxu0
      %v1383 = vpop.f32.mrb[0].mxu0
      %v1384 = vadd.f32 0.0, %v1383
      %v1385 = vpop.f32.mrb[0].mxu0
      %1386 = vmatprep.mubr.bf16.mxu0 0
      %1387 = vmatmul.mubr.bf16.gmra.mrb[0].mxu0 %v1284
      %v1388 = vpop.f32.mrb[0].mxu0
      %v1389 = vadd.f32 0.0, %v1388
      %v1390 = vpop.f32.mrb[0].mxu0
      %v1391 = vpop.f32.mrb[0].mxu0
      %v1392 = vadd.f32 0.0, %v1391
      %v1393 = vpop.f32.mrb[0].mxu0
      %1394 = vmatprep.mubr.bf16.mxu0 0
      %1395 = vmatmul.mubr.bf16.gmra.mrb[0].mxu0 %v1287
      %v1396 = vpop.f32.mrb[0].mxu0
      %v1397 = vadd.f32 0.0, %v1396
      %v1398 = vpop.f32.mrb[0].mxu0
      %v1399 = vpop.f32.mrb[0].mxu0
      %v1400 = vadd.f32 0.0, %v1399
      %v1401 = vpop.f32.mrb[0].mxu0
      %1402 = vmatprep.mubr.bf16.mxu0 0
      %1403 = vmatmul.mubr.bf16.gmra.mrb[0].mxu0 %v1290
      %v1404 = vpop.f32.mrb[0].mxu0
      %v1405 = vadd.f32 0.0, %v1404
      %v1406 = vpop.f32.mrb[0].mxu0
      %v1407 = vpop.f32.mrb[0].mxu0
      %v1408 = vadd.f32 0.0, %v1407
      %v1409 = vpop.f32.mrb[0].mxu0
      %1410 = vmatprep.mubr.bf16.mxu0 0
      %1411 = vmatmul.mubr.bf16.gmra.mrb[0].mxu0 %v1293
      %v1412 = vpop.f32.mrb[0].mxu0
      %v1413 = vadd.f32 0.0, %v1412
      %v1414 = vpop.f32.mrb[0].mxu0
      %v1415 = vpop.f32.mrb[0].mxu0
      %v1416 = vadd.f32 0.0, %v1415
      %v1417 = vpop.f32.mrb[0].mxu0
      %1418 = vmatprep.mubr.bf16.mxu0 0
      %1419 = vmatmul.mubr.bf16.gmra.mrb[0].mxu0 %v1296
      %v1420 = vpop.f32.mrb[0].mxu0
      %v1421 = vadd.f32 0.0, %v1420
      %v1422 = vpop.f32.mrb[0].mxu0
      %v1423 = vpop.f32.mrb[0].mxu0
      %v1424 = vadd.f32 0.0, %v1423
      %v1425 = vpop.f32.mrb[0].mxu0
      %1426 = vmatprep.mubr.bf16.mxu0 0
      %1427 = vmatmul.mubr.bf16.gmra.mrb[0].mxu0 %v1299
      %v1428 = vpop.f32.mrb[0].mxu0
      %v1429 = vadd.f32 0.0, %v1428
      %v1430 = vpop.f32.mrb[0].mxu0
      %v1431 = vpop.f32.mrb[0].mxu0
      %v1432 = vadd.f32 0.0, %v1431
      %v1433 = vpop.f32.mrb[0].mxu0
      %1434 = vmatprep.mubr.bf16.mxu0 0
      %1435 = vmatmul.mubr.bf16.gmra.mrb[0].mxu0 %v1302
      %v1436 = vpop.f32.mrb[0].mxu0
      %v1437 = vadd.f32 0.0, %v1436
      %v1438 = vpop.f32.mrb[0].mxu0
      %v1439 = vpop.f32.mrb[0].mxu0
      %v1440 = vadd.f32 0.0, %v1439
      %v1441 = vpop.f32.mrb[0].mxu0
      %1442 = vmatprep.mubr.bf16.mxu0 0
      %1443 = vmatmul.mubr.bf16.gmra.mrb[0].mxu0 %v1305
      %v1444 = vpop.f32.mrb[0].mxu0
      %v1445 = vadd.f32 0.0, %v1444
      %v1446 = vpop.f32.mrb[0].mxu0
      %v1447 = vpop.f32.mrb[0].mxu0
      %v1448 = vadd.f32 0.0, %v1447
      %v1449 = vpop.f32.mrb[0].mxu0
      %1450 = vmatprep.mubr.bf16.mxu0 0
      %1451 = vmatmul.mubr.bf16.gmra.mrb[0].mxu0 %v1308
      %v1452 = vpop.f32.mrb[0].mxu0
      %v1453 = vadd.f32 0.0, %v1452
      %v1454 = vpop.f32.mrb[0].mxu0
      %v1455 = vpop.f32.mrb[0].mxu0
      %v1456 = vadd.f32 0.0, %v1455
      %v1457 = vpop.f32.mrb[0].mxu0
      %1458 = vmatprep.mubr.bf16.mxu0 0
      %1459 = vmatmul.mubr.bf16.gmra.mrb[0].mxu0 %v1311
      %v1460 = vpop.f32.mrb[0].mxu0
      %v1461 = vadd.f32 0.0, %v1460
      %v1462 = vpop.f32.mrb[0].mxu0
      %v1463 = vpop.f32.mrb[0].mxu0
      %v1464 = vadd.f32 0.0, %v1463
      %v1465 = vpop.f32.mrb[0].mxu0
      %1466 = vmatprep.mubr.bf16.mxu0 0
      %1467 = vmatmul.mubr.bf16.gmra.mrb[0].mxu0 %v1314
      %v1468 = vpop.f32.mrb[0].mxu0
      %v1469 = vadd.f32 0.0, %v1468
      %v1470 = vpop.f32.mrb[0].mxu0
      %v1471 = vpop.f32.mrb[0].mxu0
      %v1472 = vadd.f32 0.0, %v1471
      %v1473 = vpop.f32.mrb[0].mxu0
      %1474 = vmatprep.mubr.bf16.mxu0 0
      %1475 = vmatmul.mubr.bf16.gmra.mrb[0].mxu0 %v1317
      %v1476 = vpop.f32.mrb[0].mxu0
      %v1477 = vadd.f32 0.0, %v1476
      %v1478 = vpop.f32.mrb[0].mxu0
      %v1479 = vpop.f32.mrb[0].mxu0
      %v1480 = vadd.f32 0.0, %v1479
      %v1481 = vpop.f32.mrb[0].mxu0
      %1482 = vdwg.mxu0
      %v1483 = vadd.f32 %v1120, %v1357
      %v1484 = vadd.f32 %v1121, %v1360
      %v1485 = vadd.f32 %v1122, %v1365
      %v1486 = vadd.f32 %v1123, %v1368
      %v1487 = vadd.f32 %v1124, %v1373
      %v1488 = vadd.f32 %v1125, %v1376
      %v1489 = vadd.f32 %v1126, %v1381
      %v1490 = vadd.f32 %v1127, %v1384
      %v1491 = vadd.f32 %v1128, %v1389
      %v1492 = vadd.f32 %v1129, %v1392
      %v1493 = vadd.f32 %v1130, %v1397
      %v1494 = vadd.f32 %v1131, %v1400
      %v1495 = vadd.f32 %v1132, %v1405
      %v1496 = vadd.f32 %v1133, %v1408
      %v1497 = vadd.f32 %v1134, %v1413
      %v1498 = vadd.f32 %v1135, %v1416
      %v1499 = vadd.f32 %v1136, %v1421
      %v1500 = vadd.f32 %v1137, %v1424
      %v1501 = vadd.f32 %v1138, %v1429
      %v1502 = vadd.f32 %v1139, %v1432
      %v1503 = vadd.f32 %v1140, %v1437
      %v1504 = vadd.f32 %v1141, %v1440
      %v1505 = vadd.f32 %v1142, %v1445
      %v1506 = vadd.f32 %v1143, %v1448
      %v1507 = vadd.f32 %v1144, %v1453
      %v1508 = vadd.f32 %v1145, %v1456
      %v1509 = vadd.f32 %v1146, %v1461
      %v1510 = vadd.f32 %v1147, %v1464
      %v1511 = vadd.f32 %v1148, %v1469
      %v1512 = vadd.f32 %v1149, %v1472
      %v1513 = vadd.f32 %v1150, %v1477
      %v1514 = vadd.f32 %v1151, %v1480
      %v1515 = vld [vmem:[%s266 + $0x8] sm:$0xf]
      %v1516 = vld [vmem:[%s266 + $0xc] sm:$0xf]
      %v1517 = vld [vmem:[%s266 + $0x10] sm:$0xf]
      %v1518 = vld [vmem:[%s266 + $0x14] sm:$0xf]
      %v1519 = vld [vmem:[%s266 + $0x18] sm:$0xf]
      %v1520 = vld [vmem:[%s266 + $0x1c] sm:$0xf]
      %v1521 = vld [vmem:[%s266 + $0x20] sm:$0xf]
      %v1522 = vld [vmem:[%s266 + $0x24] sm:$0xf]
      %v1523 = vld [vmem:[%s266 + $0x28] sm:$0xf]
      %v1524 = vld [vmem:[%s266 + $0x2c] sm:$0xf]
      %v1525 = vld [vmem:[%s266 + $0x30] sm:$0xf]
      %v1526 = vld [vmem:[%s266 + $0x34] sm:$0xf]
      %v1527 = vld [vmem:[%s266 + $0x38] sm:$0xf]
      %v1528 = vld [vmem:[%s266 + $0x3c] sm:$0xf]
      %v1529 = vld [vmem:[%s266 + $0x40] sm:$0xf]
      %v1530 = vld [vmem:[%s266 + $0x44] sm:$0xf]
      %v1531 = vld [vmem:[%s266 + $0x48] sm:$0xf]
      %v1532 = vld [vmem:[%s266 + $0x4c] sm:$0xf]
      %v1533 = vld [vmem:[%s266 + $0x50] sm:$0xf]
      %v1534 = vld [vmem:[%s266 + $0x54] sm:$0xf]
      %v1535 = vld [vmem:[%s266 + $0x58] sm:$0xf]
      %v1536 = vld [vmem:[%s266 + $0x5c] sm:$0xf]
      %v1537 = vld [vmem:[%s266 + $0x60] sm:$0xf]
      %v1538 = vld [vmem:[%s266 + $0x64] sm:$0xf]
      %v1539 = vld [vmem:[%s266 + $0x68] sm:$0xf]
      %v1540 = vld [vmem:[%s266 + $0x6c] sm:$0xf]
      %v1541 = vld [vmem:[%s266 + $0x70] sm:$0xf]
      %v1542 = vld [vmem:[%s266 + $0x74] sm:$0xf]
      %v1543 = vld [vmem:[%s266 + $0x78] sm:$0xf]
      %v1544 = vld [vmem:[%s266 + $0x7c] sm:$0xf]
      %v1545 = vld [vmem:[%s266 + $0x80] sm:$0xf]
      %v1546 = vld [vmem:[%s266 + $0x84] sm:$0xf]
      %s1547 = scalar_lea.vmem %s3, 8
      %v1548 = vld [vmem:[%s1547] sm:$0xf]
      %v1549 = vld [vmem:[%s1547 + $0x4] sm:$0x3]
      %v1582 = vunpack.c.l.b16 %v1515
      %v1583 = vunpack.c.l.b16 %v1516
      %v1584 = vunpack.c.l.b16 %v1517
      %v1585 = vunpack.c.l.b16 %v1518
      %v1586 = vunpack.c.l.b16 %v1519
      %v1587 = vunpack.c.l.b16 %v1520
      %v1588 = vunpack.c.l.b16 %v1521
      %v1589 = vunpack.c.l.b16 %v1522
      %v1590 = vunpack.c.l.b16 %v1523
      %v1591 = vunpack.c.l.b16 %v1524
      %v1592 = vunpack.c.l.b16 %v1525
      %v1593 = vunpack.c.l.b16 %v1526
      %v1594 = vunpack.c.l.b16 %v1527
      %v1595 = vunpack.c.l.b16 %v1528
      %v1596 = vunpack.c.l.b16 %v1529
      %v1597 = vunpack.c.l.b16 %v1530
      %v1598 = vunpack.c.l.b16 %v1531
      %v1599 = vunpack.c.l.b16 %v1532
      %v1600 = vunpack.c.l.b16 %v1533
      %v1601 = vunpack.c.l.b16 %v1534
      %v1602 = vunpack.c.l.b16 %v1535
      %v1603 = vunpack.c.l.b16 %v1536
      %v1604 = vunpack.c.l.b16 %v1537
      %v1605 = vunpack.c.l.b16 %v1538
      %v1606 = vunpack.c.l.b16 %v1539
      %v1607 = vunpack.c.l.b16 %v1540
      %v1608 = vunpack.c.l.b16 %v1541
      %v1609 = vunpack.c.l.b16 %v1542
      %v1610 = vunpack.c.l.b16 %v1543
      %v1611 = vunpack.c.l.b16 %v1544
      %v1612 = vunpack.c.l.b16 %v1545
      %v1613 = vunpack.c.l.b16 %v1546
      %v1614 = vpack.c.b16 %v1583, %v1582
      %v1615 = vpack.c.b16 %v1585, %v1584
      %v1616 = vpack.c.b16 %v1587, %v1586
      %v1617 = vpack.c.b16 %v1589, %v1588
      %v1618 = vpack.c.b16 %v1591, %v1590
      %v1619 = vpack.c.b16 %v1593, %v1592
      %v1620 = vpack.c.b16 %v1595, %v1594
      %v1621 = vpack.c.b16 %v1597, %v1596
      %v1622 = vpack.c.b16 %v1599, %v1598
      %v1623 = vpack.c.b16 %v1601, %v1600
      %v1624 = vpack.c.b16 %v1603, %v1602
      %v1625 = vpack.c.b16 %v1605, %v1604
      %v1626 = vpack.c.b16 %v1607, %v1606
      %v1627 = vpack.c.b16 %v1609, %v1608
      %v1628 = vpack.c.b16 %v1611, %v1610
      %v1629 = vpack.c.b16 %v1613, %v1612
      %v1632 = vunpack.c.l.b16 %v1548
      %v1633 = vunpack.c.l.b16 %v1549
      %v1634 = vpack.c.b16 %v1633, %v1632
      %v1636 = vsel %vm397, %v1614, 0
      %v1639 = vsel %vm397, %v1615, 0
      %v1642 = vsel %vm397, %v1616, 0
      %v1645 = vsel %vm397, %v1617, 0
      %v1648 = vsel %vm397, %v1618, 0
      %v1651 = vsel %vm397, %v1619, 0
      %v1654 = vsel %vm397, %v1620, 0
      %v1657 = vsel %vm397, %v1621, 0
      %v1660 = vsel %vm397, %v1622, 0
      %v1663 = vsel %vm397, %v1623, 0
      %v1666 = vsel %vm397, %v1624, 0
      %v1669 = vsel %vm397, %v1625, 0
      %v1672 = vsel %vm397, %v1626, 0
      %v1675 = vsel %vm397, %v1627, 0
      %v1678 = vsel %vm397, %v1628, 0
      %v1681 = vsel %vm397, %v1629, 0
      %v1684 = vsel %vm446, %v1634, 0
      %1686 = vmatprep.subr.bf16.mxu0 0
      %1687 = vmatpush1.bf16.msra.mxu0 %v1684
      %1688 = vmatprep.subr.bf16.mxu0 0
      %1689 = vmatpush1.bf16.msra.mxu0 0
      %1690 = vmatprep.subr.bf16.mxu0 0
      %1691 = vmatpush1.bf16.msra.mxu0 0
      %1692 = vmatprep.subr.bf16.mxu0 0
      %1693 = vmatpush1.bf16.msra.mxu0 0
      %1694 = vmatprep.subr.bf16.mxu0 0
      %1695 = vmatpush1.bf16.msra.mxu0 0
      %1696 = vmatprep.subr.bf16.mxu0 0
      %1697 = vmatpush1.bf16.msra.mxu0 0
      %1698 = vmatprep.subr.bf16.mxu0 0
      %1699 = vmatpush1.bf16.msra.mxu0 0
      %1700 = vmatprep.subr.bf16.mxu0 0
      %1701 = vmatpush1.bf16.msra.mxu0 0
      %1702 = vmatprep.subr.bf16.mxu0 0
      %1703 = vmatpush1.bf16.msra.mxu0 0
      %1704 = vmatprep.subr.bf16.mxu0 0
      %1705 = vmatpush1.bf16.msra.mxu0 0
      %1706 = vmatprep.subr.bf16.mxu0 0
      %1707 = vmatpush1.bf16.msra.mxu0 0
      %1708 = vmatprep.subr.bf16.mxu0 0
      %1709 = vmatpush1.bf16.msra.mxu0 0
      %1710 = vmatprep.subr.bf16.mxu0 0
      %1711 = vmatpush1.bf16.msra.mxu0 0
      %1712 = vmatprep.subr.bf16.mxu0 0
      %1713 = vmatpush1.bf16.msra.mxu0 0
      %1714 = vmatprep.subr.bf16.mxu0 0
      %1715 = vmatpush1.bf16.msra.mxu0 0
      %1716 = vmatprep.subr.bf16.mxu0 0
      %1717 = vmatpush1.bf16.msra.mxu0 0
      %1718 = vmatprep.mubr.bf16.mxu0 0
      %1719 = vmatmul.mubr.bf16.gmra.mrb[0].mxu0 %v1636
      %v1720 = vpop.f32.mrb[0].mxu0
      %v1721 = vadd.f32 0.0, %v1720
      %v1722 = vpop.f32.mrb[0].mxu0
      %v1723 = vpop.f32.mrb[0].mxu0
      %v1724 = vadd.f32 0.0, %v1723
      %v1725 = vpop.f32.mrb[0].mxu0
      %1726 = vmatprep.mubr.bf16.mxu0 0
      %1727 = vmatmul.mubr.bf16.gmra.mrb[0].mxu0 %v1639
      %v1728 = vpop.f32.mrb[0].mxu0
      %v1729 = vadd.f32 0.0, %v1728
      %v1730 = vpop.f32.mrb[0].mxu0
      %v1731 = vpop.f32.mrb[0].mxu0
      %v1732 = vadd.f32 0.0, %v1731
      %v1733 = vpop.f32.mrb[0].mxu0
      %1734 = vmatprep.mubr.bf16.mxu0 0
      %1735 = vmatmul.mubr.bf16.gmra.mrb[0].mxu0 %v1642
      %v1736 = vpop.f32.mrb[0].mxu0
      %v1737 = vadd.f32 0.0, %v1736
      %v1738 = vpop.f32.mrb[0].mxu0
      %v1739 = vpop.f32.mrb[0].mxu0
      %v1740 = vadd.f32 0.0, %v1739
      %v1741 = vpop.f32.mrb[0].mxu0
      %1742 = vmatprep.mubr.bf16.mxu0 0
      %1743 = vmatmul.mubr.bf16.gmra.mrb[0].mxu0 %v1645
      %v1744 = vpop.f32.mrb[0].mxu0
      %v1745 = vadd.f32 0.0, %v1744
      %v1746 = vpop.f32.mrb[0].mxu0
      %v1747 = vpop.f32.mrb[0].mxu0
      %v1748 = vadd.f32 0.0, %v1747
      %v1749 = vpop.f32.mrb[0].mxu0
      %1750 = vmatprep.mubr.bf16.mxu0 0
      %1751 = vmatmul.mubr.bf16.gmra.mrb[0].mxu0 %v1648
      %v1752 = vpop.f32.mrb[0].mxu0
      %v1753 = vadd.f32 0.0, %v1752
      %v1754 = vpop.f32.mrb[0].mxu0
      %v1755 = vpop.f32.mrb[0].mxu0
      %v1756 = vadd.f32 0.0, %v1755
      %v1757 = vpop.f32.mrb[0].mxu0
      %1758 = vmatprep.mubr.bf16.mxu0 0
      %1759 = vmatmul.mubr.bf16.gmra.mrb[0].mxu0 %v1651
      %v1760 = vpop.f32.mrb[0].mxu0
      %v1761 = vadd.f32 0.0, %v1760
      %v1762 = vpop.f32.mrb[0].mxu0
      %v1763 = vpop.f32.mrb[0].mxu0
      %v1764 = vadd.f32 0.0, %v1763
      %v1765 = vpop.f32.mrb[0].mxu0
      %1766 = vmatprep.mubr.bf16.mxu0 0
      %1767 = vmatmul.mubr.bf16.gmra.mrb[0].mxu0 %v1654
      %v1768 = vpop.f32.mrb[0].mxu0
      %v1769 = vadd.f32 0.0, %v1768
      %v1770 = vpop.f32.mrb[0].mxu0
      %v1771 = vpop.f32.mrb[0].mxu0
      %v1772 = vadd.f32 0.0, %v1771
      %v1773 = vpop.f32.mrb[0].mxu0
      %1774 = vmatprep.mubr.bf16.mxu0 0
      %1775 = vmatmul.mubr.bf16.gmra.mrb[0].mxu0 %v1657
      %v1776 = vpop.f32.mrb[0].mxu0
      %v1777 = vadd.f32 0.0, %v1776
      %v1778 = vpop.f32.mrb[0].mxu0
      %v1779 = vpop.f32.mrb[0].mxu0
      %v1780 = vadd.f32 0.0, %v1779
      %v1781 = vpop.f32.mrb[0].mxu0
      %1782 = vmatprep.mubr.bf16.mxu0 0
      %1783 = vmatmul.mubr.bf16.gmra.mrb[0].mxu0 %v1660
      %v1784 = vpop.f32.mrb[0].mxu0
      %v1785 = vadd.f32 0.0, %v1784
      %v1786 = vpop.f32.mrb[0].mxu0
      %v1787 = vpop.f32.mrb[0].mxu0
      %v1788 = vadd.f32 0.0, %v1787
      %v1789 = vpop.f32.mrb[0].mxu0
      %1790 = vmatprep.mubr.bf16.mxu0 0
      %1791 = vmatmul.mubr.bf16.gmra.mrb[0].mxu0 %v1663
      %v1792 = vpop.f32.mrb[0].mxu0
      %v1793 = vadd.f32 0.0, %v1792
      %v1794 = vpop.f32.mrb[0].mxu0
      %v1795 = vpop.f32.mrb[0].mxu0
      %v1796 = vadd.f32 0.0, %v1795
      %v1797 = vpop.f32.mrb[0].mxu0
      %1798 = vmatprep.mubr.bf16.mxu0 0
      %1799 = vmatmul.mubr.bf16.gmra.mrb[0].mxu0 %v1666
      %v1800 = vpop.f32.mrb[0].mxu0
      %v1801 = vadd.f32 0.0, %v1800
      %v1802 = vpop.f32.mrb[0].mxu0
      %v1803 = vpop.f32.mrb[0].mxu0
      %v1804 = vadd.f32 0.0, %v1803
      %v1805 = vpop.f32.mrb[0].mxu0
      %1806 = vmatprep.mubr.bf16.mxu0 0
      %1807 = vmatmul.mubr.bf16.gmra.mrb[0].mxu0 %v1669
      %v1808 = vpop.f32.mrb[0].mxu0
      %v1809 = vadd.f32 0.0, %v1808
      %v1810 = vpop.f32.mrb[0].mxu0
      %v1811 = vpop.f32.mrb[0].mxu0
      %v1812 = vadd.f32 0.0, %v1811
      %v1813 = vpop.f32.mrb[0].mxu0
      %1814 = vmatprep.mubr.bf16.mxu0 0
      %1815 = vmatmul.mubr.bf16.gmra.mrb[0].mxu0 %v1672
      %v1816 = vpop.f32.mrb[0].mxu0
      %v1817 = vadd.f32 0.0, %v1816
      %v1818 = vpop.f32.mrb[0].mxu0
      %v1819 = vpop.f32.mrb[0].mxu0
      %v1820 = vadd.f32 0.0, %v1819
      %v1821 = vpop.f32.mrb[0].mxu0
      %1822 = vmatprep.mubr.bf16.mxu0 0
      %1823 = vmatmul.mubr.bf16.gmra.mrb[0].mxu0 %v1675
      %v1824 = vpop.f32.mrb[0].mxu0
      %v1825 = vadd.f32 0.0, %v1824
      %v1826 = vpop.f32.mrb[0].mxu0
      %v1827 = vpop.f32.mrb[0].mxu0
      %v1828 = vadd.f32 0.0, %v1827
      %v1829 = vpop.f32.mrb[0].mxu0
      %1830 = vmatprep.mubr.bf16.mxu0 0
      %1831 = vmatmul.mubr.bf16.gmra.mrb[0].mxu0 %v1678
      %v1832 = vpop.f32.mrb[0].mxu0
      %v1833 = vadd.f32 0.0, %v1832
      %v1834 = vpop.f32.mrb[0].mxu0
      %v1835 = vpop.f32.mrb[0].mxu0
      %v1836 = vadd.f32 0.0, %v1835
      %v1837 = vpop.f32.mrb[0].mxu0
      %1838 = vmatprep.mubr.bf16.mxu0 0
      %1839 = vmatmul.mubr.bf16.gmra.mrb[0].mxu0 %v1681
      %v1840 = vpop.f32.mrb[0].mxu0
      %v1841 = vadd.f32 0.0, %v1840
      %v1842 = vpop.f32.mrb[0].mxu0
      %v1843 = vpop.f32.mrb[0].mxu0
      %v1844 = vadd.f32 0.0, %v1843
      %v1845 = vpop.f32.mrb[0].mxu0
      %1846 = vdwg.mxu0
      %v1847 = vadd.f32 %v1483, %v1721
      %v1848 = vadd.f32 %v1484, %v1724
      %v1849 = vadd.f32 %v1485, %v1729
      %v1850 = vadd.f32 %v1486, %v1732
      %v1851 = vadd.f32 %v1487, %v1737
      %v1852 = vadd.f32 %v1488, %v1740
      %v1853 = vadd.f32 %v1489, %v1745
      %v1854 = vadd.f32 %v1490, %v1748
      %v1855 = vadd.f32 %v1491, %v1753
      %v1856 = vadd.f32 %v1492, %v1756
      %v1857 = vadd.f32 %v1493, %v1761
      %v1858 = vadd.f32 %v1494, %v1764
      %v1859 = vadd.f32 %v1495, %v1769
      %v1860 = vadd.f32 %v1496, %v1772
      %v1861 = vadd.f32 %v1497, %v1777
      %v1862 = vadd.f32 %v1498, %v1780
      %v1863 = vadd.f32 %v1499, %v1785
      %v1864 = vadd.f32 %v1500, %v1788
      %v1865 = vadd.f32 %v1501, %v1793
      %v1866 = vadd.f32 %v1502, %v1796
      %v1867 = vadd.f32 %v1503, %v1801
      %v1868 = vadd.f32 %v1504, %v1804
      %v1869 = vadd.f32 %v1505, %v1809
      %v1870 = vadd.f32 %v1506, %v1812
      %v1871 = vadd.f32 %v1507, %v1817
      %v1872 = vadd.f32 %v1508, %v1820
      %v1873 = vadd.f32 %v1509, %v1825
      %v1874 = vadd.f32 %v1510, %v1828
      %v1875 = vadd.f32 %v1511, %v1833
      %v1876 = vadd.f32 %v1512, %v1836
      %v1877 = vadd.f32 %v1513, %v1841
      %v1878 = vadd.f32 %v1514, %v1844
      %v1879 = vld [vmem:[%s266 + $0x10] sm:$0xf]
      %v1880 = vld [vmem:[%s266 + $0x14] sm:$0xf]
      %v1881 = vld [vmem:[%s266 + $0x18] sm:$0xf]
      %v1882 = vld [vmem:[%s266 + $0x1c] sm:$0xf]
      %v1883 = vld [vmem:[%s266 + $0x20] sm:$0xf]
      %v1884 = vld [vmem:[%s266 + $0x24] sm:$0xf]
      %v1885 = vld [vmem:[%s266 + $0x28] sm:$0xf]
      %v1886 = vld [vmem:[%s266 + $0x2c] sm:$0xf]
      %v1887 = vld [vmem:[%s266 + $0x30] sm:$0xf]
      %v1888 = vld [vmem:[%s266 + $0x34] sm:$0xf]
      %v1889 = vld [vmem:[%s266 + $0x38] sm:$0xf]
      %v1890 = vld [vmem:[%s266 + $0x3c] sm:$0xf]
      %v1891 = vld [vmem:[%s266 + $0x40] sm:$0xf]
      %v1892 = vld [vmem:[%s266 + $0x44] sm:$0xf]
      %v1893 = vld [vmem:[%s266 + $0x48] sm:$0xf]
      %v1894 = vld [vmem:[%s266 + $0x4c] sm:$0xf]
      %v1895 = vld [vmem:[%s266 + $0x50] sm:$0xf]
      %v1896 = vld [vmem:[%s266 + $0x54] sm:$0xf]
      %v1897 = vld [vmem:[%s266 + $0x58] sm:$0xf]
      %v1898 = vld [vmem:[%s266 + $0x5c] sm:$0xf]
      %v1899 = vld [vmem:[%s266 + $0x60] sm:$0xf]
      %v1900 = vld [vmem:[%s266 + $0x64] sm:$0xf]
      %v1901 = vld [vmem:[%s266 + $0x68] sm:$0xf]
      %v1902 = vld [vmem:[%s266 + $0x6c] sm:$0xf]
      %v1903 = vld [vmem:[%s266 + $0x70] sm:$0xf]
      %v1904 = vld [vmem:[%s266 + $0x74] sm:$0xf]
      %v1905 = vld [vmem:[%s266 + $0x78] sm:$0xf]
      %v1906 = vld [vmem:[%s266 + $0x7c] sm:$0xf]
      %v1907 = vld [vmem:[%s266 + $0x80] sm:$0xf]
      %v1908 = vld [vmem:[%s266 + $0x84] sm:$0xf]
      %v1909 = vld [vmem:[%s266 + $0x88] sm:$0xf]
      %v1910 = vld [vmem:[%s266 + $0x8c] sm:$0xf]
      %s1911 = scalar_lea.vmem %s3, 16
      %v1912 = vld [vmem:[%s1911] sm:$0xf]
      %v1913 = vld [vmem:[%s1911 + $0x4] sm:$0x3]
      %v1946 = vunpack.c.l.b16 %v1879
      %v1947 = vunpack.c.l.b16 %v1880
      %v1948 = vunpack.c.l.b16 %v1881
      %v1949 = vunpack.c.l.b16 %v1882
      %v1950 = vunpack.c.l.b16 %v1883
      %v1951 = vunpack.c.l.b16 %v1884
      %v1952 = vunpack.c.l.b16 %v1885
      %v1953 = vunpack.c.l.b16 %v1886
      %v1954 = vunpack.c.l.b16 %v1887
      %v1955 = vunpack.c.l.b16 %v1888
      %v1956 = vunpack.c.l.b16 %v1889
      %v1957 = vunpack.c.l.b16 %v1890
      %v1958 = vunpack.c.l.b16 %v1891
      %v1959 = vunpack.c.l.b16 %v1892
      %v1960 = vunpack.c.l.b16 %v1893
      %v1961 = vunpack.c.l.b16 %v1894
      %v1962 = vunpack.c.l.b16 %v1895
      %v1963 = vunpack.c.l.b16 %v1896
      %v1964 = vunpack.c.l.b16 %v1897
      %v1965 = vunpack.c.l.b16 %v1898
      %v1966 = vunpack.c.l.b16 %v1899
      %v1967 = vunpack.c.l.b16 %v1900
      %v1968 = vunpack.c.l.b16 %v1901
      %v1969 = vunpack.c.l.b16 %v1902
      %v1970 = vunpack.c.l.b16 %v1903
      %v1971 = vunpack.c.l.b16 %v1904
      %v1972 = vunpack.c.l.b16 %v1905
      %v1973 = vunpack.c.l.b16 %v1906
      %v1974 = vunpack.c.l.b16 %v1907
      %v1975 = vunpack.c.l.b16 %v1908
      %v1976 = vunpack.c.l.b16 %v1909
      %v1977 = vunpack.c.l.b16 %v1910
      %v1978 = vpack.c.b16 %v1947, %v1946
      %v1979 = vpack.c.b16 %v1949, %v1948
      %v1980 = vpack.c.b16 %v1951, %v1950
      %v1981 = vpack.c.b16 %v1953, %v1952
      %v1982 = vpack.c.b16 %v1955, %v1954
      %v1983 = vpack.c.b16 %v1957, %v1956
      %v1984 = vpack.c.b16 %v1959, %v1958
      %v1985 = vpack.c.b16 %v1961, %v1960
      %v1986 = vpack.c.b16 %v1963, %v1962
      %v1987 = vpack.c.b16 %v1965, %v1964
      %v1988 = vpack.c.b16 %v1967, %v1966
      %v1989 = vpack.c.b16 %v1969, %v1968
      %v1990 = vpack.c.b16 %v1971, %v1970
      %v1991 = vpack.c.b16 %v1973, %v1972
      %v1992 = vpack.c.b16 %v1975, %v1974
      %v1993 = vpack.c.b16 %v1977, %v1976
      %v1996 = vunpack.c.l.b16 %v1912
      %v1997 = vunpack.c.l.b16 %v1913
      %v1998 = vpack.c.b16 %v1997, %v1996
      %v2000 = vsel %vm397, %v1978, 0
      %v2003 = vsel %vm397, %v1979, 0
      %v2006 = vsel %vm397, %v1980, 0
      %v2009 = vsel %vm397, %v1981, 0
      %v2012 = vsel %vm397, %v1982, 0
      %v2015 = vsel %vm397, %v1983, 0
      %v2018 = vsel %vm397, %v1984, 0
      %v2021 = vsel %vm397, %v1985, 0
      %v2024 = vsel %vm397, %v1986, 0
      %v2027 = vsel %vm397, %v1987, 0
      %v2030 = vsel %vm397, %v1988, 0
      %v2033 = vsel %vm397, %v1989, 0
      %v2036 = vsel %vm397, %v1990, 0
      %v2039 = vsel %vm397, %v1991, 0
      %v2042 = vsel %vm397, %v1992, 0
      %v2045 = vsel %vm397, %v1993, 0
      %v2048 = vsel %vm446, %v1998, 0
      %2050 = vmatprep.subr.bf16.mxu0 0
      %2051 = vmatpush1.bf16.msra.mxu0 %v2048
      %2052 = vmatprep.subr.bf16.mxu0 0
      %2053 = vmatpush1.bf16.msra.mxu0 0
      %2054 = vmatprep.subr.bf16.mxu0 0
      %2055 = vmatpush1.bf16.msra.mxu0 0
      %2056 = vmatprep.subr.bf16.mxu0 0
      %2057 = vmatpush1.bf16.msra.mxu0 0
      %2058 = vmatprep.subr.bf16.mxu0 0
      %2059 = vmatpush1.bf16.msra.mxu0 0
      %2060 = vmatprep.subr.bf16.mxu0 0
      %2061 = vmatpush1.bf16.msra.mxu0 0
      %2062 = vmatprep.subr.bf16.mxu0 0
      %2063 = vmatpush1.bf16.msra.mxu0 0
      %2064 = vmatprep.subr.bf16.mxu0 0
      %2065 = vmatpush1.bf16.msra.mxu0 0
      %2066 = vmatprep.subr.bf16.mxu0 0
      %2067 = vmatpush1.bf16.msra.mxu0 0
      %2068 = vmatprep.subr.bf16.mxu0 0
      %2069 = vmatpush1.bf16.msra.mxu0 0
      %2070 = vmatprep.subr.bf16.mxu0 0
      %2071 = vmatpush1.bf16.msra.mxu0 0
      %2072 = vmatprep.subr.bf16.mxu0 0
      %2073 = vmatpush1.bf16.msra.mxu0 0
      %2074 = vmatprep.subr.bf16.mxu0 0
      %2075 = vmatpush1.bf16.msra.mxu0 0
      %2076 = vmatprep.subr.bf16.mxu0 0
      %2077 = vmatpush1.bf16.msra.mxu0 0
      %2078 = vmatprep.subr.bf16.mxu0 0
      %2079 = vmatpush1.bf16.msra.mxu0 0
      %2080 = vmatprep.subr.bf16.mxu0 0
      %2081 = vmatpush1.bf16.msra.mxu0 0
      %2082 = vmatprep.mubr.bf16.mxu0 0
      %2083 = vmatmul.mubr.bf16.gmra.mrb[0].mxu0 %v2000
      %v2084 = vpop.f32.mrb[0].mxu0
      %v2085 = vadd.f32 0.0, %v2084
      %v2086 = vpop.f32.mrb[0].mxu0
      %v2087 = vpop.f32.mrb[0].mxu0
      %v2088 = vadd.f32 0.0, %v2087
      %v2089 = vpop.f32.mrb[0].mxu0
      %2090 = vmatprep.mubr.bf16.mxu0 0
      %2091 = vmatmul.mubr.bf16.gmra.mrb[0].mxu0 %v2003
      %v2092 = vpop.f32.mrb[0].mxu0
      %v2093 = vadd.f32 0.0, %v2092
      %v2094 = vpop.f32.mrb[0].mxu0
      %v2095 = vpop.f32.mrb[0].mxu0
      %v2096 = vadd.f32 0.0, %v2095
      %v2097 = vpop.f32.mrb[0].mxu0
      %2098 = vmatprep.mubr.bf16.mxu0 0
      %2099 = vmatmul.mubr.bf16.gmra.mrb[0].mxu0 %v2006
      %v2100 = vpop.f32.mrb[0].mxu0
      %v2101 = vadd.f32 0.0, %v2100
      %v2102 = vpop.f32.mrb[0].mxu0
      %v2103 = vpop.f32.mrb[0].mxu0
      %v2104 = vadd.f32 0.0, %v2103
      %v2105 = vpop.f32.mrb[0].mxu0
      %2106 = vmatprep.mubr.bf16.mxu0 0
      %2107 = vmatmul.mubr.bf16.gmra.mrb[0].mxu0 %v2009
      %v2108 = vpop.f32.mrb[0].mxu0
      %v2109 = vadd.f32 0.0, %v2108
      %v2110 = vpop.f32.mrb[0].mxu0
      %v2111 = vpop.f32.mrb[0].mxu0
      %v2112 = vadd.f32 0.0, %v2111
      %v2113 = vpop.f32.mrb[0].mxu0
      %2114 = vmatprep.mubr.bf16.mxu0 0
      %2115 = vmatmul.mubr.bf16.gmra.mrb[0].mxu0 %v2012
      %v2116 = vpop.f32.mrb[0].mxu0
      %v2117 = vadd.f32 0.0, %v2116
      %v2118 = vpop.f32.mrb[0].mxu0
      %v2119 = vpop.f32.mrb[0].mxu0
      %v2120 = vadd.f32 0.0, %v2119
      %v2121 = vpop.f32.mrb[0].mxu0
      %2122 = vmatprep.mubr.bf16.mxu0 0
      %2123 = vmatmul.mubr.bf16.gmra.mrb[0].mxu0 %v2015
      %v2124 = vpop.f32.mrb[0].mxu0
      %v2125 = vadd.f32 0.0, %v2124
      %v2126 = vpop.f32.mrb[0].mxu0
      %v2127 = vpop.f32.mrb[0].mxu0
      %v2128 = vadd.f32 0.0, %v2127
      %v2129 = vpop.f32.mrb[0].mxu0
      %2130 = vmatprep.mubr.bf16.mxu0 0
      %2131 = vmatmul.mubr.bf16.gmra.mrb[0].mxu0 %v2018
      %v2132 = vpop.f32.mrb[0].mxu0
      %v2133 = vadd.f32 0.0, %v2132
      %v2134 = vpop.f32.mrb[0].mxu0
      %v2135 = vpop.f32.mrb[0].mxu0
      %v2136 = vadd.f32 0.0, %v2135
      %v2137 = vpop.f32.mrb[0].mxu0
      %2138 = vmatprep.mubr.bf16.mxu0 0
      %2139 = vmatmul.mubr.bf16.gmra.mrb[0].mxu0 %v2021
      %v2140 = vpop.f32.mrb[0].mxu0
      %v2141 = vadd.f32 0.0, %v2140
      %v2142 = vpop.f32.mrb[0].mxu0
      %v2143 = vpop.f32.mrb[0].mxu0
      %v2144 = vadd.f32 0.0, %v2143
      %v2145 = vpop.f32.mrb[0].mxu0
      %2146 = vmatprep.mubr.bf16.mxu0 0
      %2147 = vmatmul.mubr.bf16.gmra.mrb[0].mxu0 %v2024
      %v2148 = vpop.f32.mrb[0].mxu0
      %v2149 = vadd.f32 0.0, %v2148
      %v2150 = vpop.f32.mrb[0].mxu0
      %v2151 = vpop.f32.mrb[0].mxu0
      %v2152 = vadd.f32 0.0, %v2151
      %v2153 = vpop.f32.mrb[0].mxu0
      %2154 = vmatprep.mubr.bf16.mxu0 0
      %2155 = vmatmul.mubr.bf16.gmra.mrb[0].mxu0 %v2027
      %v2156 = vpop.f32.mrb[0].mxu0
      %v2157 = vadd.f32 0.0, %v2156
      %v2158 = vpop.f32.mrb[0].mxu0
      %v2159 = vpop.f32.mrb[0].mxu0
      %v2160 = vadd.f32 0.0, %v2159
      %v2161 = vpop.f32.mrb[0].mxu0
      %2162 = vmatprep.mubr.bf16.mxu0 0
      %2163 = vmatmul.mubr.bf16.gmra.mrb[0].mxu0 %v2030
      %v2164 = vpop.f32.mrb[0].mxu0
      %v2165 = vadd.f32 0.0, %v2164
      %v2166 = vpop.f32.mrb[0].mxu0
      %v2167 = vpop.f32.mrb[0].mxu0
      %v2168 = vadd.f32 0.0, %v2167
      %v2169 = vpop.f32.mrb[0].mxu0
      %2170 = vmatprep.mubr.bf16.mxu0 0
      %2171 = vmatmul.mubr.bf16.gmra.mrb[0].mxu0 %v2033
      %v2172 = vpop.f32.mrb[0].mxu0
      %v2173 = vadd.f32 0.0, %v2172
      %v2174 = vpop.f32.mrb[0].mxu0
      %v2175 = vpop.f32.mrb[0].mxu0
      %v2176 = vadd.f32 0.0, %v2175
      %v2177 = vpop.f32.mrb[0].mxu0
      %2178 = vmatprep.mubr.bf16.mxu0 0
      %2179 = vmatmul.mubr.bf16.gmra.mrb[0].mxu0 %v2036
      %v2180 = vpop.f32.mrb[0].mxu0
      %v2181 = vadd.f32 0.0, %v2180
      %v2182 = vpop.f32.mrb[0].mxu0
      %v2183 = vpop.f32.mrb[0].mxu0
      %v2184 = vadd.f32 0.0, %v2183
      %v2185 = vpop.f32.mrb[0].mxu0
      %2186 = vmatprep.mubr.bf16.mxu0 0
      %2187 = vmatmul.mubr.bf16.gmra.mrb[0].mxu0 %v2039
      %v2188 = vpop.f32.mrb[0].mxu0
      %v2189 = vadd.f32 0.0, %v2188
      %v2190 = vpop.f32.mrb[0].mxu0
      %v2191 = vpop.f32.mrb[0].mxu0
      %v2192 = vadd.f32 0.0, %v2191
      %v2193 = vpop.f32.mrb[0].mxu0
      %2194 = vmatprep.mubr.bf16.mxu0 0
      %2195 = vmatmul.mubr.bf16.gmra.mrb[0].mxu0 %v2042
      %v2196 = vpop.f32.mrb[0].mxu0
      %v2197 = vadd.f32 0.0, %v2196
      %v2198 = vpop.f32.mrb[0].mxu0
      %v2199 = vpop.f32.mrb[0].mxu0
      %v2200 = vadd.f32 0.0, %v2199
      %v2201 = vpop.f32.mrb[0].mxu0
      %2202 = vmatprep.mubr.bf16.mxu0 0
      %2203 = vmatmul.mubr.bf16.gmra.mrb[0].mxu0 %v2045
      %v2204 = vpop.f32.mrb[0].mxu0
      %v2205 = vadd.f32 0.0, %v2204
      %v2206 = vpop.f32.mrb[0].mxu0
      %v2207 = vpop.f32.mrb[0].mxu0
      %v2208 = vadd.f32 0.0, %v2207
      %v2209 = vpop.f32.mrb[0].mxu0
      %2210 = vdwg.mxu0
      %v2211 = vadd.f32 %v1847, %v2085
      %v2212 = vadd.f32 %v1848, %v2088
      %v2213 = vadd.f32 %v1849, %v2093
      %v2214 = vadd.f32 %v1850, %v2096
      %v2215 = vadd.f32 %v1851, %v2101
      %v2216 = vadd.f32 %v1852, %v2104
      %v2217 = vadd.f32 %v1853, %v2109
      %v2218 = vadd.f32 %v1854, %v2112
      %v2219 = vadd.f32 %v1855, %v2117
      %v2220 = vadd.f32 %v1856, %v2120
      %v2221 = vadd.f32 %v1857, %v2125
      %v2222 = vadd.f32 %v1858, %v2128
      %v2223 = vadd.f32 %v1859, %v2133
      %v2224 = vadd.f32 %v1860, %v2136
      %v2225 = vadd.f32 %v1861, %v2141
      %v2226 = vadd.f32 %v1862, %v2144
      %v2227 = vadd.f32 %v1863, %v2149
      %v2228 = vadd.f32 %v1864, %v2152
      %v2229 = vadd.f32 %v1865, %v2157
      %v2230 = vadd.f32 %v1866, %v2160
      %v2231 = vadd.f32 %v1867, %v2165
      %v2232 = vadd.f32 %v1868, %v2168
      %v2233 = vadd.f32 %v1869, %v2173
      %v2234 = vadd.f32 %v1870, %v2176
      %v2235 = vadd.f32 %v1871, %v2181
      %v2236 = vadd.f32 %v1872, %v2184
      %v2237 = vadd.f32 %v1873, %v2189
      %v2238 = vadd.f32 %v1874, %v2192
      %v2239 = vadd.f32 %v1875, %v2197
      %v2240 = vadd.f32 %v1876, %v2200
      %v2241 = vadd.f32 %v1877, %v2205
      %v2242 = vadd.f32 %v1878, %v2208
      %vm2243 = vcmp.ge.f32.partialorder %v2211, 0.0
      %vm2244 = vcmp.ge.f32.partialorder %v2212, 0.0
      %vm2245 = vcmp.ge.f32.partialorder %v2213, 0.0
      %vm2246 = vcmp.ge.f32.partialorder %v2214, 0.0
      %vm2247 = vcmp.ge.f32.partialorder %v2215, 0.0
      %vm2248 = vcmp.ge.f32.partialorder %v2216, 0.0
      %vm2249 = vcmp.ge.f32.partialorder %v2217, 0.0
      %vm2250 = vcmp.ge.f32.partialorder %v2218, 0.0
      %vm2251 = vcmp.ge.f32.partialorder %v2219, 0.0
      %vm2252 = vcmp.ge.f32.partialorder %v2220, 0.0
      %vm2253 = vcmp.ge.f32.partialorder %v2221, 0.0
      %vm2254 = vcmp.ge.f32.partialorder %v2222, 0.0
      %vm2255 = vcmp.ge.f32.partialorder %v2223, 0.0
      %vm2256 = vcmp.ge.f32.partialorder %v2224, 0.0
      %vm2257 = vcmp.ge.f32.partialorder %v2225, 0.0
      %vm2258 = vcmp.ge.f32.partialorder %v2226, 0.0
      %vm2259 = vcmp.ge.f32.partialorder %v2227, 0.0
      %vm2260 = vcmp.ge.f32.partialorder %v2228, 0.0
      %vm2261 = vcmp.ge.f32.partialorder %v2229, 0.0
      %vm2262 = vcmp.ge.f32.partialorder %v2230, 0.0
      %vm2263 = vcmp.ge.f32.partialorder %v2231, 0.0
      %vm2264 = vcmp.ge.f32.partialorder %v2232, 0.0
      %vm2265 = vcmp.ge.f32.partialorder %v2233, 0.0
      %vm2266 = vcmp.ge.f32.partialorder %v2234, 0.0
      %vm2267 = vcmp.ge.f32.partialorder %v2235, 0.0
      %vm2268 = vcmp.ge.f32.partialorder %v2236, 0.0
      %vm2269 = vcmp.ge.f32.partialorder %v2237, 0.0
      %vm2270 = vcmp.ge.f32.partialorder %v2238, 0.0
      %vm2271 = vcmp.ge.f32.partialorder %v2239, 0.0
      %vm2272 = vcmp.ge.f32.partialorder %v2240, 0.0
      %vm2273 = vcmp.ge.f32.partialorder %v2241, 0.0
      %vm2274 = vcmp.ge.f32.partialorder %v2242, 0.0
      %v2275 = vmul.f32 %v2211, 0.2
      %v2276 = vmul.f32 %v2212, 0.2
      %v2277 = vmul.f32 %v2213, 0.2
      %v2278 = vmul.f32 %v2214, 0.2
      %v2279 = vmul.f32 %v2215, 0.2
      %v2280 = vmul.f32 %v2216, 0.2
      %v2281 = vmul.f32 %v2217, 0.2
      %v2282 = vmul.f32 %v2218, 0.2
      %v2283 = vmul.f32 %v2219, 0.2
      %v2284 = vmul.f32 %v2220, 0.2
      %v2285 = vmul.f32 %v2221, 0.2
      %v2286 = vmul.f32 %v2222, 0.2
      %v2287 = vmul.f32 %v2223, 0.2
      %v2288 = vmul.f32 %v2224, 0.2
      %v2289 = vmul.f32 %v2225, 0.2
      %v2290 = vmul.f32 %v2226, 0.2
      %v2291 = vmul.f32 %v2227, 0.2
      %v2292 = vmul.f32 %v2228, 0.2
      %v2293 = vmul.f32 %v2229, 0.2
      %v2294 = vmul.f32 %v2230, 0.2
      %v2295 = vmul.f32 %v2231, 0.2
      %v2296 = vmul.f32 %v2232, 0.2
      %v2297 = vmul.f32 %v2233, 0.2
      %v2298 = vmul.f32 %v2234, 0.2
      %v2299 = vmul.f32 %v2235, 0.2
      %v2300 = vmul.f32 %v2236, 0.2
      %v2301 = vmul.f32 %v2237, 0.2
      %v2302 = vmul.f32 %v2238, 0.2
      %v2303 = vmul.f32 %v2239, 0.2
      %v2304 = vmul.f32 %v2240, 0.2
      %v2305 = vmul.f32 %v2241, 0.2
      %v2306 = vmul.f32 %v2242, 0.2
      %v2307 = vsel %vm2243, %v2211, %v2275
      %v2308 = vsel %vm2244, %v2212, %v2276
      %v2309 = vsel %vm2245, %v2213, %v2277
      %v2310 = vsel %vm2246, %v2214, %v2278
      %v2311 = vsel %vm2247, %v2215, %v2279
      %v2312 = vsel %vm2248, %v2216, %v2280
      %v2313 = vsel %vm2249, %v2217, %v2281
      %v2314 = vsel %vm2250, %v2218, %v2282
      %v2315 = vsel %vm2251, %v2219, %v2283
      %v2316 = vsel %vm2252, %v2220, %v2284
      %v2317 = vsel %vm2253, %v2221, %v2285
      %v2318 = vsel %vm2254, %v2222, %v2286
      %v2319 = vsel %vm2255, %v2223, %v2287
      %v2320 = vsel %vm2256, %v2224, %v2288
      %v2321 = vsel %vm2257, %v2225, %v2289
      %v2322 = vsel %vm2258, %v2226, %v2290
      %v2323 = vsel %vm2259, %v2227, %v2291
      %v2324 = vsel %vm2260, %v2228, %v2292
      %v2325 = vsel %vm2261, %v2229, %v2293
      %v2326 = vsel %vm2262, %v2230, %v2294
      %v2327 = vsel %vm2263, %v2231, %v2295
      %v2328 = vsel %vm2264, %v2232, %v2296
      %v2329 = vsel %vm2265, %v2233, %v2297
      %v2330 = vsel %vm2266, %v2234, %v2298
      %v2331 = vsel %vm2267, %v2235, %v2299
      %v2332 = vsel %vm2268, %v2236, %v2300
      %v2333 = vsel %vm2269, %v2237, %v2301
      %v2334 = vsel %vm2270, %v2238, %v2302
      %v2335 = vsel %vm2271, %v2239, %v2303
      %v2336 = vsel %vm2272, %v2240, %v2304
      %v2337 = vsel %vm2273, %v2241, %v2305
      %v2338 = vsel %vm2274, %v2242, %v2306
      %v2339 = vld [vmem:[%s4] sm:$0x1]
      %v2341 = vlaneseq
      %v2342 = vshrl.u32 %v2341, 7
      %v2343 = vsub.s32 0, %v2342
      %v2344 = vrot.slane %v2339, %v2343
      %v2346 = vmul.f32 %v2307, %v2344
      %v2347 = vmul.f32 %v2308, %v2344
      %v2348 = vmul.f32 %v2309, %v2344
      %v2349 = vmul.f32 %v2310, %v2344
      %v2350 = vmul.f32 %v2311, %v2344
      %v2351 = vmul.f32 %v2312, %v2344
      %v2352 = vmul.f32 %v2313, %v2344
      %v2353 = vmul.f32 %v2314, %v2344
      %v2354 = vmul.f32 %v2315, %v2344
      %v2355 = vmul.f32 %v2316, %v2344
      %v2356 = vmul.f32 %v2317, %v2344
      %v2357 = vmul.f32 %v2318, %v2344
      %v2358 = vmul.f32 %v2319, %v2344
      %v2359 = vmul.f32 %v2320, %v2344
      %v2360 = vmul.f32 %v2321, %v2344
      %v2361 = vmul.f32 %v2322, %v2344
      %v2362 = vmul.f32 %v2323, %v2344
      %v2363 = vmul.f32 %v2324, %v2344
      %v2364 = vmul.f32 %v2325, %v2344
      %v2365 = vmul.f32 %v2326, %v2344
      %v2366 = vmul.f32 %v2327, %v2344
      %v2367 = vmul.f32 %v2328, %v2344
      %v2368 = vmul.f32 %v2329, %v2344
      %v2369 = vmul.f32 %v2330, %v2344
      %v2370 = vmul.f32 %v2331, %v2344
      %v2371 = vmul.f32 %v2332, %v2344
      %v2372 = vmul.f32 %v2333, %v2344
      %v2373 = vmul.f32 %v2334, %v2344
      %v2374 = vmul.f32 %v2335, %v2344
      %v2375 = vmul.f32 %v2336, %v2344
      %v2376 = vmul.f32 %v2337, %v2344
      %v2377 = vmul.f32 %v2338, %v2344
      %v2378 = vld [vmem:[%s5] sm:$0x1]
      %v2380 = vlaneseq
      %v2381 = vshrl.u32 %v2380, 7
      %v2382 = vsub.s32 0, %v2381
      %v2383 = vrot.slane %v2378, %v2382
      %v2385 = vadd.f32 %v2346, %v2383
      %v2386 = vadd.f32 %v2347, %v2383
      %v2387 = vadd.f32 %v2348, %v2383
      %v2388 = vadd.f32 %v2349, %v2383
      %v2389 = vadd.f32 %v2350, %v2383
      %v2390 = vadd.f32 %v2351, %v2383
      %v2391 = vadd.f32 %v2352, %v2383
      %v2392 = vadd.f32 %v2353, %v2383
      %v2393 = vadd.f32 %v2354, %v2383
      %v2394 = vadd.f32 %v2355, %v2383
      %v2395 = vadd.f32 %v2356, %v2383
      %v2396 = vadd.f32 %v2357, %v2383
      %v2397 = vadd.f32 %v2358, %v2383
      %v2398 = vadd.f32 %v2359, %v2383
      %v2399 = vadd.f32 %v2360, %v2383
      %v2400 = vadd.f32 %v2361, %v2383
      %v2401 = vadd.f32 %v2362, %v2383
      %v2402 = vadd.f32 %v2363, %v2383
      %v2403 = vadd.f32 %v2364, %v2383
      %v2404 = vadd.f32 %v2365, %v2383
      %v2405 = vadd.f32 %v2366, %v2383
      %v2406 = vadd.f32 %v2367, %v2383
      %v2407 = vadd.f32 %v2368, %v2383
      %v2408 = vadd.f32 %v2369, %v2383
      %v2409 = vadd.f32 %v2370, %v2383
      %v2410 = vadd.f32 %v2371, %v2383
      %v2411 = vadd.f32 %v2372, %v2383
      %v2412 = vadd.f32 %v2373, %v2383
      %v2413 = vadd.f32 %v2374, %v2383
      %v2414 = vadd.f32 %v2375, %v2383
      %v2415 = vadd.f32 %v2376, %v2383
      %v2416 = vadd.f32 %v2377, %v2383
      %v2417 = vpack.c.bf16 %v2386, %v2385
      %v2418 = vpack.c.bf16 %v2388, %v2387
      %v2419 = vpack.c.bf16 %v2390, %v2389
      %v2420 = vpack.c.bf16 %v2392, %v2391
      %v2421 = vpack.c.bf16 %v2394, %v2393
      %v2422 = vpack.c.bf16 %v2396, %v2395
      %v2423 = vpack.c.bf16 %v2398, %v2397
      %v2424 = vpack.c.bf16 %v2400, %v2399
      %v2425 = vpack.c.bf16 %v2402, %v2401
      %v2426 = vpack.c.bf16 %v2404, %v2403
      %v2427 = vpack.c.bf16 %v2406, %v2405
      %v2428 = vpack.c.bf16 %v2408, %v2407
      %v2429 = vpack.c.bf16 %v2410, %v2409
      %v2430 = vpack.c.bf16 %v2412, %v2411
      %v2431 = vpack.c.bf16 %v2414, %v2413
      %v2432 = vpack.c.bf16 %v2416, %v2415
      %v2449 = vunpack.c.l.b16 %v2417
      %v2450 = vunpack.c.h.b16 %v2417
      %v2451 = vunpack.c.l.b16 %v2418
      %v2452 = vunpack.c.h.b16 %v2418
      %v2453 = vunpack.c.l.b16 %v2419
      %v2454 = vunpack.c.h.b16 %v2419
      %v2455 = vunpack.c.l.b16 %v2420
      %v2456 = vunpack.c.h.b16 %v2420
      %v2457 = vunpack.c.l.b16 %v2421
      %v2458 = vunpack.c.h.b16 %v2421
      %v2459 = vunpack.c.l.b16 %v2422
      %v2460 = vunpack.c.h.b16 %v2422
      %v2461 = vunpack.c.l.b16 %v2423
      %v2462 = vunpack.c.h.b16 %v2423
      %v2463 = vunpack.c.l.b16 %v2424
      %v2464 = vunpack.c.h.b16 %v2424
      %v2465 = vunpack.c.l.b16 %v2425
      %v2466 = vunpack.c.h.b16 %v2425
      %v2467 = vunpack.c.l.b16 %v2426
      %v2468 = vunpack.c.h.b16 %v2426
      %v2469 = vunpack.c.l.b16 %v2427
      %v2470 = vunpack.c.h.b16 %v2427
      %v2471 = vunpack.c.l.b16 %v2428
      %v2472 = vunpack.c.h.b16 %v2428
      %v2473 = vunpack.c.l.b16 %v2429
      %v2474 = vunpack.c.h.b16 %v2429
      %v2475 = vunpack.c.l.b16 %v2430
      %v2476 = vunpack.c.h.b16 %v2430
      %v2477 = vunpack.c.l.b16 %v2431
      %v2478 = vunpack.c.h.b16 %v2431
      %v2479 = vunpack.c.l.b16 %v2432
      %v2480 = vunpack.c.h.b16 %v2432
      %v2481 = vpack.c.b16 %v2449, %v2449
      %v2482 = vpack.c.b16 %v2450, %v2450
      %v2483 = vpack.c.b16 %v2451, %v2451
      %v2484 = vpack.c.b16 %v2452, %v2452
      %v2485 = vpack.c.b16 %v2453, %v2453
      %v2486 = vpack.c.b16 %v2454, %v2454
      %v2487 = vpack.c.b16 %v2455, %v2455
      %v2488 = vpack.c.b16 %v2456, %v2456
      %v2489 = vpack.c.b16 %v2457, %v2457
      %v2490 = vpack.c.b16 %v2458, %v2458
      %v2491 = vpack.c.b16 %v2459, %v2459
      %v2492 = vpack.c.b16 %v2460, %v2460
      %v2493 = vpack.c.b16 %v2461, %v2461
      %v2494 = vpack.c.b16 %v2462, %v2462
      %v2495 = vpack.c.b16 %v2463, %v2463
      %v2496 = vpack.c.b16 %v2464, %v2464
      %v2497 = vpack.c.b16 %v2465, %v2465
      %v2498 = vpack.c.b16 %v2466, %v2466
      %v2499 = vpack.c.b16 %v2467, %v2467
      %v2500 = vpack.c.b16 %v2468, %v2468
      %v2501 = vpack.c.b16 %v2469, %v2469
      %v2502 = vpack.c.b16 %v2470, %v2470
      %v2503 = vpack.c.b16 %v2471, %v2471
      %v2504 = vpack.c.b16 %v2472, %v2472
      %v2505 = vpack.c.b16 %v2473, %v2473
      %v2506 = vpack.c.b16 %v2474, %v2474
      %v2507 = vpack.c.b16 %v2475, %v2475
      %v2508 = vpack.c.b16 %v2476, %v2476
      %v2509 = vpack.c.b16 %v2477, %v2477
      %v2510 = vpack.c.b16 %v2478, %v2478
      %v2511 = vpack.c.b16 %v2479, %v2479
      %v2512 = vpack.c.b16 %v2480, %v2480
      %vm2545 = vcmask 27648
      %2546 = vst.msk [vmem:[%s271] sm:$0xf] %vm2545, %v2481
      %2547 = vst.msk [vmem:[%s271 + $0x4] sm:$0xf] %vm2545, %v2482
      %2548 = vst.msk [vmem:[%s271 + $0x8] sm:$0xf] %vm2545, %v2483
      %2549 = vst.msk [vmem:[%s271 + $0xc] sm:$0xf] %vm2545, %v2484
      %2550 = vst.msk [vmem:[%s271 + $0x10] sm:$0xf] %vm2545, %v2485
      %2551 = vst.msk [vmem:[%s271 + $0x14] sm:$0xf] %vm2545, %v2486
      %2552 = vst.msk [vmem:[%s271 + $0x18] sm:$0xf] %vm2545, %v2487
      %2553 = vst.msk [vmem:[%s271 + $0x1c] sm:$0xf] %vm2545, %v2488
      %2554 = vst.msk [vmem:[%s271 + $0x20] sm:$0xf] %vm2545, %v2489
      %2555 = vst.msk [vmem:[%s271 + $0x24] sm:$0xf] %vm2545, %v2490
      %2556 = vst.msk [vmem:[%s271 + $0x28] sm:$0xf] %vm2545, %v2491
      %2557 = vst.msk [vmem:[%s271 + $0x2c] sm:$0xf] %vm2545, %v2492
      %2558 = vst.msk [vmem:[%s271 + $0x30] sm:$0xf] %vm2545, %v2493
      %2559 = vst.msk [vmem:[%s271 + $0x34] sm:$0xf] %vm2545, %v2494
      %2560 = vst.msk [vmem:[%s271 + $0x38] sm:$0xf] %vm2545, %v2495
      %2561 = vst.msk [vmem:[%s271 + $0x3c] sm:$0xf] %vm2545, %v2496
      %2562 = vst.msk [vmem:[%s271 + $0x40] sm:$0xf] %vm2545, %v2497
      %2563 = vst.msk [vmem:[%s271 + $0x44] sm:$0xf] %vm2545, %v2498
      %2564 = vst.msk [vmem:[%s271 + $0x48] sm:$0xf] %vm2545, %v2499
      %2565 = vst.msk [vmem:[%s271 + $0x4c] sm:$0xf] %vm2545, %v2500
      %2566 = vst.msk [vmem:[%s271 + $0x50] sm:$0xf] %vm2545, %v2501
      %2567 = vst.msk [vmem:[%s271 + $0x54] sm:$0xf] %vm2545, %v2502
      %2568 = vst.msk [vmem:[%s271 + $0x58] sm:$0xf] %vm2545, %v2503
      %2569 = vst.msk [vmem:[%s271 + $0x5c] sm:$0xf] %vm2545, %v2504
      %2570 = vst.msk [vmem:[%s271 + $0x60] sm:$0xf] %vm2545, %v2505
      %2571 = vst.msk [vmem:[%s271 + $0x64] sm:$0xf] %vm2545, %v2506
      %2572 = vst.msk [vmem:[%s271 + $0x68] sm:$0xf] %vm2545, %v2507
      %2573 = vst.msk [vmem:[%s271 + $0x6c] sm:$0xf] %vm2545, %v2508
      %2574 = vst.msk [vmem:[%s271 + $0x70] sm:$0xf] %vm2545, %v2509
      %2575 = vst.msk [vmem:[%s271 + $0x74] sm:$0xf] %vm2545, %v2510
      %2576 = vst.msk [vmem:[%s271 + $0x78] sm:$0xf] %vm2545, %v2511
      %2577 = vst.msk [vmem:[%s271 + $0x7c] sm:$0xf] %vm2545, %v2512
      %p2578 = scmp.lt.s32.totalorder %s17, 1
      %s2579 = scalar_select %p2578, %s17, 1
      %s2580 = smul.addr %s2579, 32
      %s2581 = smul.addr %s2580, 4
      %s2582 = scalar_lea.vmem %s6, %s2581
      // Predicated region
      $region45: #{upsample_forward.4} parent=43 // pred_check
        %p2583 = pneg %p171
      $region46: #{upsample_forward.4} parent=43 // pred_check_branch
        %2585 = sbr.rel (%p2583) target = $region48
      $region47: #{upsample_forward.4} parent=43 // pred_region
        _
      $region48: #{upsample_forward.4} parent=43 // pred_fallthru
        _
    $region44: #{upsample_forward.4} parent=5 // pred_fallthru
      _
    %p2586 = scmp.le.s32.totalorder 2, %s12
    // Predicated region
    $region49: #{upsample_forward.4} parent=5 // pred_check
      %p2587 = pneg %p2586
    $region50: #{upsample_forward.4} parent=5 // pred_check_branch
      %2589 = sbr.rel (%p2587) target = $region52
    $region51: #{upsample_forward.4} parent=5 // pred_region
      %s2590 = ssub.s32 %s12, 2
      // Predicated region
      $region53: #{upsample_forward.4} parent=51 // pred_check
        %p2591 = pneg %p177
      $region54: #{upsample_forward.4} parent=51 // pred_check_branch
        %2593 = sbr.rel (%p2591) target = $region56
      $region55: #{upsample_forward.4} parent=51 // pred_region
        %p2594 = scmp.lt.s32.totalorder %s18, 1
        %s2595 = scalar_select %p2594, %s18, 1
        %s2596 = smul.addr %s2595, 32
        %s2597 = smul.addr %s2596, 4
        %s2598 = scalar_lea.vmem %s6, %s2597
      $region56: #{upsample_forward.4} parent=51 // pred_fallthru
        _
    $region52: #{upsample_forward.4} parent=5 // pred_fallthru
      _
  $region6: #{upsample_forward.4} parent=0 // loop_footer
    %s16 = sadd.s32 1, %s12
  $region7: #{upsample_forward.4} parent=0 // loop_footer_branch
    %11 = sbr.rel target = $region3
  $region8: #{upsample_forward.4} parent=0 // loop_exit
    _

</llo_original>
